<compile_context>
chip_gen: v7x
topology: tpu7x:2x2x1
jax: 0.10.0
libtpu: 0.0.40
codegen_flags: <defaults>
</compile_context>

<pallas_src>
import functools

import jax
import jax.numpy as jnp
from jax import lax
from jax.experimental import pallas as pl
from jax.experimental.pallas import tpu as pltpu


# ----------------------------------------------------------------------------
# Pallas kernels
# ----------------------------------------------------------------------------
def _matmul_lrelu_kernel(a_ref, b_ref, o_ref, *, slope):
    """(tm, K) x (K, N) tile with fused LeakyReLU epilogue (conv1)."""
    y = jnp.dot(a_ref[...], b_ref[...], preferred_element_type=jnp.float32)
    o_ref[...] = jnp.where(y >= 0, y, slope * y)


def conv1_matmul(a, b, *, slope=0.2, tm=1024):
    """(M, K) @ (K, N) -> (M, N) in f32, LeakyReLU fused; exact tiles, no pad."""
    M, K = a.shape
    _, N = b.shape
    if M % tm != 0:          # fallback: single full tile (always legal block)
        tm = M
    return pl.pallas_call(
        functools.partial(_matmul_lrelu_kernel, slope=slope),
        out_shape=jax.ShapeDtypeStruct((M, N), jnp.float32),
        grid=(M // tm,),
        in_specs=[
            pl.BlockSpec((tm, K), lambda i: (i, 0)),
            pl.BlockSpec((K, N), lambda i: (0, 0)),
        ],
        out_specs=pl.BlockSpec((tm, N), lambda i: (i, 0)),
        compiler_params=pltpu.CompilerParams(dimension_semantics=("parallel",)),
    )(a, b)


def _bn_lrelu_epilogue(y, gamma, beta, *, slope, eps):
    """Training-mode BN (one-pass sum/sumsq, folded scale+shift) + LeakyReLU."""
    m = y.shape[0]
    mean = jnp.sum(y, axis=0, keepdims=True) / m
    meansq = jnp.sum(y * y, axis=0, keepdims=True) / m
    var = meansq - mean * mean                      # biased variance over M rows
    scale = gamma * lax.rsqrt(var + eps)            # rsqrt -> EUP slot (free-ish)
    shift = beta - mean * scale
    z = y * scale + shift                           # single FMA per element
    return jnp.where(z >= 0, z, slope * z)


def _conv_bn_lrelu_kernel(p_ref, w_ref, g_ref, b_ref, o_ref, *, slope, eps):
    """Single-tile fused: matmul + BatchNorm + LeakyReLU (conv2 / conv3)."""
    y = jnp.dot(p_ref[...], w_ref[...], preferred_element_type=jnp.float32)
    o_ref[...] = _bn_lrelu_epilogue(y, g_ref[...], b_ref[...], slope=slope, eps=eps)


def fused_conv_bn_lrelu(p, wm, gamma, beta, *, slope=0.2, eps=1e-5):
    M, _ = p.shape
    C = wm.shape[1]
    return pl.pallas_call(
        functools.partial(_conv_bn_lrelu_kernel, slope=slope, eps=eps),
        out_shape=jax.ShapeDtypeStruct((M, C), jnp.float32),
    )(p, wm, gamma.reshape(1, C), beta.reshape(1, C))


def _conv_bn_lrelu_head_kernel(p_ref, w_ref, g_ref, b_ref, w5_ref, o_ref,
                               *, slope, eps, batch, hw):
    """Single-tile fused tail: conv4 matmul + BN + LeakyReLU + conv5.

    conv5 (4x4 kernel, stride 2, pad 0 on a 4x4 map -> 1x1 output) is a
    per-sample full reduction over the conv4 activation, done on the VPU.
    """
    y = jnp.dot(p_ref[...], w_ref[...], preferred_element_type=jnp.float32)  # (batch*hw, C)
    z = _bn_lrelu_epilogue(y, g_ref[...], b_ref[...], slope=slope, eps=eps)
    w5 = w5_ref[...]                                                         # (hw, C)
    for n in range(batch):                          # static loop, sublane-aligned slices
        zn = z[n * hw:(n + 1) * hw, :]
        o_ref[pl.ds(n, 1), :] = jnp.sum(zn * w5).reshape(1, 1)


def fused_conv_bn_lrelu_head(p, wm, gamma, beta, w5m, *, batch, hw,
                             slope=0.2, eps=1e-5):
    C = wm.shape[1]
    return pl.pallas_call(
        functools.partial(_conv_bn_lrelu_head_kernel,
                          slope=slope, eps=eps, batch=batch, hw=hw),
        out_shape=jax.ShapeDtypeStruct((batch, 1), jnp.float32),
    )(p, wm, gamma.reshape(1, C), beta.reshape(1, C), w5m)


# ----------------------------------------------------------------------------
# JAX glue: im2col, reparameterization + KL (XLA, fuses with weight math)
# ----------------------------------------------------------------------------
def im2col(x_nhwc, k, stride, pad):
    """NHWC -> (N*OH*OW, k*k*C) patches, feature order (kh, kw, c)."""
    N, H, W, C = x_nhwc.shape
    xp = jnp.pad(x_nhwc, ((0, 0), (pad, pad), (pad, pad), (0, 0)))
    OH = (H + 2 * pad - k) // stride + 1
    OW = (W + 2 * pad - k) // stride + 1
    cols = []
    for kh in range(k):
        for kw in range(k):
            cols.append(
                lax.slice(
                    xp,
                    (0, kh, kw, 0),
                    (N, kh + stride * (OH - 1) + 1, kw + stride * (OW - 1) + 1, C),
                    (1, stride, stride, 1),
                )
            )
    patches = jnp.stack(cols, axis=3)                # (N, OH, OW, k*k, C)
    return patches.reshape(N * OH * OW, k * k * C), OH, OW


def reparam_and_kl(layer_params, *, prior_mu=0.0, prior_sigma=1.0):
    """sigma = softplus(rho); W = mu + sigma*eps; KL vs N(prior_mu, prior_sigma)."""
    mu, rho, eps = layer_params
    sigma = jnp.log1p(jnp.exp(rho))
    w = mu + sigma * eps
    kl = jnp.sum(jnp.log(prior_sigma) - jnp.log(sigma)
                 + (sigma * sigma + (mu - prior_mu) ** 2)
                 / (2.0 * prior_sigma * prior_sigma)
                 - 0.5)
    return w, kl


def weight_to_mat(w):
    """(C_out, C_in, k, k) -> (k*k*C_in, C_out), feature order (kh, kw, c)."""
    c_out, c_in, k, _ = w.shape
    return jnp.transpose(w, (2, 3, 1, 0)).reshape(k * k * c_in, c_out)


@jax.jit
def bayes_discriminator_forward(x_nchw, conv_params, bn_params):
    x = jnp.transpose(x_nchw, (0, 2, 3, 1)).astype(jnp.float32)   # NCHW -> NHWC
    n = x.shape[0]

    # Reparameterized weights + KL (pure XLA; fuses, no kernel launches).
    ws, kls = [], []
    for lp in conv_params:
        w, kl = reparam_and_kl(lp)
        ws.append(w)
        kls.append(kl)
    kl_sum = jnp.asarray(sum(kls), jnp.float32)

    # conv1 + LeakyReLU(0.2): 2-tile Pallas matmul, fused epilogue.
    p1, oh, ow = im2col(x, 4, 2, 1)
    y1 = conv1_matmul(p1, weight_to_mat(ws[0]), slope=0.2, tm=1024)
    x = y1.reshape(n, oh, ow, ws[0].shape[0])

    # conv2 -> bn1 -> LeakyReLU ; conv3 -> bn2 -> LeakyReLU (one fused kernel each).
    for li in (1, 2):
        p, oh, ow = im2col(x, 4, 2, 1)
        wm = weight_to_mat(ws[li])
        gamma, beta = bn_params[li - 1]
        y = fused_conv_bn_lrelu(p, wm, gamma, beta, slope=0.2, eps=1e-5)
        x = y.reshape(n, oh, ow, wm.shape[1])

    # conv4 -> bn3 -> LeakyReLU -> conv5, all in one fused kernel.
    p4, oh4, ow4 = im2col(x, 4, 2, 1)                # (n*4*4, 512)
    w4m = weight_to_mat(ws[3])                       # (512, 64)
    gamma3, beta3 = bn_params[2]
    c5_out, c5_in, k5, _ = ws[4].shape
    assert oh4 == k5 and ow4 == k5 and c5_out == 1   # conv5 collapses 4x4 -> 1x1
    w5m = jnp.transpose(ws[4], (2, 3, 1, 0)).reshape(k5 * k5, c5_in)   # (16, 64)
    out = fused_conv_bn_lrelu_head(p4, w4m, gamma3, beta3, w5m,
                                   batch=n, hw=oh4 * ow4, slope=0.2, eps=1e-5)
    out = out.reshape(n, 1, 1, 1)                    # NCHW (== NHWC here)
    return out, kl_sum


# ----------------------------------------------------------------------------
# Deterministic parameter construction
# ----------------------------------------------------------------------------
def init_bayes_conv(key, c_in, c_out, k=4,
                    posterior_mu_init=0.0, posterior_rho_init=-3.0):
    k1, k2, k3 = jax.random.split(key, 3)
    mu = posterior_mu_init + 0.1 * jax.random.normal(k1, (c_out, c_in, k, k), jnp.float32)
    rho = posterior_rho_init + 0.1 * jax.random.normal(k2, (c_out, c_in, k, k), jnp.float32)
    eps = jax.random.normal(k3, (c_out, c_in, k, k), jnp.float32)   # reparam noise (fixed)
    return mu, rho, eps


if __name__ == "__main__":
    channels_img = 3
    features_d = 8
    batch = 2
    spatial = 64   # DCGAN discriminator geometry: 64 -> 32 -> 16 -> 8 -> 4 -> 1

    key = jax.random.PRNGKey(0)
    kx, k1, k2, k3, k4, k5 = jax.random.split(key, 6)

    x = jax.random.normal(kx, (batch, channels_img, spatial, spatial), jnp.float32)

    conv_params = (
        init_bayes_conv(k1, channels_img, features_d),
        init_bayes_conv(k2, features_d, features_d * 2),
        init_bayes_conv(k3, features_d * 2, features_d * 4),
        init_bayes_conv(k4, features_d * 4, features_d * 8),
        init_bayes_conv(k5, features_d * 8, 1),
    )
    # BatchNorm2d default init: gamma = 1, beta = 0
    bn_params = (
        (jnp.ones((features_d * 2,), jnp.float32), jnp.zeros((features_d * 2,), jnp.float32)),
        (jnp.ones((features_d * 4,), jnp.float32), jnp.zeros((features_d * 4,), jnp.float32)),
        (jnp.ones((features_d * 8,), jnp.float32), jnp.zeros((features_d * 8,), jnp.float32)),
    )

    out, kl_sum = bayes_discriminator_forward(x, conv_params, bn_params)
    out = jax.block_until_ready(out)
    kl_sum = jax.block_until_ready(kl_sum)

    assert out.shape == (batch, 1, 1, 1), out.shape
    assert kl_sum.shape == (), kl_sum.shape
    print("KERNEL_OK")
</pallas_src>

<mosaic_0001>
module attributes {stable_mosaic.version = 11 : i64} {
  func.func @_matmul_lrelu_kernel(%arg0: i32, %arg1: memref<1024x48xf32, #tpu.memory_space<vmem>>, %arg2: memref<48x8xf32, #tpu.memory_space<vmem>>, %arg3: memref<1024x8xf32, #tpu.memory_space<vmem>>) attributes {dimension_semantics = [#tpu.dimension_semantics<parallel>], iteration_bounds = array<i64: 2>, scalar_prefetch = 0 : i64, scratch_operands = 0 : i64, tpu.core_type = #tpu.core_type<tc>, window_params = [{transform_indices = @transform_0, window_bounds = array<i64: 1024, 48>}, {pipeline_mode = #tpu.pipeline_mode<synchronous>, transform_indices = @transform_1, window_bounds = array<i64: 48, 8>}, {transform_indices = @transform_2, window_bounds = array<i64: 1024, 8>}]} {
    %c0 = arith.constant 0 : index
    %c0_0 = arith.constant 0 : index
    %0 = vector.load %arg1[%c0, %c0_0] : memref<1024x48xf32, #tpu.memory_space<vmem>>, vector<1024x48xf32>
    %c0_1 = arith.constant 0 : index
    %c0_2 = arith.constant 0 : index
    %1 = vector.load %arg2[%c0_1, %c0_2] : memref<48x8xf32, #tpu.memory_space<vmem>>, vector<48x8xf32>
    %cst = arith.constant dense<0.000000e+00> : vector<1024x8xf32>
    %2 = tpu.matmul %0, %1, %cst {dimension_numbers = #tpu.dot_dimension_numbers<[1], [0], [0], [1], [0, 0, 1, 1], [], []>} : vector<1024x48xf32>, vector<48x8xf32>, vector<1024x8xf32> -> vector<1024x8xf32>
    %cst_3 = arith.constant 0.000000e+00 : f32
    %3 = vector.broadcast %cst_3 : f32 to vector<1024x8xf32>
    %4 = arith.cmpf oge, %2, %3 : vector<1024x8xf32>
    %cst_4 = arith.constant 2.000000e-01 : f32
    %5 = vector.broadcast %cst_4 : f32 to vector<1024x8xf32>
    %6 = arith.mulf %5, %2 : vector<1024x8xf32>
    %7 = arith.select %4, %2, %6 : vector<1024x8xi1>, vector<1024x8xf32>
    %c0_5 = arith.constant 0 : index
    %c0_6 = arith.constant 0 : index
    %8 = vector.load %arg3[%c0_5, %c0_6] : memref<1024x8xf32, #tpu.memory_space<vmem>>, vector<1024x8xf32>
    tpu.vector_store %arg3[%c0_5, %c0_6], %7 {strides = array<i32>} : memref<1024x8xf32, #tpu.memory_space<vmem>>, vector<1024x8xf32>,
    return
  }
  func.func @transform_0(%arg0: i32) -> (i32, i32) {
    %c0_i32 = arith.constant 0 : i32
    %c0_i32_0 = arith.constant 0 : i32
    return %arg0, %c0_i32 : i32, i32
  }
  func.func @transform_1(%arg0: i32) -> (i32, i32) {
    %c0_i32 = arith.constant 0 : i32
    %c0_i32_0 = arith.constant 0 : i32
    %c0_i32_1 = arith.constant 0 : i32
    return %c0_i32, %c0_i32_0 : i32, i32
  }
  func.func @transform_2(%arg0: i32) -> (i32, i32) {
    %c0_i32 = arith.constant 0 : i32
    %c0_i32_0 = arith.constant 0 : i32
    return %arg0, %c0_i32 : i32, i32
  }
}

module attributes {stable_mosaic.version = 11 : i64} {
  func.func @_conv_bn_lrelu_kernel(%arg0: memref<512x128xf32, #tpu.memory_space<vmem>>, %arg1: memref<128x16xf32, #tpu.memory_space<vmem>>, %arg2: memref<1x16xf32, #tpu.memory_space<vmem>>, %arg3: memref<1x16xf32, #tpu.memory_space<vmem>>, %arg4: memref<512x16xf32, #tpu.memory_space<vmem>>) attributes {dimension_semantics = [], scalar_prefetch = 0 : i64, scratch_operands = 0 : i64, tpu.core_type = #tpu.core_type<tc>} {
    %c0 = arith.constant 0 : index
    %c0_0 = arith.constant 0 : index
    %0 = vector.load %arg0[%c0, %c0_0] : memref<512x128xf32, #tpu.memory_space<vmem>>, vector<512x128xf32>
    %c0_1 = arith.constant 0 : index
    %c0_2 = arith.constant 0 : index
    %1 = vector.load %arg1[%c0_1, %c0_2] : memref<128x16xf32, #tpu.memory_space<vmem>>, vector<128x16xf32>
    %cst = arith.constant dense<0.000000e+00> : vector<512x16xf32>
    %2 = tpu.matmul %0, %1, %cst {dimension_numbers = #tpu.dot_dimension_numbers<[1], [0], [0], [1], [0, 0, 1, 1], [], []>} : vector<512x128xf32>, vector<128x16xf32>, vector<512x16xf32> -> vector<512x16xf32>
    %c0_3 = arith.constant 0 : index
    %c0_4 = arith.constant 0 : index
    %3 = vector.load %arg2[%c0_3, %c0_4] : memref<1x16xf32, #tpu.memory_space<vmem>>, vector<1x16xf32>
    %c0_5 = arith.constant 0 : index
    %c0_6 = arith.constant 0 : index
    %4 = vector.load %arg3[%c0_5, %c0_6] : memref<1x16xf32, #tpu.memory_space<vmem>>, vector<1x16xf32>
    %cst_7 = arith.constant dense<0.000000e+00> : vector<16xf32>
    %5 = vector.multi_reduction <add>, %2, %cst_7 [0] : vector<512x16xf32> to vector<16xf32>
    %6 = vector.shape_cast %5 : vector<16xf32> to vector<1x16xf32>
    %cst_8 = arith.constant 5.120000e+02 : f32
    %7 = vector.broadcast %cst_8 : f32 to vector<1x16xf32>
    %8 = arith.divf %6, %7 : vector<1x16xf32>
    %9 = arith.mulf %2, %2 : vector<512x16xf32>
    %cst_9 = arith.constant dense<0.000000e+00> : vector<16xf32>
    %10 = vector.multi_reduction <add>, %9, %cst_9 [0] : vector<512x16xf32> to vector<16xf32>
    %11 = vector.shape_cast %10 : vector<16xf32> to vector<1x16xf32>
    %cst_10 = arith.constant 5.120000e+02 : f32
    %12 = vector.broadcast %cst_10 : f32 to vector<1x16xf32>
    %13 = arith.divf %11, %12 : vector<1x16xf32>
    %14 = arith.mulf %8, %8 : vector<1x16xf32>
    %15 = arith.subf %13, %14 : vector<1x16xf32>
    %cst_11 = arith.constant 9.99999974E-6 : f32
    %16 = vector.broadcast %cst_11 : f32 to vector<1x16xf32>
    %17 = arith.addf %15, %16 : vector<1x16xf32>
    %18 = math.rsqrt %17 : vector<1x16xf32>
    %19 = arith.mulf %3, %18 : vector<1x16xf32>
    %20 = arith.mulf %8, %19 : vector<1x16xf32>
    %21 = arith.subf %4, %20 : vector<1x16xf32>
    %22 = vector.broadcast %19 : vector<1x16xf32> to vector<512x16xf32>
    %23 = arith.mulf %2, %22 : vector<512x16xf32>
    %24 = vector.broadcast %21 : vector<1x16xf32> to vector<512x16xf32>
    %25 = arith.addf %23, %24 : vector<512x16xf32>
    %cst_12 = arith.constant 0.000000e+00 : f32
    %26 = vector.broadcast %cst_12 : f32 to vector<512x16xf32>
    %27 = arith.cmpf oge, %25, %26 : vector<512x16xf32>
    %cst_13 = arith.constant 2.000000e-01 : f32
    %28 = vector.broadcast %cst_13 : f32 to vector<512x16xf32>
    %29 = arith.mulf %28, %25 : vector<512x16xf32>
    %30 = arith.select %27, %25, %29 : vector<512x16xi1>, vector<512x16xf32>
    %c0_14 = arith.constant 0 : index
    %c0_15 = arith.constant 0 : index
    %31 = vector.load %arg4[%c0_14, %c0_15] : memref<512x16xf32, #tpu.memory_space<vmem>>, vector<512x16xf32>
    tpu.vector_store %arg4[%c0_14, %c0_15], %30 {strides = array<i32>} : memref<512x16xf32, #tpu.memory_space<vmem>>, vector<512x16xf32>,
    return
  }
}

module attributes {stable_mosaic.version = 11 : i64} {
  func.func @_conv_bn_lrelu_kernel(%arg0: memref<128x256xf32, #tpu.memory_space<vmem>>, %arg1: memref<256x32xf32, #tpu.memory_space<vmem>>, %arg2: memref<1x32xf32, #tpu.memory_space<vmem>>, %arg3: memref<1x32xf32, #tpu.memory_space<vmem>>, %arg4: memref<128x32xf32, #tpu.memory_space<vmem>>) attributes {dimension_semantics = [], scalar_prefetch = 0 : i64, scratch_operands = 0 : i64, tpu.core_type = #tpu.core_type<tc>} {
    %c0 = arith.constant 0 : index
    %c0_0 = arith.constant 0 : index
    %0 = vector.load %arg0[%c0, %c0_0] : memref<128x256xf32, #tpu.memory_space<vmem>>, vector<128x256xf32>
    %c0_1 = arith.constant 0 : index
    %c0_2 = arith.constant 0 : index
    %1 = vector.load %arg1[%c0_1, %c0_2] : memref<256x32xf32, #tpu.memory_space<vmem>>, vector<256x32xf32>
    %cst = arith.constant dense<0.000000e+00> : vector<128x32xf32>
    %2 = tpu.matmul %0, %1, %cst {dimension_numbers = #tpu.dot_dimension_numbers<[1], [0], [0], [1], [0, 0, 1, 1], [], []>} : vector<128x256xf32>, vector<256x32xf32>, vector<128x32xf32> -> vector<128x32xf32>
    %c0_3 = arith.constant 0 : index
    %c0_4 = arith.constant 0 : index
    %3 = vector.load %arg2[%c0_3, %c0_4] : memref<1x32xf32, #tpu.memory_space<vmem>>, vector<1x32xf32>
    %c0_5 = arith.constant 0 : index
    %c0_6 = arith.constant 0 : index
    %4 = vector.load %arg3[%c0_5, %c0_6] : memref<1x32xf32, #tpu.memory_space<vmem>>, vector<1x32xf32>
    %cst_7 = arith.constant dense<0.000000e+00> : vector<32xf32>
    %5 = vector.multi_reduction <add>, %2, %cst_7 [0] : vector<128x32xf32> to vector<32xf32>
    %6 = vector.shape_cast %5 : vector<32xf32> to vector<1x32xf32>
    %cst_8 = arith.constant 1.280000e+02 : f32
    %7 = vector.broadcast %cst_8 : f32 to vector<1x32xf32>
    %8 = arith.divf %6, %7 : vector<1x32xf32>
    %9 = arith.mulf %2, %2 : vector<128x32xf32>
    %cst_9 = arith.constant dense<0.000000e+00> : vector<32xf32>
    %10 = vector.multi_reduction <add>, %9, %cst_9 [0] : vector<128x32xf32> to vector<32xf32>
    %11 = vector.shape_cast %10 : vector<32xf32> to vector<1x32xf32>
    %cst_10 = arith.constant 1.280000e+02 : f32
    %12 = vector.broadcast %cst_10 : f32 to vector<1x32xf32>
    %13 = arith.divf %11, %12 : vector<1x32xf32>
    %14 = arith.mulf %8, %8 : vector<1x32xf32>
    %15 = arith.subf %13, %14 : vector<1x32xf32>
    %cst_11 = arith.constant 9.99999974E-6 : f32
    %16 = vector.broadcast %cst_11 : f32 to vector<1x32xf32>
    %17 = arith.addf %15, %16 : vector<1x32xf32>
    %18 = math.rsqrt %17 : vector<1x32xf32>
    %19 = arith.mulf %3, %18 : vector<1x32xf32>
    %20 = arith.mulf %8, %19 : vector<1x32xf32>
    %21 = arith.subf %4, %20 : vector<1x32xf32>
    %22 = vector.broadcast %19 : vector<1x32xf32> to vector<128x32xf32>
    %23 = arith.mulf %2, %22 : vector<128x32xf32>
    %24 = vector.broadcast %21 : vector<1x32xf32> to vector<128x32xf32>
    %25 = arith.addf %23, %24 : vector<128x32xf32>
    %cst_12 = arith.constant 0.000000e+00 : f32
    %26 = vector.broadcast %cst_12 : f32 to vector<128x32xf32>
    %27 = arith.cmpf oge, %25, %26 : vector<128x32xf32>
    %cst_13 = arith.constant 2.000000e-01 : f32
    %28 = vector.broadcast %cst_13 : f32 to vector<128x32xf32>
    %29 = arith.mulf %28, %25 : vector<128x32xf32>
    %30 = arith.select %27, %25, %29 : vector<128x32xi1>, vector<128x32xf32>
    %c0_14 = arith.constant 0 : index
    %c0_15 = arith.constant 0 : index
    %31 = vector.load %arg4[%c0_14, %c0_15] : memref<128x32xf32, #tpu.memory_space<vmem>>, vector<128x32xf32>
    tpu.vector_store %arg4[%c0_14, %c0_15], %30 {strides = array<i32>} : memref<128x32xf32, #tpu.memory_space<vmem>>, vector<128x32xf32>,
    return
  }
}

module attributes {stable_mosaic.version = 11 : i64} {
  func.func @_conv_bn_lrelu_head_kernel(%arg0: memref<32x512xf32, #tpu.memory_space<vmem>>, %arg1: memref<512x64xf32, #tpu.memory_space<vmem>>, %arg2: memref<1x64xf32, #tpu.memory_space<vmem>>, %arg3: memref<1x64xf32, #tpu.memory_space<vmem>>, %arg4: memref<16x64xf32, #tpu.memory_space<vmem>>, %arg5: memref<2x1xf32, #tpu.memory_space<vmem>>) attributes {dimension_semantics = [], scalar_prefetch = 0 : i64, scratch_operands = 0 : i64, tpu.core_type = #tpu.core_type<tc>} {
    %c0 = arith.constant 0 : index
    %c0_0 = arith.constant 0 : index
    %0 = vector.load %arg0[%c0, %c0_0] : memref<32x512xf32, #tpu.memory_space<vmem>>, vector<32x512xf32>
    %c0_1 = arith.constant 0 : index
    %c0_2 = arith.constant 0 : index
    %1 = vector.load %arg1[%c0_1, %c0_2] : memref<512x64xf32, #tpu.memory_space<vmem>>, vector<512x64xf32>
    %cst = arith.constant dense<0.000000e+00> : vector<32x64xf32>
    %2 = tpu.matmul %0, %1, %cst {dimension_numbers = #tpu.dot_dimension_numbers<[1], [0], [0], [1], [0, 0, 1, 1], [], []>} : vector<32x512xf32>, vector<512x64xf32>, vector<32x64xf32> -> vector<32x64xf32>
    %c0_3 = arith.constant 0 : index
    %c0_4 = arith.constant 0 : index
    %3 = vector.load %arg2[%c0_3, %c0_4] : memref<1x64xf32, #tpu.memory_space<vmem>>, vector<1x64xf32>
    %c0_5 = arith.constant 0 : index
    %c0_6 = arith.constant 0 : index
    %4 = vector.load %arg3[%c0_5, %c0_6] : memref<1x64xf32, #tpu.memory_space<vmem>>, vector<1x64xf32>
    %cst_7 = arith.constant dense<0.000000e+00> : vector<64xf32>
    %5 = vector.multi_reduction <add>, %2, %cst_7 [0] : vector<32x64xf32> to vector<64xf32>
    %6 = vector.shape_cast %5 : vector<64xf32> to vector<1x64xf32>
    %cst_8 = arith.constant 3.200000e+01 : f32
    %7 = vector.broadcast %cst_8 : f32 to vector<1x64xf32>
    %8 = arith.divf %6, %7 : vector<1x64xf32>
    %9 = arith.mulf %2, %2 : vector<32x64xf32>
    %cst_9 = arith.constant dense<0.000000e+00> : vector<64xf32>
    %10 = vector.multi_reduction <add>, %9, %cst_9 [0] : vector<32x64xf32> to vector<64xf32>
    %11 = vector.shape_cast %10 : vector<64xf32> to vector<1x64xf32>
    %cst_10 = arith.constant 3.200000e+01 : f32
    %12 = vector.broadcast %cst_10 : f32 to vector<1x64xf32>
    %13 = arith.divf %11, %12 : vector<1x64xf32>
    %14 = arith.mulf %8, %8 : vector<1x64xf32>
    %15 = arith.subf %13, %14 : vector<1x64xf32>
    %cst_11 = arith.constant 9.99999974E-6 : f32
    %16 = vector.broadcast %cst_11 : f32 to vector<1x64xf32>
    %17 = arith.addf %15, %16 : vector<1x64xf32>
    %18 = math.rsqrt %17 : vector<1x64xf32>
    %19 = arith.mulf %3, %18 : vector<1x64xf32>
    %20 = arith.mulf %8, %19 : vector<1x64xf32>
    %21 = arith.subf %4, %20 : vector<1x64xf32>
    %22 = vector.broadcast %19 : vector<1x64xf32> to vector<32x64xf32>
    %23 = arith.mulf %2, %22 : vector<32x64xf32>
    %24 = vector.broadcast %21 : vector<1x64xf32> to vector<32x64xf32>
    %25 = arith.addf %23, %24 : vector<32x64xf32>
    %cst_12 = arith.constant 0.000000e+00 : f32
    %26 = vector.broadcast %cst_12 : f32 to vector<32x64xf32>
    %27 = arith.cmpf oge, %25, %26 : vector<32x64xf32>
    %cst_13 = arith.constant 2.000000e-01 : f32
    %28 = vector.broadcast %cst_13 : f32 to vector<32x64xf32>
    %29 = arith.mulf %28, %25 : vector<32x64xf32>
    %30 = arith.select %27, %25, %29 : vector<32x64xi1>, vector<32x64xf32>
    %c0_14 = arith.constant 0 : index
    %c0_15 = arith.constant 0 : index
    %31 = vector.load %arg4[%c0_14, %c0_15] : memref<16x64xf32, #tpu.memory_space<vmem>>, vector<16x64xf32>
    %32 = vector.extract_strided_slice %30 {offsets = [0, 0], sizes = [16, 64], strides = [1, 1]} : vector<32x64xf32> to vector<16x64xf32>
    %33 = arith.mulf %32, %31 : vector<16x64xf32>
    %34 = vector.shape_cast %33 : vector<16x64xf32> to vector<1x16x64xf32>
    %cst_16 = arith.constant dense<0.000000e+00> : vector<1xf32>
    %35 = vector.multi_reduction <add>, %34, %cst_16 [1, 2] : vector<1x16x64xf32> to vector<1xf32>
    %36 = vector.shape_cast %35 : vector<1xf32> to vector<1x1x1xf32>
    %37 = vector.extract %36[0, 0, 0] : f32 from vector<1x1x1xf32>
    %38 = vector.broadcast %37 : f32 to vector<1x1xf32>
    %c0_17 = arith.constant 0 : index
    %c0_18 = arith.constant 0 : index
    %39 = vector.load %arg5[%c0_17, %c0_18] : memref<2x1xf32, #tpu.memory_space<vmem>>, vector<1x1xf32>
    tpu.vector_store %arg5[%c0_17, %c0_18], %38 {strides = array<i32>} : memref<2x1xf32, #tpu.memory_space<vmem>>, vector<1x1xf32>,
    %40 = vector.extract_strided_slice %30 {offsets = [16, 0], sizes = [16, 64], strides = [1, 1]} : vector<32x64xf32> to vector<16x64xf32>
    %41 = arith.mulf %40, %31 : vector<16x64xf32>
    %42 = vector.shape_cast %41 : vector<16x64xf32> to vector<1x16x64xf32>
    %cst_19 = arith.constant dense<0.000000e+00> : vector<1xf32>
    %43 = vector.multi_reduction <add>, %42, %cst_19 [1, 2] : vector<1x16x64xf32> to vector<1xf32>
    %44 = vector.shape_cast %43 : vector<1xf32> to vector<1x1x1xf32>
    %45 = vector.extract %44[0, 0, 0] : f32 from vector<1x1x1xf32>
    %46 = vector.broadcast %45 : f32 to vector<1x1xf32>
    %c1 = arith.constant 1 : index
    %c0_20 = arith.constant 0 : index
    %47 = vector.load %arg5[%c1, %c0_20] : memref<2x1xf32, #tpu.memory_space<vmem>>, vector<1x1xf32>
    tpu.vector_store %arg5[%c1, %c0_20], %46 {strides = array<i32>} : memref<2x1xf32, #tpu.memory_space<vmem>>, vector<1x1xf32>,
    return
  }
}

</mosaic_0001>

<llo_original>
// kernel: bayes_discriminator_forward.4
$region0: #{bayes_discriminator_forward.4}
  #allocation0 [shape = 'u32[]', space=smem, size = 0x4, offset = 0x4, fixed_abs, tag = 'smem constant byte address 0x4 - core index']
  #allocation1 [shape = 'u32[144,128]{1,0:T(1,128)}', space=vmem, size = 0x12000, scoped, tag = 'internal scratch']
  %s0 = inlined_call_operand.vmem [shape: f32[2048,48], index: 0, kind: input, shape index: {}]
  %s1 = inlined_call_operand.vmem [shape: f32[48,8], index: 1, kind: input, shape index: {}]
  %s2 = inlined_call_operand.vmem [shape: f32[2048,8], index: 2, kind: output, shape index: {}]
  %s3 = sld [smem:[#allocation0]]
  $region41: #{bayes_discriminator_forward.4} parent=0
    _
  %s5 = ssub.s32 1, %s3
  %s6 = scalar_select 0, %s5, %s3
  loop: start=0, step=1, limit=4
  $region2: #{bayes_discriminator_forward.4} parent=0 // loop_pre_header
    _
  $region3: #{bayes_discriminator_forward.4} parent=0 // loop_header
    %s8 = sphi 0, %s12
    %p9 = scmp.ge.s32.totalorder %s8, 4
    %s18 = sphi 0, %s20
    %s21 = sphi 0, %s18
    %s22 = sphi 0, %s21
    %s38 = sphi 0, %s22
    %s42 = sphi 0, %s42
    %s44 = sphi 0, %s42
    %s45 = sphi 0, %s44
    %s59 = sphi 0, %s45
    %s65 = sphi 0, %s67
    %s68 = sphi 0, %s65
    %s69 = sphi 0, %s68
    %s85 = sphi 0, %s69
  $region4: #{bayes_discriminator_forward.4} parent=0 // loop_header_branch
    %11 = sbr.rel (%p9) target = $region8
  $region5: #{bayes_discriminator_forward.4} parent=0 // loop_body
    %s13 = ssub.s32 %s8, 1
    %s14 = ssub.s32 %s8, 2
    %s15 = sadd.s32 %s8, 1
    %s16 = ssub.s32 %s8, %s15
    %p17 = scmp.eq.s32.totalorder %s16, 0
    %s19 = sadd.s32 %s18, 1
    %s20 = scalar_select %p17, %s18, %s19
    %p23 = pneg %p17
    %p24 = scmp.eq.s32.totalorder %s8, 1
    %p25 = por %p23, %p24
    %p26 = scmp.ne.s32.totalorder %s18, %s21
    %p27 = scmp.eq.s32.totalorder %s8, 0
    %p28 = por %p26, %p27
    %p29 = scmp.ne.s32.totalorder %s18, %s21
    %p30 = scmp.eq.s32.totalorder %s13, 1
    %p31 = por %p29, %p30
    %p32 = scmp.ne.s32.totalorder %s21, %s22
    %p33 = scmp.eq.s32.totalorder %s13, 0
    %p34 = por %p32, %p33
    %p35 = scmp.ne.s32.totalorder %s21, %s22
    %p36 = scmp.eq.s32.totalorder %s14, 1
    %p37 = por %p35, %p36
    %p39 = scmp.ne.s32.totalorder %s22, %s38
    %p40 = scmp.eq.s32.totalorder %s14, 0
    %p41 = por %p39, %p40
    %s43 = sadd.s32 %s42, 1
    %p46 = scmp.eq.s32.totalorder %s8, 1
    %p47 = scmp.ne.s32.totalorder %s42, %s44
    %p48 = scmp.eq.s32.totalorder %s8, 0
    %p49 = por %p47, %p48
    %p50 = scmp.ne.s32.totalorder %s42, %s44
    %p51 = scmp.eq.s32.totalorder %s13, 1
    %p52 = por %p50, %p51
    %p53 = scmp.ne.s32.totalorder %s44, %s45
    %p54 = scmp.eq.s32.totalorder %s13, 0
    %p55 = por %p53, %p54
    %p56 = scmp.ne.s32.totalorder %s44, %s45
    %p57 = scmp.eq.s32.totalorder %s14, 1
    %p58 = por %p56, %p57
    %p60 = scmp.ne.s32.totalorder %s45, %s59
    %p61 = scmp.eq.s32.totalorder %s14, 0
    %p62 = por %p60, %p61
    %s63 = ssub.s32 %s8, %s15
    %p64 = scmp.eq.s32.totalorder %s63, 0
    %s66 = sadd.s32 %s65, 1
    %s67 = scalar_select %p64, %s65, %s66
    %p70 = pneg %p64
    %p71 = scmp.eq.s32.totalorder %s8, 1
    %p72 = por %p70, %p71
    %p73 = scmp.ne.s32.totalorder %s65, %s68
    %p74 = scmp.eq.s32.totalorder %s8, 0
    %p75 = por %p73, %p74
    %p76 = scmp.ne.s32.totalorder %s65, %s68
    %p77 = scmp.eq.s32.totalorder %s13, 1
    %p78 = por %p76, %p77
    %p79 = scmp.ne.s32.totalorder %s68, %s69
    %p80 = scmp.eq.s32.totalorder %s13, 0
    %p81 = por %p79, %p80
    %p82 = scmp.ne.s32.totalorder %s68, %s69
    %p83 = scmp.eq.s32.totalorder %s14, 1
    %p84 = por %p82, %p83
    %p86 = scmp.ne.s32.totalorder %s69, %s85
    %p87 = scmp.eq.s32.totalorder %s14, 0
    %p88 = por %p86, %p87
    %p89 = scmp.le.s32.totalorder 1, %s8
    %p90 = scmp.lt.s32.totalorder %s8, 3
    %p91 = pnand %p89, %p90
    %p92 = pneg %p91
    // Predicated region
    $region9: #{bayes_discriminator_forward.4} parent=5 // pred_check
      _
    $region10: #{bayes_discriminator_forward.4} parent=5 // pred_check_branch
      %94 = sbr.rel (%p91) target = $region12
    $region11: #{bayes_discriminator_forward.4} parent=5 // pred_region
      %s95 = ssub.s32 %s8, 1
      // Predicated region
      $region13: #{bayes_discriminator_forward.4} parent=11 // pred_check
        %p96 = pneg %p55
      $region14: #{bayes_discriminator_forward.4} parent=11 // pred_check_branch
        %98 = sbr.rel (%p96) target = $region16
      $region15: #{bayes_discriminator_forward.4} parent=11 // pred_region
        _
      $region16: #{bayes_discriminator_forward.4} parent=11 // pred_fallthru
        _
    $region12: #{bayes_discriminator_forward.4} parent=5 // pred_fallthru
      _
    %p99 = scmp.lt.s32.totalorder %s8, 2
    // Predicated region
    $region17: #{bayes_discriminator_forward.4} parent=5 // pred_check
      %p100 = pneg %p99
    $region18: #{bayes_discriminator_forward.4} parent=5 // pred_check_branch
      %102 = sbr.rel (%p100) target = $region20
    $region19: #{bayes_discriminator_forward.4} parent=5 // pred_region
      // Predicated region
      $region21: #{bayes_discriminator_forward.4} parent=19 // pred_check
        %p103 = pneg %p28
      $region22: #{bayes_discriminator_forward.4} parent=19 // pred_check_branch
        %105 = sbr.rel (%p103) target = $region24
      $region23: #{bayes_discriminator_forward.4} parent=19 // pred_region
        %s106 = smul.u32 128, %s8
        %p107 = scmp.lt.s32.totalorder %s106, 255
        %s108 = scalar_select %p107, %s106, 255
        %s109 = smul.addr %s108, 8
        %s110 = scalar_lea.vmem %s0, %s109
        %s111 = smul.u32 128, %s8
      $region24: #{bayes_discriminator_forward.4} parent=19 // pred_fallthru
        _
    $region20: #{bayes_discriminator_forward.4} parent=5 // pred_fallthru
      _
    %p112 = scmp.le.s32.totalorder 1, %s8
    %p113 = scmp.lt.s32.totalorder %s8, 3
    %p114 = pnand %p112, %p113
    %p115 = pneg %p114
    // Predicated region
    $region25: #{bayes_discriminator_forward.4} parent=5 // pred_check
      _
    $region26: #{bayes_discriminator_forward.4} parent=5 // pred_check_branch
      %117 = sbr.rel (%p114) target = $region28
    $region27: #{bayes_discriminator_forward.4} parent=5 // pred_region
      %s118 = ssub.s32 %s8, 1
      %s119 = smul.u32 128, %s13
      %p120 = scmp.lt.s32.totalorder %s119, 255
      %s121 = scalar_select %p120, %s119, 255
      %s122 = smul.addr %s121, 8
      %s123 = scalar_lea.vmem %s0, %s122
      %p124 = pneg %p34
      %p125 = pneg %p31
      %p126 = pneg %p55
      %p127 = pneg %p52
      %p128 = pneg %p81
      %p129 = pneg %p78
      %s130 = smul.u32 128, %s13
      %p131 = scmp.lt.s32.totalorder %s130, 255
      %s132 = scalar_select %p131, %s130, 255
      %s133 = smul.addr %s132, 8
      %s134 = scalar_lea.vmem %s2, %s133
      %s135 = smul.u32 128, %s13
      %p136 = scmp.lt.s32.totalorder %s135, 255
      %s137 = scalar_select %p136, %s135, 255
      %s138 = smul.addr %s137, 8
      %s139 = scalar_lea.vmem %s0, %s138
      %s140 = smul.u32 128, %s13
      %s141 = smul.u32 128, %s13
      %p142 = scmp.lt.s32.totalorder %s141, 255
      %s143 = scalar_select %p142, %s141, 255
      %s144 = smul.addr %s143, 8
      %s145 = scalar_lea.vmem %s2, %s144
      %s146 = smul.u32 128, %s13
      %v147 = vld [vmem:[%s139] sm:$0xff]
      %v148 = vld [vmem:[%s139 + $0x8] sm:$0xff]
      %v149 = vld [vmem:[%s139 + $0x10] sm:$0xff]
      %v150 = vld [vmem:[%s139 + $0x18] sm:$0xff]
      %v151 = vld [vmem:[%s139 + $0x20] sm:$0xff]
      %v152 = vld [vmem:[%s139 + $0x28] sm:$0xff]
      %v153 = vld [vmem:[%s139 + $0x30] sm:$0xff]
      %v154 = vld [vmem:[%s139 + $0x38] sm:$0xff]
      %v155 = vld [vmem:[%s139 + $0x40] sm:$0xff]
      %v156 = vld [vmem:[%s139 + $0x48] sm:$0xff]
      %v157 = vld [vmem:[%s139 + $0x50] sm:$0xff]
      %v158 = vld [vmem:[%s139 + $0x58] sm:$0xff]
      %v159 = vld [vmem:[%s139 + $0x60] sm:$0xff]
      %v160 = vld [vmem:[%s139 + $0x68] sm:$0xff]
      %v161 = vld [vmem:[%s139 + $0x70] sm:$0xff]
      %v162 = vld [vmem:[%s139 + $0x78] sm:$0xff]
      %v163 = vld [vmem:[%s139 + $0x80] sm:$0xff]
      %v164 = vld [vmem:[%s139 + $0x88] sm:$0xff]
      %v165 = vld [vmem:[%s139 + $0x90] sm:$0xff]
      %v166 = vld [vmem:[%s139 + $0x98] sm:$0xff]
      %v167 = vld [vmem:[%s139 + $0xa0] sm:$0xff]
      %v168 = vld [vmem:[%s139 + $0xa8] sm:$0xff]
      %v169 = vld [vmem:[%s139 + $0xb0] sm:$0xff]
      %v170 = vld [vmem:[%s139 + $0xb8] sm:$0xff]
      %v171 = vld [vmem:[%s139 + $0xc0] sm:$0xff]
      %v172 = vld [vmem:[%s139 + $0xc8] sm:$0xff]
      %v173 = vld [vmem:[%s139 + $0xd0] sm:$0xff]
      %v174 = vld [vmem:[%s139 + $0xd8] sm:$0xff]
      %v175 = vld [vmem:[%s139 + $0xe0] sm:$0xff]
      %v176 = vld [vmem:[%s139 + $0xe8] sm:$0xff]
      %v177 = vld [vmem:[%s139 + $0xf0] sm:$0xff]
      %v178 = vld [vmem:[%s139 + $0xf8] sm:$0xff]
      %v179 = vld [vmem:[%s139 + $0x100] sm:$0xff]
      %v180 = vld [vmem:[%s139 + $0x108] sm:$0xff]
      %v181 = vld [vmem:[%s139 + $0x110] sm:$0xff]
      %v182 = vld [vmem:[%s139 + $0x118] sm:$0xff]
      %v183 = vld [vmem:[%s139 + $0x120] sm:$0xff]
      %v184 = vld [vmem:[%s139 + $0x128] sm:$0xff]
      %v185 = vld [vmem:[%s139 + $0x130] sm:$0xff]
      %v186 = vld [vmem:[%s139 + $0x138] sm:$0xff]
      %v187 = vld [vmem:[%s139 + $0x140] sm:$0xff]
      %v188 = vld [vmem:[%s139 + $0x148] sm:$0xff]
      %v189 = vld [vmem:[%s139 + $0x150] sm:$0xff]
      %v190 = vld [vmem:[%s139 + $0x158] sm:$0xff]
      %v191 = vld [vmem:[%s139 + $0x160] sm:$0xff]
      %v192 = vld [vmem:[%s139 + $0x168] sm:$0xff]
      %v193 = vld [vmem:[%s139 + $0x170] sm:$0xff]
      %v194 = vld [vmem:[%s139 + $0x178] sm:$0xff]
      %v195 = vld [vmem:[%s139 + $0x180] sm:$0xff]
      %v196 = vld [vmem:[%s139 + $0x188] sm:$0xff]
      %v197 = vld [vmem:[%s139 + $0x190] sm:$0xff]
      %v198 = vld [vmem:[%s139 + $0x198] sm:$0xff]
      %v199 = vld [vmem:[%s139 + $0x1a0] sm:$0xff]
      %v200 = vld [vmem:[%s139 + $0x1a8] sm:$0xff]
      %v201 = vld [vmem:[%s139 + $0x1b0] sm:$0xff]
      %v202 = vld [vmem:[%s139 + $0x1b8] sm:$0xff]
      %v203 = vld [vmem:[%s139 + $0x1c0] sm:$0xff]
      %v204 = vld [vmem:[%s139 + $0x1c8] sm:$0xff]
      %v205 = vld [vmem:[%s139 + $0x1d0] sm:$0xff]
      %v206 = vld [vmem:[%s139 + $0x1d8] sm:$0xff]
      %v207 = vld [vmem:[%s139 + $0x1e0] sm:$0xff]
      %v208 = vld [vmem:[%s139 + $0x1e8] sm:$0xff]
      %v209 = vld [vmem:[%s139 + $0x1f0] sm:$0xff]
      %v210 = vld [vmem:[%s139 + $0x1f8] sm:$0xff]
      %v211 = vld [vmem:[%s139 + $0x200] sm:$0xff]
      %v212 = vld [vmem:[%s139 + $0x208] sm:$0xff]
      %v213 = vld [vmem:[%s139 + $0x210] sm:$0xff]
      %v214 = vld [vmem:[%s139 + $0x218] sm:$0xff]
      %v215 = vld [vmem:[%s139 + $0x220] sm:$0xff]
      %v216 = vld [vmem:[%s139 + $0x228] sm:$0xff]
      %v217 = vld [vmem:[%s139 + $0x230] sm:$0xff]
      %v218 = vld [vmem:[%s139 + $0x238] sm:$0xff]
      %v219 = vld [vmem:[%s139 + $0x240] sm:$0xff]
      %v220 = vld [vmem:[%s139 + $0x248] sm:$0xff]
      %v221 = vld [vmem:[%s139 + $0x250] sm:$0xff]
      %v222 = vld [vmem:[%s139 + $0x258] sm:$0xff]
      %v223 = vld [vmem:[%s139 + $0x260] sm:$0xff]
      %v224 = vld [vmem:[%s139 + $0x268] sm:$0xff]
      %v225 = vld [vmem:[%s139 + $0x270] sm:$0xff]
      %v226 = vld [vmem:[%s139 + $0x278] sm:$0xff]
      %v227 = vld [vmem:[%s139 + $0x280] sm:$0xff]
      %v228 = vld [vmem:[%s139 + $0x288] sm:$0xff]
      %v229 = vld [vmem:[%s139 + $0x290] sm:$0xff]
      %v230 = vld [vmem:[%s139 + $0x298] sm:$0xff]
      %v231 = vld [vmem:[%s139 + $0x2a0] sm:$0xff]
      %v232 = vld [vmem:[%s139 + $0x2a8] sm:$0xff]
      %v233 = vld [vmem:[%s139 + $0x2b0] sm:$0xff]
      %v234 = vld [vmem:[%s139 + $0x2b8] sm:$0xff]
      %v235 = vld [vmem:[%s139 + $0x2c0] sm:$0xff]
      %v236 = vld [vmem:[%s139 + $0x2c8] sm:$0xff]
      %v237 = vld [vmem:[%s139 + $0x2d0] sm:$0xff]
      %v238 = vld [vmem:[%s139 + $0x2d8] sm:$0xff]
      %v239 = vld [vmem:[%s139 + $0x2e0] sm:$0xff]
      %v240 = vld [vmem:[%s139 + $0x2e8] sm:$0xff]
      %v241 = vld [vmem:[%s139 + $0x2f0] sm:$0xff]
      %v242 = vld [vmem:[%s139 + $0x2f8] sm:$0xff]
      %v243 = vld [vmem:[%s139 + $0x300] sm:$0xff]
      %v244 = vld [vmem:[%s139 + $0x308] sm:$0xff]
      %v245 = vld [vmem:[%s139 + $0x310] sm:$0xff]
      %v246 = vld [vmem:[%s139 + $0x318] sm:$0xff]
      %v247 = vld [vmem:[%s139 + $0x320] sm:$0xff]
      %v248 = vld [vmem:[%s139 + $0x328] sm:$0xff]
      %v249 = vld [vmem:[%s139 + $0x330] sm:$0xff]
      %v250 = vld [vmem:[%s139 + $0x338] sm:$0xff]
      %v251 = vld [vmem:[%s139 + $0x340] sm:$0xff]
      %v252 = vld [vmem:[%s139 + $0x348] sm:$0xff]
      %v253 = vld [vmem:[%s139 + $0x350] sm:$0xff]
      %v254 = vld [vmem:[%s139 + $0x358] sm:$0xff]
      %v255 = vld [vmem:[%s139 + $0x360] sm:$0xff]
      %v256 = vld [vmem:[%s139 + $0x368] sm:$0xff]
      %v257 = vld [vmem:[%s139 + $0x370] sm:$0xff]
      %v258 = vld [vmem:[%s139 + $0x378] sm:$0xff]
      %v259 = vld [vmem:[%s139 + $0x380] sm:$0xff]
      %v260 = vld [vmem:[%s139 + $0x388] sm:$0xff]
      %v261 = vld [vmem:[%s139 + $0x390] sm:$0xff]
      %v262 = vld [vmem:[%s139 + $0x398] sm:$0xff]
      %v263 = vld [vmem:[%s139 + $0x3a0] sm:$0xff]
      %v264 = vld [vmem:[%s139 + $0x3a8] sm:$0xff]
      %v265 = vld [vmem:[%s139 + $0x3b0] sm:$0xff]
      %v266 = vld [vmem:[%s139 + $0x3b8] sm:$0xff]
      %v267 = vld [vmem:[%s139 + $0x3c0] sm:$0xff]
      %v268 = vld [vmem:[%s139 + $0x3c8] sm:$0xff]
      %v269 = vld [vmem:[%s139 + $0x3d0] sm:$0xff]
      %v270 = vld [vmem:[%s139 + $0x3d8] sm:$0xff]
      %v271 = vld [vmem:[%s139 + $0x3e0] sm:$0xff]
      %v272 = vld [vmem:[%s139 + $0x3e8] sm:$0xff]
      %v273 = vld [vmem:[%s139 + $0x3f0] sm:$0xff]
      %v274 = vld [vmem:[%s139 + $0x3f8] sm:$0xff]
      %v275 = vld [vmem:[%s1] sm:$0xff]
      %v276 = vld [vmem:[%s1 + $0x8] sm:$0xff]
      %v277 = vld [vmem:[%s1 + $0x10] sm:$0xff]
      %v278 = vld [vmem:[%s1 + $0x18] sm:$0xff]
      %v279 = vld [vmem:[%s1 + $0x20] sm:$0xff]
      %v280 = vld [vmem:[%s1 + $0x28] sm:$0xff]
      %vm281 = vcmask 392192
      %v283 = vsel %vm281, %v147, 0
      %v286 = vsel %vm281, %v148, 0
      %v289 = vsel %vm281, %v149, 0
      %v292 = vsel %vm281, %v150, 0
      %v295 = vsel %vm281, %v151, 0
      %v298 = vsel %vm281, %v152, 0
      %v301 = vsel %vm281, %v153, 0
      %v304 = vsel %vm281, %v154, 0
      %v307 = vsel %vm281, %v155, 0
      %v310 = vsel %vm281, %v156, 0
      %v313 = vsel %vm281, %v157, 0
      %v316 = vsel %vm281, %v158, 0
      %v319 = vsel %vm281, %v159, 0
      %v322 = vsel %vm281, %v160, 0
      %v325 = vsel %vm281, %v161, 0
      %v328 = vsel %vm281, %v162, 0
      %v331 = vsel %vm281, %v163, 0
      %v334 = vsel %vm281, %v164, 0
      %v337 = vsel %vm281, %v165, 0
      %v340 = vsel %vm281, %v166, 0
      %v343 = vsel %vm281, %v167, 0
      %v346 = vsel %vm281, %v168, 0
      %v349 = vsel %vm281, %v169, 0
      %v352 = vsel %vm281, %v170, 0
      %v355 = vsel %vm281, %v171, 0
      %v358 = vsel %vm281, %v172, 0
      %v361 = vsel %vm281, %v173, 0
      %v364 = vsel %vm281, %v174, 0
      %v367 = vsel %vm281, %v175, 0
      %v370 = vsel %vm281, %v176, 0
      %v373 = vsel %vm281, %v177, 0
      %v376 = vsel %vm281, %v178, 0
      %v379 = vsel %vm281, %v179, 0
      %v382 = vsel %vm281, %v180, 0
      %v385 = vsel %vm281, %v181, 0
      %v388 = vsel %vm281, %v182, 0
      %v391 = vsel %vm281, %v183, 0
      %v394 = vsel %vm281, %v184, 0
      %v397 = vsel %vm281, %v185, 0
      %v400 = vsel %vm281, %v186, 0
      %v403 = vsel %vm281, %v187, 0
      %v406 = vsel %vm281, %v188, 0
      %v409 = vsel %vm281, %v189, 0
      %v412 = vsel %vm281, %v190, 0
      %v415 = vsel %vm281, %v191, 0
      %v418 = vsel %vm281, %v192, 0
      %v421 = vsel %vm281, %v193, 0
      %v424 = vsel %vm281, %v194, 0
      %v427 = vsel %vm281, %v195, 0
      %v430 = vsel %vm281, %v196, 0
      %v433 = vsel %vm281, %v197, 0
      %v436 = vsel %vm281, %v198, 0
      %v439 = vsel %vm281, %v199, 0
      %v442 = vsel %vm281, %v200, 0
      %v445 = vsel %vm281, %v201, 0
      %v448 = vsel %vm281, %v202, 0
      %v451 = vsel %vm281, %v203, 0
      %v454 = vsel %vm281, %v204, 0
      %v457 = vsel %vm281, %v205, 0
      %v460 = vsel %vm281, %v206, 0
      %v463 = vsel %vm281, %v207, 0
      %v466 = vsel %vm281, %v208, 0
      %v469 = vsel %vm281, %v209, 0
      %v472 = vsel %vm281, %v210, 0
      %v475 = vsel %vm281, %v211, 0
      %v478 = vsel %vm281, %v212, 0
      %v481 = vsel %vm281, %v213, 0
      %v484 = vsel %vm281, %v214, 0
      %v487 = vsel %vm281, %v215, 0
      %v490 = vsel %vm281, %v216, 0
      %v493 = vsel %vm281, %v217, 0
      %v496 = vsel %vm281, %v218, 0
      %v499 = vsel %vm281, %v219, 0
      %v502 = vsel %vm281, %v220, 0
      %v505 = vsel %vm281, %v221, 0
      %v508 = vsel %vm281, %v222, 0
      %v511 = vsel %vm281, %v223, 0
      %v514 = vsel %vm281, %v224, 0
      %v517 = vsel %vm281, %v225, 0
      %v520 = vsel %vm281, %v226, 0
      %v523 = vsel %vm281, %v227, 0
      %v526 = vsel %vm281, %v228, 0
      %v529 = vsel %vm281, %v229, 0
      %v532 = vsel %vm281, %v230, 0
      %v535 = vsel %vm281, %v231, 0
      %v538 = vsel %vm281, %v232, 0
      %v541 = vsel %vm281, %v233, 0
      %v544 = vsel %vm281, %v234, 0
      %v547 = vsel %vm281, %v235, 0
      %v550 = vsel %vm281, %v236, 0
      %v553 = vsel %vm281, %v237, 0
      %v556 = vsel %vm281, %v238, 0
      %v559 = vsel %vm281, %v239, 0
      %v562 = vsel %vm281, %v240, 0
      %v565 = vsel %vm281, %v241, 0
      %v568 = vsel %vm281, %v242, 0
      %v571 = vsel %vm281, %v243, 0
      %v574 = vsel %vm281, %v244, 0
      %v577 = vsel %vm281, %v245, 0
      %v580 = vsel %vm281, %v246, 0
      %v583 = vsel %vm281, %v247, 0
      %v586 = vsel %vm281, %v248, 0
      %v589 = vsel %vm281, %v249, 0
      %v592 = vsel %vm281, %v250, 0
      %v595 = vsel %vm281, %v251, 0
      %v598 = vsel %vm281, %v252, 0
      %v601 = vsel %vm281, %v253, 0
      %v604 = vsel %vm281, %v254, 0
      %v607 = vsel %vm281, %v255, 0
      %v610 = vsel %vm281, %v256, 0
      %v613 = vsel %vm281, %v257, 0
      %v616 = vsel %vm281, %v258, 0
      %v619 = vsel %vm281, %v259, 0
      %v622 = vsel %vm281, %v260, 0
      %v625 = vsel %vm281, %v261, 0
      %v628 = vsel %vm281, %v262, 0
      %v631 = vsel %vm281, %v263, 0
      %v634 = vsel %vm281, %v264, 0
      %v637 = vsel %vm281, %v265, 0
      %v640 = vsel %vm281, %v266, 0
      %v643 = vsel %vm281, %v267, 0
      %v646 = vsel %vm281, %v268, 0
      %v649 = vsel %vm281, %v269, 0
      %v652 = vsel %vm281, %v270, 0
      %v655 = vsel %vm281, %v271, 0
      %v658 = vsel %vm281, %v272, 0
      %v661 = vsel %vm281, %v273, 0
      %v664 = vsel %vm281, %v274, 0
      %666 = vmatprep.subr.mxu0 0.0
      %667 = vmatpush1.msra.mxu0 %v275
      %668 = vmatprep.subr.mxu0 0.0
      %669 = vmatpush1.msra.mxu0 %v276
      %670 = vmatprep.subr.mxu0 0.0
      %671 = vmatpush1.msra.mxu0 %v277
      %672 = vmatprep.subr.mxu0 0.0
      %673 = vmatpush1.msra.mxu0 %v278
      %674 = vmatprep.subr.mxu0 0.0
      %675 = vmatpush1.msra.mxu0 %v279
      %676 = vmatprep.subr.mxu0 0.0
      %677 = vmatpush1.msra.mxu0 %v280
      %678 = vmatprep.subr.mxu0 0.0
      %679 = vmatpush1.msra.mxu0 0.0
      %680 = vmatprep.subr.mxu0 0.0
      %681 = vmatpush1.msra.mxu0 0.0
      %682 = vmatprep.subr.mxu0 0.0
      %683 = vmatpush1.msra.mxu0 0.0
      %684 = vmatprep.subr.mxu0 0.0
      %685 = vmatpush1.msra.mxu0 0.0
      %686 = vmatprep.subr.mxu0 0.0
      %687 = vmatpush1.msra.mxu0 0.0
      %688 = vmatprep.subr.mxu0 0.0
      %689 = vmatpush1.msra.mxu0 0.0
      %690 = vmatprep.subr.mxu0 0.0
      %691 = vmatpush1.msra.mxu0 0.0
      %692 = vmatprep.subr.mxu0 0.0
      %693 = vmatpush1.msra.mxu0 0.0
      %694 = vmatprep.subr.mxu0 0.0
      %695 = vmatpush1.msra.mxu0 0.0
      %696 = vmatprep.subr.mxu0 0.0
      %697 = vmatpush1.msra.mxu0 0.0
      %698 = vmatprep.subr.mxu0 0.0
      %699 = vmatpush1.msra.mxu0 0.0
      %700 = vmatprep.subr.mxu0 0.0
      %701 = vmatpush1.msra.mxu0 0.0
      %702 = vmatprep.subr.mxu0 0.0
      %703 = vmatpush1.msra.mxu0 0.0
      %704 = vmatprep.subr.mxu0 0.0
      %705 = vmatpush1.msra.mxu0 0.0
      %706 = vmatprep.subr.mxu0 0.0
      %707 = vmatpush1.msra.mxu0 0.0
      %708 = vmatprep.subr.mxu0 0.0
      %709 = vmatpush1.msra.mxu0 0.0
      %710 = vmatprep.subr.mxu0 0.0
      %711 = vmatpush1.msra.mxu0 0.0
      %712 = vmatprep.subr.mxu0 0.0
      %713 = vmatpush1.msra.mxu0 0.0
      %714 = vmatprep.subr.mxu0 0.0
      %715 = vmatpush1.msra.mxu0 0.0
      %716 = vmatprep.subr.mxu0 0.0
      %717 = vmatpush1.msra.mxu0 0.0
      %718 = vmatprep.subr.mxu0 0.0
      %719 = vmatpush1.msra.mxu0 0.0
      %720 = vmatprep.subr.mxu0 0.0
      %721 = vmatpush1.msra.mxu0 0.0
      %722 = vmatprep.subr.mxu0 0.0
      %723 = vmatpush1.msra.mxu0 0.0
      %724 = vmatprep.subr.mxu0 0.0
      %725 = vmatpush1.msra.mxu0 0.0
      %726 = vmatprep.subr.mxu0 0.0
      %727 = vmatpush1.msra.mxu0 0.0
      %728 = vmatprep.subr.mxu0 0.0
      %729 = vmatpush1.msra.mxu0 0.0
      %730 = vmatprep.mubr.f32.mxu0 0.0
      %731 = vmatmul.mubr.f32.gmra.mrb[0].mxu0 %v283
      %v732 = vpop.f32.mrb[0].mxu0
      %v733 = vadd.f32 0.0, %v732
      %v734 = vpop.f32.mrb[0].mxu0
      %735 = vmatprep.mubr.f32.mxu0 0.0
      %736 = vmatmul.mubr.f32.gmra.mrb[0].mxu0 %v286
      %v737 = vpop.f32.mrb[0].mxu0
      %v738 = vadd.f32 0.0, %v737
      %v739 = vpop.f32.mrb[0].mxu0
      %740 = vmatprep.mubr.f32.mxu0 0.0
      %741 = vmatmul.mubr.f32.gmra.mrb[0].mxu0 %v289
      %v742 = vpop.f32.mrb[0].mxu0
      %v743 = vadd.f32 0.0, %v742
      %v744 = vpop.f32.mrb[0].mxu0
      %745 = vmatprep.mubr.f32.mxu0 0.0
      %746 = vmatmul.mubr.f32.gmra.mrb[0].mxu0 %v292
      %v747 = vpop.f32.mrb[0].mxu0
      %v748 = vadd.f32 0.0, %v747
      %v749 = vpop.f32.mrb[0].mxu0
      %750 = vmatprep.mubr.f32.mxu0 0.0
      %751 = vmatmul.mubr.f32.gmra.mrb[0].mxu0 %v295
      %v752 = vpop.f32.mrb[0].mxu0
      %v753 = vadd.f32 0.0, %v752
      %v754 = vpop.f32.mrb[0].mxu0
      %755 = vmatprep.mubr.f32.mxu0 0.0
      %756 = vmatmul.mubr.f32.gmra.mrb[0].mxu0 %v298
      %v757 = vpop.f32.mrb[0].mxu0
      %v758 = vadd.f32 0.0, %v757
      %v759 = vpop.f32.mrb[0].mxu0
      %760 = vmatprep.mubr.f32.mxu0 0.0
      %761 = vmatmul.mubr.f32.gmra.mrb[0].mxu0 %v301
      %v762 = vpop.f32.mrb[0].mxu0
      %v763 = vadd.f32 0.0, %v762
      %v764 = vpop.f32.mrb[0].mxu0
      %765 = vmatprep.mubr.f32.mxu0 0.0
      %766 = vmatmul.mubr.f32.gmra.mrb[0].mxu0 %v304
      %v767 = vpop.f32.mrb[0].mxu0
      %v768 = vadd.f32 0.0, %v767
      %v769 = vpop.f32.mrb[0].mxu0
      %770 = vmatprep.mubr.f32.mxu0 0.0
      %771 = vmatmul.mubr.f32.gmra.mrb[0].mxu0 %v307
      %v772 = vpop.f32.mrb[0].mxu0
      %v773 = vadd.f32 0.0, %v772
      %v774 = vpop.f32.mrb[0].mxu0
      %775 = vmatprep.mubr.f32.mxu0 0.0
      %776 = vmatmul.mubr.f32.gmra.mrb[0].mxu0 %v310
      %v777 = vpop.f32.mrb[0].mxu0
      %v778 = vadd.f32 0.0, %v777
      %v779 = vpop.f32.mrb[0].mxu0
      %780 = vmatprep.mubr.f32.mxu0 0.0
      %781 = vmatmul.mubr.f32.gmra.mrb[0].mxu0 %v313
      %v782 = vpop.f32.mrb[0].mxu0
      %v783 = vadd.f32 0.0, %v782
      %v784 = vpop.f32.mrb[0].mxu0
      %785 = vmatprep.mubr.f32.mxu0 0.0
      %786 = vmatmul.mubr.f32.gmra.mrb[0].mxu0 %v316
      %v787 = vpop.f32.mrb[0].mxu0
      %v788 = vadd.f32 0.0, %v787
      %v789 = vpop.f32.mrb[0].mxu0
      %790 = vmatprep.mubr.f32.mxu0 0.0
      %791 = vmatmul.mubr.f32.gmra.mrb[0].mxu0 %v319
      %v792 = vpop.f32.mrb[0].mxu0
      %v793 = vadd.f32 0.0, %v792
      %v794 = vpop.f32.mrb[0].mxu0
      %795 = vmatprep.mubr.f32.mxu0 0.0
      %796 = vmatmul.mubr.f32.gmra.mrb[0].mxu0 %v322
      %v797 = vpop.f32.mrb[0].mxu0
      %v798 = vadd.f32 0.0, %v797
      %v799 = vpop.f32.mrb[0].mxu0
      %800 = vmatprep.mubr.f32.mxu0 0.0
      %801 = vmatmul.mubr.f32.gmra.mrb[0].mxu0 %v325
      %v802 = vpop.f32.mrb[0].mxu0
      %v803 = vadd.f32 0.0, %v802
      %v804 = vpop.f32.mrb[0].mxu0
      %805 = vmatprep.mubr.f32.mxu0 0.0
      %806 = vmatmul.mubr.f32.gmra.mrb[0].mxu0 %v328
      %v807 = vpop.f32.mrb[0].mxu0
      %v808 = vadd.f32 0.0, %v807
      %v809 = vpop.f32.mrb[0].mxu0
      %810 = vmatprep.mubr.f32.mxu0 0.0
      %811 = vmatmul.mubr.f32.gmra.mrb[0].mxu0 %v331
      %v812 = vpop.f32.mrb[0].mxu0
      %v813 = vadd.f32 0.0, %v812
      %v814 = vpop.f32.mrb[0].mxu0
      %815 = vmatprep.mubr.f32.mxu0 0.0
      %816 = vmatmul.mubr.f32.gmra.mrb[0].mxu0 %v334
      %v817 = vpop.f32.mrb[0].mxu0
      %v818 = vadd.f32 0.0, %v817
      %v819 = vpop.f32.mrb[0].mxu0
      %820 = vmatprep.mubr.f32.mxu0 0.0
      %821 = vmatmul.mubr.f32.gmra.mrb[0].mxu0 %v337
      %v822 = vpop.f32.mrb[0].mxu0
      %v823 = vadd.f32 0.0, %v822
      %v824 = vpop.f32.mrb[0].mxu0
      %825 = vmatprep.mubr.f32.mxu0 0.0
      %826 = vmatmul.mubr.f32.gmra.mrb[0].mxu0 %v340
      %v827 = vpop.f32.mrb[0].mxu0
      %v828 = vadd.f32 0.0, %v827
      %v829 = vpop.f32.mrb[0].mxu0
      %830 = vmatprep.mubr.f32.mxu0 0.0
      %831 = vmatmul.mubr.f32.gmra.mrb[0].mxu0 %v343
      %v832 = vpop.f32.mrb[0].mxu0
      %v833 = vadd.f32 0.0, %v832
      %v834 = vpop.f32.mrb[0].mxu0
      %835 = vmatprep.mubr.f32.mxu0 0.0
      %836 = vmatmul.mubr.f32.gmra.mrb[0].mxu0 %v346
      %v837 = vpop.f32.mrb[0].mxu0
      %v838 = vadd.f32 0.0, %v837
      %v839 = vpop.f32.mrb[0].mxu0
      %840 = vmatprep.mubr.f32.mxu0 0.0
      %841 = vmatmul.mubr.f32.gmra.mrb[0].mxu0 %v349
      %v842 = vpop.f32.mrb[0].mxu0
      %v843 = vadd.f32 0.0, %v842
      %v844 = vpop.f32.mrb[0].mxu0
      %845 = vmatprep.mubr.f32.mxu0 0.0
      %846 = vmatmul.mubr.f32.gmra.mrb[0].mxu0 %v352
      %v847 = vpop.f32.mrb[0].mxu0
      %v848 = vadd.f32 0.0, %v847
      %v849 = vpop.f32.mrb[0].mxu0
      %850 = vmatprep.mubr.f32.mxu0 0.0
      %851 = vmatmul.mubr.f32.gmra.mrb[0].mxu0 %v355
      %v852 = vpop.f32.mrb[0].mxu0
      %v853 = vadd.f32 0.0, %v852
      %v854 = vpop.f32.mrb[0].mxu0
      %855 = vmatprep.mubr.f32.mxu0 0.0
      %856 = vmatmul.mubr.f32.gmra.mrb[0].mxu0 %v358
      %v857 = vpop.f32.mrb[0].mxu0
      %v858 = vadd.f32 0.0, %v857
      %v859 = vpop.f32.mrb[0].mxu0
      %860 = vmatprep.mubr.f32.mxu0 0.0
      %861 = vmatmul.mubr.f32.gmra.mrb[0].mxu0 %v361
      %v862 = vpop.f32.mrb[0].mxu0
      %v863 = vadd.f32 0.0, %v862
      %v864 = vpop.f32.mrb[0].mxu0
      %865 = vmatprep.mubr.f32.mxu0 0.0
      %866 = vmatmul.mubr.f32.gmra.mrb[0].mxu0 %v364
      %v867 = vpop.f32.mrb[0].mxu0
      %v868 = vadd.f32 0.0, %v867
      %v869 = vpop.f32.mrb[0].mxu0
      %870 = vmatprep.mubr.f32.mxu0 0.0
      %871 = vmatmul.mubr.f32.gmra.mrb[0].mxu0 %v367
      %v872 = vpop.f32.mrb[0].mxu0
      %v873 = vadd.f32 0.0, %v872
      %v874 = vpop.f32.mrb[0].mxu0
      %875 = vmatprep.mubr.f32.mxu0 0.0
      %876 = vmatmul.mubr.f32.gmra.mrb[0].mxu0 %v370
      %v877 = vpop.f32.mrb[0].mxu0
      %v878 = vadd.f32 0.0, %v877
      %v879 = vpop.f32.mrb[0].mxu0
      %880 = vmatprep.mubr.f32.mxu0 0.0
      %881 = vmatmul.mubr.f32.gmra.mrb[0].mxu0 %v373
      %v882 = vpop.f32.mrb[0].mxu0
      %v883 = vadd.f32 0.0, %v882
      %v884 = vpop.f32.mrb[0].mxu0
      %885 = vmatprep.mubr.f32.mxu0 0.0
      %886 = vmatmul.mubr.f32.gmra.mrb[0].mxu0 %v376
      %v887 = vpop.f32.mrb[0].mxu0
      %v888 = vadd.f32 0.0, %v887
      %v889 = vpop.f32.mrb[0].mxu0
      %890 = vmatprep.mubr.f32.mxu0 0.0
      %891 = vmatmul.mubr.f32.gmra.mrb[0].mxu0 %v379
      %v892 = vpop.f32.mrb[0].mxu0
      %v893 = vadd.f32 0.0, %v892
      %v894 = vpop.f32.mrb[0].mxu0
      %895 = vmatprep.mubr.f32.mxu0 0.0
      %896 = vmatmul.mubr.f32.gmra.mrb[0].mxu0 %v382
      %v897 = vpop.f32.mrb[0].mxu0
      %v898 = vadd.f32 0.0, %v897
      %v899 = vpop.f32.mrb[0].mxu0
      %900 = vmatprep.mubr.f32.mxu0 0.0
      %901 = vmatmul.mubr.f32.gmra.mrb[0].mxu0 %v385
      %v902 = vpop.f32.mrb[0].mxu0
      %v903 = vadd.f32 0.0, %v902
      %v904 = vpop.f32.mrb[0].mxu0
      %905 = vmatprep.mubr.f32.mxu0 0.0
      %906 = vmatmul.mubr.f32.gmra.mrb[0].mxu0 %v388
      %v907 = vpop.f32.mrb[0].mxu0
      %v908 = vadd.f32 0.0, %v907
      %v909 = vpop.f32.mrb[0].mxu0
      %910 = vmatprep.mubr.f32.mxu0 0.0
      %911 = vmatmul.mubr.f32.gmra.mrb[0].mxu0 %v391
      %v912 = vpop.f32.mrb[0].mxu0
      %v913 = vadd.f32 0.0, %v912
      %v914 = vpop.f32.mrb[0].mxu0
      %915 = vmatprep.mubr.f32.mxu0 0.0
      %916 = vmatmul.mubr.f32.gmra.mrb[0].mxu0 %v394
      %v917 = vpop.f32.mrb[0].mxu0
      %v918 = vadd.f32 0.0, %v917
      %v919 = vpop.f32.mrb[0].mxu0
      %920 = vmatprep.mubr.f32.mxu0 0.0
      %921 = vmatmul.mubr.f32.gmra.mrb[0].mxu0 %v397
      %v922 = vpop.f32.mrb[0].mxu0
      %v923 = vadd.f32 0.0, %v922
      %v924 = vpop.f32.mrb[0].mxu0
      %925 = vmatprep.mubr.f32.mxu0 0.0
      %926 = vmatmul.mubr.f32.gmra.mrb[0].mxu0 %v400
      %v927 = vpop.f32.mrb[0].mxu0
      %v928 = vadd.f32 0.0, %v927
      %v929 = vpop.f32.mrb[0].mxu0
      %930 = vmatprep.mubr.f32.mxu0 0.0
      %931 = vmatmul.mubr.f32.gmra.mrb[0].mxu0 %v403
      %v932 = vpop.f32.mrb[0].mxu0
      %v933 = vadd.f32 0.0, %v932
      %v934 = vpop.f32.mrb[0].mxu0
      %935 = vmatprep.mubr.f32.mxu0 0.0
      %936 = vmatmul.mubr.f32.gmra.mrb[0].mxu0 %v406
      %v937 = vpop.f32.mrb[0].mxu0
      %v938 = vadd.f32 0.0, %v937
      %v939 = vpop.f32.mrb[0].mxu0
      %940 = vmatprep.mubr.f32.mxu0 0.0
      %941 = vmatmul.mubr.f32.gmra.mrb[0].mxu0 %v409
      %v942 = vpop.f32.mrb[0].mxu0
      %v943 = vadd.f32 0.0, %v942
      %v944 = vpop.f32.mrb[0].mxu0
      %945 = vmatprep.mubr.f32.mxu0 0.0
      %946 = vmatmul.mubr.f32.gmra.mrb[0].mxu0 %v412
      %v947 = vpop.f32.mrb[0].mxu0
      %v948 = vadd.f32 0.0, %v947
      %v949 = vpop.f32.mrb[0].mxu0
      %950 = vmatprep.mubr.f32.mxu0 0.0
      %951 = vmatmul.mubr.f32.gmra.mrb[0].mxu0 %v415
      %v952 = vpop.f32.mrb[0].mxu0
      %v953 = vadd.f32 0.0, %v952
      %v954 = vpop.f32.mrb[0].mxu0
      %955 = vmatprep.mubr.f32.mxu0 0.0
      %956 = vmatmul.mubr.f32.gmra.mrb[0].mxu0 %v418
      %v957 = vpop.f32.mrb[0].mxu0
      %v958 = vadd.f32 0.0, %v957
      %v959 = vpop.f32.mrb[0].mxu0
      %960 = vmatprep.mubr.f32.mxu0 0.0
      %961 = vmatmul.mubr.f32.gmra.mrb[0].mxu0 %v421
      %v962 = vpop.f32.mrb[0].mxu0
      %v963 = vadd.f32 0.0, %v962
      %v964 = vpop.f32.mrb[0].mxu0
      %965 = vmatprep.mubr.f32.mxu0 0.0
      %966 = vmatmul.mubr.f32.gmra.mrb[0].mxu0 %v424
      %v967 = vpop.f32.mrb[0].mxu0
      %v968 = vadd.f32 0.0, %v967
      %v969 = vpop.f32.mrb[0].mxu0
      %970 = vmatprep.mubr.f32.mxu0 0.0
      %971 = vmatmul.mubr.f32.gmra.mrb[0].mxu0 %v427
      %v972 = vpop.f32.mrb[0].mxu0
      %v973 = vadd.f32 0.0, %v972
      %v974 = vpop.f32.mrb[0].mxu0
      %975 = vmatprep.mubr.f32.mxu0 0.0
      %976 = vmatmul.mubr.f32.gmra.mrb[0].mxu0 %v430
      %v977 = vpop.f32.mrb[0].mxu0
      %v978 = vadd.f32 0.0, %v977
      %v979 = vpop.f32.mrb[0].mxu0
      %980 = vmatprep.mubr.f32.mxu0 0.0
      %981 = vmatmul.mubr.f32.gmra.mrb[0].mxu0 %v433
      %v982 = vpop.f32.mrb[0].mxu0
      %v983 = vadd.f32 0.0, %v982
      %v984 = vpop.f32.mrb[0].mxu0
      %985 = vmatprep.mubr.f32.mxu0 0.0
      %986 = vmatmul.mubr.f32.gmra.mrb[0].mxu0 %v436
      %v987 = vpop.f32.mrb[0].mxu0
      %v988 = vadd.f32 0.0, %v987
      %v989 = vpop.f32.mrb[0].mxu0
      %990 = vmatprep.mubr.f32.mxu0 0.0
      %991 = vmatmul.mubr.f32.gmra.mrb[0].mxu0 %v439
      %v992 = vpop.f32.mrb[0].mxu0
      %v993 = vadd.f32 0.0, %v992
      %v994 = vpop.f32.mrb[0].mxu0
      %995 = vmatprep.mubr.f32.mxu0 0.0
      %996 = vmatmul.mubr.f32.gmra.mrb[0].mxu0 %v442
      %v997 = vpop.f32.mrb[0].mxu0
      %v998 = vadd.f32 0.0, %v997
      %v999 = vpop.f32.mrb[0].mxu0
      %1000 = vmatprep.mubr.f32.mxu0 0.0
      %1001 = vmatmul.mubr.f32.gmra.mrb[0].mxu0 %v445
      %v1002 = vpop.f32.mrb[0].mxu0
      %v1003 = vadd.f32 0.0, %v1002
      %v1004 = vpop.f32.mrb[0].mxu0
      %1005 = vmatprep.mubr.f32.mxu0 0.0
      %1006 = vmatmul.mubr.f32.gmra.mrb[0].mxu0 %v448
      %v1007 = vpop.f32.mrb[0].mxu0
      %v1008 = vadd.f32 0.0, %v1007
      %v1009 = vpop.f32.mrb[0].mxu0
      %1010 = vmatprep.mubr.f32.mxu0 0.0
      %1011 = vmatmul.mubr.f32.gmra.mrb[0].mxu0 %v451
      %v1012 = vpop.f32.mrb[0].mxu0
      %v1013 = vadd.f32 0.0, %v1012
      %v1014 = vpop.f32.mrb[0].mxu0
      %1015 = vmatprep.mubr.f32.mxu0 0.0
      %1016 = vmatmul.mubr.f32.gmra.mrb[0].mxu0 %v454
      %v1017 = vpop.f32.mrb[0].mxu0
      %v1018 = vadd.f32 0.0, %v1017
      %v1019 = vpop.f32.mrb[0].mxu0
      %1020 = vmatprep.mubr.f32.mxu0 0.0
      %1021 = vmatmul.mubr.f32.gmra.mrb[0].mxu0 %v457
      %v1022 = vpop.f32.mrb[0].mxu0
      %v1023 = vadd.f32 0.0, %v1022
      %v1024 = vpop.f32.mrb[0].mxu0
      %1025 = vmatprep.mubr.f32.mxu0 0.0
      %1026 = vmatmul.mubr.f32.gmra.mrb[0].mxu0 %v460
      %v1027 = vpop.f32.mrb[0].mxu0
      %v1028 = vadd.f32 0.0, %v1027
      %v1029 = vpop.f32.mrb[0].mxu0
      %1030 = vmatprep.mubr.f32.mxu0 0.0
      %1031 = vmatmul.mubr.f32.gmra.mrb[0].mxu0 %v463
      %v1032 = vpop.f32.mrb[0].mxu0
      %v1033 = vadd.f32 0.0, %v1032
      %v1034 = vpop.f32.mrb[0].mxu0
      %1035 = vmatprep.mubr.f32.mxu0 0.0
      %1036 = vmatmul.mubr.f32.gmra.mrb[0].mxu0 %v466
      %v1037 = vpop.f32.mrb[0].mxu0
      %v1038 = vadd.f32 0.0, %v1037
      %v1039 = vpop.f32.mrb[0].mxu0
      %1040 = vmatprep.mubr.f32.mxu0 0.0
      %1041 = vmatmul.mubr.f32.gmra.mrb[0].mxu0 %v469
      %v1042 = vpop.f32.mrb[0].mxu0
      %v1043 = vadd.f32 0.0, %v1042
      %v1044 = vpop.f32.mrb[0].mxu0
      %1045 = vmatprep.mubr.f32.mxu0 0.0
      %1046 = vmatmul.mubr.f32.gmra.mrb[0].mxu0 %v472
      %v1047 = vpop.f32.mrb[0].mxu0
      %v1048 = vadd.f32 0.0, %v1047
      %v1049 = vpop.f32.mrb[0].mxu0
      %1050 = vmatprep.mubr.f32.mxu0 0.0
      %1051 = vmatmul.mubr.f32.gmra.mrb[0].mxu0 %v475
      %v1052 = vpop.f32.mrb[0].mxu0
      %v1053 = vadd.f32 0.0, %v1052
      %v1054 = vpop.f32.mrb[0].mxu0
      %1055 = vmatprep.mubr.f32.mxu0 0.0
      %1056 = vmatmul.mubr.f32.gmra.mrb[0].mxu0 %v478
      %v1057 = vpop.f32.mrb[0].mxu0
      %v1058 = vadd.f32 0.0, %v1057
      %v1059 = vpop.f32.mrb[0].mxu0
      %1060 = vmatprep.mubr.f32.mxu0 0.0
      %1061 = vmatmul.mubr.f32.gmra.mrb[0].mxu0 %v481
      %v1062 = vpop.f32.mrb[0].mxu0
      %v1063 = vadd.f32 0.0, %v1062
      %v1064 = vpop.f32.mrb[0].mxu0
      %1065 = vmatprep.mubr.f32.mxu0 0.0
      %1066 = vmatmul.mubr.f32.gmra.mrb[0].mxu0 %v484
      %v1067 = vpop.f32.mrb[0].mxu0
      %v1068 = vadd.f32 0.0, %v1067
      %v1069 = vpop.f32.mrb[0].mxu0
      %1070 = vmatprep.mubr.f32.mxu0 0.0
      %1071 = vmatmul.mubr.f32.gmra.mrb[0].mxu0 %v487
      %v1072 = vpop.f32.mrb[0].mxu0
      %v1073 = vadd.f32 0.0, %v1072
      %v1074 = vpop.f32.mrb[0].mxu0
      %1075 = vmatprep.mubr.f32.mxu0 0.0
      %1076 = vmatmul.mubr.f32.gmra.mrb[0].mxu0 %v490
      %v1077 = vpop.f32.mrb[0].mxu0
      %v1078 = vadd.f32 0.0, %v1077
      %v1079 = vpop.f32.mrb[0].mxu0
      %1080 = vmatprep.mubr.f32.mxu0 0.0
      %1081 = vmatmul.mubr.f32.gmra.mrb[0].mxu0 %v493
      %v1082 = vpop.f32.mrb[0].mxu0
      %v1083 = vadd.f32 0.0, %v1082
      %v1084 = vpop.f32.mrb[0].mxu0
      %1085 = vmatprep.mubr.f32.mxu0 0.0
      %1086 = vmatmul.mubr.f32.gmra.mrb[0].mxu0 %v496
      %v1087 = vpop.f32.mrb[0].mxu0
      %v1088 = vadd.f32 0.0, %v1087
      %v1089 = vpop.f32.mrb[0].mxu0
      %1090 = vmatprep.mubr.f32.mxu0 0.0
      %1091 = vmatmul.mubr.f32.gmra.mrb[0].mxu0 %v499
      %v1092 = vpop.f32.mrb[0].mxu0
      %v1093 = vadd.f32 0.0, %v1092
      %v1094 = vpop.f32.mrb[0].mxu0
      %1095 = vmatprep.mubr.f32.mxu0 0.0
      %1096 = vmatmul.mubr.f32.gmra.mrb[0].mxu0 %v502
      %v1097 = vpop.f32.mrb[0].mxu0
      %v1098 = vadd.f32 0.0, %v1097
      %v1099 = vpop.f32.mrb[0].mxu0
      %1100 = vmatprep.mubr.f32.mxu0 0.0
      %1101 = vmatmul.mubr.f32.gmra.mrb[0].mxu0 %v505
      %v1102 = vpop.f32.mrb[0].mxu0
      %v1103 = vadd.f32 0.0, %v1102
      %v1104 = vpop.f32.mrb[0].mxu0
      %1105 = vmatprep.mubr.f32.mxu0 0.0
      %1106 = vmatmul.mubr.f32.gmra.mrb[0].mxu0 %v508
      %v1107 = vpop.f32.mrb[0].mxu0
      %v1108 = vadd.f32 0.0, %v1107
      %v1109 = vpop.f32.mrb[0].mxu0
      %1110 = vmatprep.mubr.f32.mxu0 0.0
      %1111 = vmatmul.mubr.f32.gmra.mrb[0].mxu0 %v511
      %v1112 = vpop.f32.mrb[0].mxu0
      %v1113 = vadd.f32 0.0, %v1112
      %v1114 = vpop.f32.mrb[0].mxu0
      %1115 = vmatprep.mubr.f32.mxu0 0.0
      %1116 = vmatmul.mubr.f32.gmra.mrb[0].mxu0 %v514
      %v1117 = vpop.f32.mrb[0].mxu0
      %v1118 = vadd.f32 0.0, %v1117
      %v1119 = vpop.f32.mrb[0].mxu0
      %1120 = vmatprep.mubr.f32.mxu0 0.0
      %1121 = vmatmul.mubr.f32.gmra.mrb[0].mxu0 %v517
      %v1122 = vpop.f32.mrb[0].mxu0
      %v1123 = vadd.f32 0.0, %v1122
      %v1124 = vpop.f32.mrb[0].mxu0
      %1125 = vmatprep.mubr.f32.mxu0 0.0
      %1126 = vmatmul.mubr.f32.gmra.mrb[0].mxu0 %v520
      %v1127 = vpop.f32.mrb[0].mxu0
      %v1128 = vadd.f32 0.0, %v1127
      %v1129 = vpop.f32.mrb[0].mxu0
      %1130 = vmatprep.mubr.f32.mxu0 0.0
      %1131 = vmatmul.mubr.f32.gmra.mrb[0].mxu0 %v523
      %v1132 = vpop.f32.mrb[0].mxu0
      %v1133 = vadd.f32 0.0, %v1132
      %v1134 = vpop.f32.mrb[0].mxu0
      %1135 = vmatprep.mubr.f32.mxu0 0.0
      %1136 = vmatmul.mubr.f32.gmra.mrb[0].mxu0 %v526
      %v1137 = vpop.f32.mrb[0].mxu0
      %v1138 = vadd.f32 0.0, %v1137
      %v1139 = vpop.f32.mrb[0].mxu0
      %1140 = vmatprep.mubr.f32.mxu0 0.0
      %1141 = vmatmul.mubr.f32.gmra.mrb[0].mxu0 %v529
      %v1142 = vpop.f32.mrb[0].mxu0
      %v1143 = vadd.f32 0.0, %v1142
      %v1144 = vpop.f32.mrb[0].mxu0
      %1145 = vmatprep.mubr.f32.mxu0 0.0
      %1146 = vmatmul.mubr.f32.gmra.mrb[0].mxu0 %v532
      %v1147 = vpop.f32.mrb[0].mxu0
      %v1148 = vadd.f32 0.0, %v1147
      %v1149 = vpop.f32.mrb[0].mxu0
      %1150 = vmatprep.mubr.f32.mxu0 0.0
      %1151 = vmatmul.mubr.f32.gmra.mrb[0].mxu0 %v535
      %v1152 = vpop.f32.mrb[0].mxu0
      %v1153 = vadd.f32 0.0, %v1152
      %v1154 = vpop.f32.mrb[0].mxu0
      %1155 = vmatprep.mubr.f32.mxu0 0.0
      %1156 = vmatmul.mubr.f32.gmra.mrb[0].mxu0 %v538
      %v1157 = vpop.f32.mrb[0].mxu0
      %v1158 = vadd.f32 0.0, %v1157
      %v1159 = vpop.f32.mrb[0].mxu0
      %1160 = vmatprep.mubr.f32.mxu0 0.0
      %1161 = vmatmul.mubr.f32.gmra.mrb[0].mxu0 %v541
      %v1162 = vpop.f32.mrb[0].mxu0
      %v1163 = vadd.f32 0.0, %v1162
      %v1164 = vpop.f32.mrb[0].mxu0
      %1165 = vmatprep.mubr.f32.mxu0 0.0
      %1166 = vmatmul.mubr.f32.gmra.mrb[0].mxu0 %v544
      %v1167 = vpop.f32.mrb[0].mxu0
      %v1168 = vadd.f32 0.0, %v1167
      %v1169 = vpop.f32.mrb[0].mxu0
      %1170 = vmatprep.mubr.f32.mxu0 0.0
      %1171 = vmatmul.mubr.f32.gmra.mrb[0].mxu0 %v547
      %v1172 = vpop.f32.mrb[0].mxu0
      %v1173 = vadd.f32 0.0, %v1172
      %v1174 = vpop.f32.mrb[0].mxu0
      %1175 = vmatprep.mubr.f32.mxu0 0.0
      %1176 = vmatmul.mubr.f32.gmra.mrb[0].mxu0 %v550
      %v1177 = vpop.f32.mrb[0].mxu0
      %v1178 = vadd.f32 0.0, %v1177
      %v1179 = vpop.f32.mrb[0].mxu0
      %1180 = vmatprep.mubr.f32.mxu0 0.0
      %1181 = vmatmul.mubr.f32.gmra.mrb[0].mxu0 %v553
      %v1182 = vpop.f32.mrb[0].mxu0
      %v1183 = vadd.f32 0.0, %v1182
      %v1184 = vpop.f32.mrb[0].mxu0
      %1185 = vmatprep.mubr.f32.mxu0 0.0
      %1186 = vmatmul.mubr.f32.gmra.mrb[0].mxu0 %v556
      %v1187 = vpop.f32.mrb[0].mxu0
      %v1188 = vadd.f32 0.0, %v1187
      %v1189 = vpop.f32.mrb[0].mxu0
      %1190 = vmatprep.mubr.f32.mxu0 0.0
      %1191 = vmatmul.mubr.f32.gmra.mrb[0].mxu0 %v559
      %v1192 = vpop.f32.mrb[0].mxu0
      %v1193 = vadd.f32 0.0, %v1192
      %v1194 = vpop.f32.mrb[0].mxu0
      %1195 = vmatprep.mubr.f32.mxu0 0.0
      %1196 = vmatmul.mubr.f32.gmra.mrb[0].mxu0 %v562
      %v1197 = vpop.f32.mrb[0].mxu0
      %v1198 = vadd.f32 0.0, %v1197
      %v1199 = vpop.f32.mrb[0].mxu0
      %1200 = vmatprep.mubr.f32.mxu0 0.0
      %1201 = vmatmul.mubr.f32.gmra.mrb[0].mxu0 %v565
      %v1202 = vpop.f32.mrb[0].mxu0
      %v1203 = vadd.f32 0.0, %v1202
      %v1204 = vpop.f32.mrb[0].mxu0
      %1205 = vmatprep.mubr.f32.mxu0 0.0
      %1206 = vmatmul.mubr.f32.gmra.mrb[0].mxu0 %v568
      %v1207 = vpop.f32.mrb[0].mxu0
      %v1208 = vadd.f32 0.0, %v1207
      %v1209 = vpop.f32.mrb[0].mxu0
      %1210 = vmatprep.mubr.f32.mxu0 0.0
      %1211 = vmatmul.mubr.f32.gmra.mrb[0].mxu0 %v571
      %v1212 = vpop.f32.mrb[0].mxu0
      %v1213 = vadd.f32 0.0, %v1212
      %v1214 = vpop.f32.mrb[0].mxu0
      %1215 = vmatprep.mubr.f32.mxu0 0.0
      %1216 = vmatmul.mubr.f32.gmra.mrb[0].mxu0 %v574
      %v1217 = vpop.f32.mrb[0].mxu0
      %v1218 = vadd.f32 0.0, %v1217
      %v1219 = vpop.f32.mrb[0].mxu0
      %1220 = vmatprep.mubr.f32.mxu0 0.0
      %1221 = vmatmul.mubr.f32.gmra.mrb[0].mxu0 %v577
      %v1222 = vpop.f32.mrb[0].mxu0
      %v1223 = vadd.f32 0.0, %v1222
      %v1224 = vpop.f32.mrb[0].mxu0
      %1225 = vmatprep.mubr.f32.mxu0 0.0
      %1226 = vmatmul.mubr.f32.gmra.mrb[0].mxu0 %v580
      %v1227 = vpop.f32.mrb[0].mxu0
      %v1228 = vadd.f32 0.0, %v1227
      %v1229 = vpop.f32.mrb[0].mxu0
      %1230 = vmatprep.mubr.f32.mxu0 0.0
      %1231 = vmatmul.mubr.f32.gmra.mrb[0].mxu0 %v583
      %v1232 = vpop.f32.mrb[0].mxu0
      %v1233 = vadd.f32 0.0, %v1232
      %v1234 = vpop.f32.mrb[0].mxu0
      %1235 = vmatprep.mubr.f32.mxu0 0.0
      %1236 = vmatmul.mubr.f32.gmra.mrb[0].mxu0 %v586
      %v1237 = vpop.f32.mrb[0].mxu0
      %v1238 = vadd.f32 0.0, %v1237
      %v1239 = vpop.f32.mrb[0].mxu0
      %1240 = vmatprep.mubr.f32.mxu0 0.0
      %1241 = vmatmul.mubr.f32.gmra.mrb[0].mxu0 %v589
      %v1242 = vpop.f32.mrb[0].mxu0
      %v1243 = vadd.f32 0.0, %v1242
      %v1244 = vpop.f32.mrb[0].mxu0
      %1245 = vmatprep.mubr.f32.mxu0 0.0
      %1246 = vmatmul.mubr.f32.gmra.mrb[0].mxu0 %v592
      %v1247 = vpop.f32.mrb[0].mxu0
      %v1248 = vadd.f32 0.0, %v1247
      %v1249 = vpop.f32.mrb[0].mxu0
      %1250 = vmatprep.mubr.f32.mxu0 0.0
      %1251 = vmatmul.mubr.f32.gmra.mrb[0].mxu0 %v595
      %v1252 = vpop.f32.mrb[0].mxu0
      %v1253 = vadd.f32 0.0, %v1252
      %v1254 = vpop.f32.mrb[0].mxu0
      %1255 = vmatprep.mubr.f32.mxu0 0.0
      %1256 = vmatmul.mubr.f32.gmra.mrb[0].mxu0 %v598
      %v1257 = vpop.f32.mrb[0].mxu0
      %v1258 = vadd.f32 0.0, %v1257
      %v1259 = vpop.f32.mrb[0].mxu0
      %1260 = vmatprep.mubr.f32.mxu0 0.0
      %1261 = vmatmul.mubr.f32.gmra.mrb[0].mxu0 %v601
      %v1262 = vpop.f32.mrb[0].mxu0
      %v1263 = vadd.f32 0.0, %v1262
      %v1264 = vpop.f32.mrb[0].mxu0
      %1265 = vmatprep.mubr.f32.mxu0 0.0
      %1266 = vmatmul.mubr.f32.gmra.mrb[0].mxu0 %v604
      %v1267 = vpop.f32.mrb[0].mxu0
      %v1268 = vadd.f32 0.0, %v1267
      %v1269 = vpop.f32.mrb[0].mxu0
      %1270 = vmatprep.mubr.f32.mxu0 0.0
      %1271 = vmatmul.mubr.f32.gmra.mrb[0].mxu0 %v607
      %v1272 = vpop.f32.mrb[0].mxu0
      %v1273 = vadd.f32 0.0, %v1272
      %v1274 = vpop.f32.mrb[0].mxu0
      %1275 = vmatprep.mubr.f32.mxu0 0.0
      %1276 = vmatmul.mubr.f32.gmra.mrb[0].mxu0 %v610
      %v1277 = vpop.f32.mrb[0].mxu0
      %v1278 = vadd.f32 0.0, %v1277
      %v1279 = vpop.f32.mrb[0].mxu0
      %1280 = vmatprep.mubr.f32.mxu0 0.0
      %1281 = vmatmul.mubr.f32.gmra.mrb[0].mxu0 %v613
      %v1282 = vpop.f32.mrb[0].mxu0
      %v1283 = vadd.f32 0.0, %v1282
      %v1284 = vpop.f32.mrb[0].mxu0
      %1285 = vmatprep.mubr.f32.mxu0 0.0
      %1286 = vmatmul.mubr.f32.gmra.mrb[0].mxu0 %v616
      %v1287 = vpop.f32.mrb[0].mxu0
      %v1288 = vadd.f32 0.0, %v1287
      %v1289 = vpop.f32.mrb[0].mxu0
      %1290 = vmatprep.mubr.f32.mxu0 0.0
      %1291 = vmatmul.mubr.f32.gmra.mrb[0].mxu0 %v619
      %v1292 = vpop.f32.mrb[0].mxu0
      %v1293 = vadd.f32 0.0, %v1292
      %v1294 = vpop.f32.mrb[0].mxu0
      %1295 = vmatprep.mubr.f32.mxu0 0.0
      %1296 = vmatmul.mubr.f32.gmra.mrb[0].mxu0 %v622
      %v1297 = vpop.f32.mrb[0].mxu0
      %v1298 = vadd.f32 0.0, %v1297
      %v1299 = vpop.f32.mrb[0].mxu0
      %1300 = vmatprep.mubr.f32.mxu0 0.0
      %1301 = vmatmul.mubr.f32.gmra.mrb[0].mxu0 %v625
      %v1302 = vpop.f32.mrb[0].mxu0
      %v1303 = vadd.f32 0.0, %v1302
      %v1304 = vpop.f32.mrb[0].mxu0
      %1305 = vmatprep.mubr.f32.mxu0 0.0
      %1306 = vmatmul.mubr.f32.gmra.mrb[0].mxu0 %v628
      %v1307 = vpop.f32.mrb[0].mxu0
      %v1308 = vadd.f32 0.0, %v1307
      %v1309 = vpop.f32.mrb[0].mxu0
      %1310 = vmatprep.mubr.f32.mxu0 0.0
      %1311 = vmatmul.mubr.f32.gmra.mrb[0].mxu0 %v631
      %v1312 = vpop.f32.mrb[0].mxu0
      %v1313 = vadd.f32 0.0, %v1312
      %v1314 = vpop.f32.mrb[0].mxu0
      %1315 = vmatprep.mubr.f32.mxu0 0.0
      %1316 = vmatmul.mubr.f32.gmra.mrb[0].mxu0 %v634
      %v1317 = vpop.f32.mrb[0].mxu0
      %v1318 = vadd.f32 0.0, %v1317
      %v1319 = vpop.f32.mrb[0].mxu0
      %1320 = vmatprep.mubr.f32.mxu0 0.0
      %1321 = vmatmul.mubr.f32.gmra.mrb[0].mxu0 %v637
      %v1322 = vpop.f32.mrb[0].mxu0
      %v1323 = vadd.f32 0.0, %v1322
      %v1324 = vpop.f32.mrb[0].mxu0
      %1325 = vmatprep.mubr.f32.mxu0 0.0
      %1326 = vmatmul.mubr.f32.gmra.mrb[0].mxu0 %v640
      %v1327 = vpop.f32.mrb[0].mxu0
      %v1328 = vadd.f32 0.0, %v1327
      %v1329 = vpop.f32.mrb[0].mxu0
      %1330 = vmatprep.mubr.f32.mxu0 0.0
      %1331 = vmatmul.mubr.f32.gmra.mrb[0].mxu0 %v643
      %v1332 = vpop.f32.mrb[0].mxu0
      %v1333 = vadd.f32 0.0, %v1332
      %v1334 = vpop.f32.mrb[0].mxu0
      %1335 = vmatprep.mubr.f32.mxu0 0.0
      %1336 = vmatmul.mubr.f32.gmra.mrb[0].mxu0 %v646
      %v1337 = vpop.f32.mrb[0].mxu0
      %v1338 = vadd.f32 0.0, %v1337
      %v1339 = vpop.f32.mrb[0].mxu0
      %1340 = vmatprep.mubr.f32.mxu0 0.0
      %1341 = vmatmul.mubr.f32.gmra.mrb[0].mxu0 %v649
      %v1342 = vpop.f32.mrb[0].mxu0
      %v1343 = vadd.f32 0.0, %v1342
      %v1344 = vpop.f32.mrb[0].mxu0
      %1345 = vmatprep.mubr.f32.mxu0 0.0
      %1346 = vmatmul.mubr.f32.gmra.mrb[0].mxu0 %v652
      %v1347 = vpop.f32.mrb[0].mxu0
      %v1348 = vadd.f32 0.0, %v1347
      %v1349 = vpop.f32.mrb[0].mxu0
      %1350 = vmatprep.mubr.f32.mxu0 0.0
      %1351 = vmatmul.mubr.f32.gmra.mrb[0].mxu0 %v655
      %v1352 = vpop.f32.mrb[0].mxu0
      %v1353 = vadd.f32 0.0, %v1352
      %v1354 = vpop.f32.mrb[0].mxu0
      %1355 = vmatprep.mubr.f32.mxu0 0.0
      %1356 = vmatmul.mubr.f32.gmra.mrb[0].mxu0 %v658
      %v1357 = vpop.f32.mrb[0].mxu0
      %v1358 = vadd.f32 0.0, %v1357
      %v1359 = vpop.f32.mrb[0].mxu0
      %1360 = vmatprep.mubr.f32.mxu0 0.0
      %1361 = vmatmul.mubr.f32.gmra.mrb[0].mxu0 %v661
      %v1362 = vpop.f32.mrb[0].mxu0
      %v1363 = vadd.f32 0.0, %v1362
      %v1364 = vpop.f32.mrb[0].mxu0
      %1365 = vmatprep.mubr.f32.mxu0 0.0
      %1366 = vmatmul.mubr.f32.gmra.mrb[0].mxu0 %v664
      %v1367 = vpop.f32.mrb[0].mxu0
      %v1368 = vadd.f32 0.0, %v1367
      %v1369 = vpop.f32.mrb[0].mxu0
      %1370 = vdwg.mxu0
      %vm1371 = vcmp.ge.f32.partialorder %v733, 0.0
      %vm1372 = vcmp.ge.f32.partialorder %v738, 0.0
      %vm1373 = vcmp.ge.f32.partialorder %v743, 0.0
      %vm1374 = vcmp.ge.f32.partialorder %v748, 0.0
      %vm1375 = vcmp.ge.f32.partialorder %v753, 0.0
      %vm1376 = vcmp.ge.f32.partialorder %v758, 0.0
      %vm1377 = vcmp.ge.f32.partialorder %v763, 0.0
      %vm1378 = vcmp.ge.f32.partialorder %v768, 0.0
      %vm1379 = vcmp.ge.f32.partialorder %v773, 0.0
      %vm1380 = vcmp.ge.f32.partialorder %v778, 0.0
      %vm1381 = vcmp.ge.f32.partialorder %v783, 0.0
      %vm1382 = vcmp.ge.f32.partialorder %v788, 0.0
      %vm1383 = vcmp.ge.f32.partialorder %v793, 0.0
      %vm1384 = vcmp.ge.f32.partialorder %v798, 0.0
      %vm1385 = vcmp.ge.f32.partialorder %v803, 0.0
      %vm1386 = vcmp.ge.f32.partialorder %v808, 0.0
      %vm1387 = vcmp.ge.f32.partialorder %v813, 0.0
      %vm1388 = vcmp.ge.f32.partialorder %v818, 0.0
      %vm1389 = vcmp.ge.f32.partialorder %v823, 0.0
      %vm1390 = vcmp.ge.f32.partialorder %v828, 0.0
      %vm1391 = vcmp.ge.f32.partialorder %v833, 0.0
      %vm1392 = vcmp.ge.f32.partialorder %v838, 0.0
      %vm1393 = vcmp.ge.f32.partialorder %v843, 0.0
      %vm1394 = vcmp.ge.f32.partialorder %v848, 0.0
      %vm1395 = vcmp.ge.f32.partialorder %v853, 0.0
      %vm1396 = vcmp.ge.f32.partialorder %v858, 0.0
      %vm1397 = vcmp.ge.f32.partialorder %v863, 0.0
      %vm1398 = vcmp.ge.f32.partialorder %v868, 0.0
      %vm1399 = vcmp.ge.f32.partialorder %v873, 0.0
      %vm1400 = vcmp.ge.f32.partialorder %v878, 0.0
      %vm1401 = vcmp.ge.f32.partialorder %v883, 0.0
      %vm1402 = vcmp.ge.f32.partialorder %v888, 0.0
      %vm1403 = vcmp.ge.f32.partialorder %v893, 0.0
      %vm1404 = vcmp.ge.f32.partialorder %v898, 0.0
      %vm1405 = vcmp.ge.f32.partialorder %v903, 0.0
      %vm1406 = vcmp.ge.f32.partialorder %v908, 0.0
      %vm1407 = vcmp.ge.f32.partialorder %v913, 0.0
      %vm1408 = vcmp.ge.f32.partialorder %v918, 0.0
      %vm1409 = vcmp.ge.f32.partialorder %v923, 0.0
      %vm1410 = vcmp.ge.f32.partialorder %v928, 0.0
      %vm1411 = vcmp.ge.f32.partialorder %v933, 0.0
      %vm1412 = vcmp.ge.f32.partialorder %v938, 0.0
      %vm1413 = vcmp.ge.f32.partialorder %v943, 0.0
      %vm1414 = vcmp.ge.f32.partialorder %v948, 0.0
      %vm1415 = vcmp.ge.f32.partialorder %v953, 0.0
      %vm1416 = vcmp.ge.f32.partialorder %v958, 0.0
      %vm1417 = vcmp.ge.f32.partialorder %v963, 0.0
      %vm1418 = vcmp.ge.f32.partialorder %v968, 0.0
      %vm1419 = vcmp.ge.f32.partialorder %v973, 0.0
      %vm1420 = vcmp.ge.f32.partialorder %v978, 0.0
      %vm1421 = vcmp.ge.f32.partialorder %v983, 0.0
      %vm1422 = vcmp.ge.f32.partialorder %v988, 0.0
      %vm1423 = vcmp.ge.f32.partialorder %v993, 0.0
      %vm1424 = vcmp.ge.f32.partialorder %v998, 0.0
      %vm1425 = vcmp.ge.f32.partialorder %v1003, 0.0
      %vm1426 = vcmp.ge.f32.partialorder %v1008, 0.0
      %vm1427 = vcmp.ge.f32.partialorder %v1013, 0.0
      %vm1428 = vcmp.ge.f32.partialorder %v1018, 0.0
      %vm1429 = vcmp.ge.f32.partialorder %v1023, 0.0
      %vm1430 = vcmp.ge.f32.partialorder %v1028, 0.0
      %vm1431 = vcmp.ge.f32.partialorder %v1033, 0.0
      %vm1432 = vcmp.ge.f32.partialorder %v1038, 0.0
      %vm1433 = vcmp.ge.f32.partialorder %v1043, 0.0
      %vm1434 = vcmp.ge.f32.partialorder %v1048, 0.0
      %vm1435 = vcmp.ge.f32.partialorder %v1053, 0.0
      %vm1436 = vcmp.ge.f32.partialorder %v1058, 0.0
      %vm1437 = vcmp.ge.f32.partialorder %v1063, 0.0
      %vm1438 = vcmp.ge.f32.partialorder %v1068, 0.0
      %vm1439 = vcmp.ge.f32.partialorder %v1073, 0.0
      %vm1440 = vcmp.ge.f32.partialorder %v1078, 0.0
      %vm1441 = vcmp.ge.f32.partialorder %v1083, 0.0
      %vm1442 = vcmp.ge.f32.partialorder %v1088, 0.0
      %vm1443 = vcmp.ge.f32.partialorder %v1093, 0.0
      %vm1444 = vcmp.ge.f32.partialorder %v1098, 0.0
      %vm1445 = vcmp.ge.f32.partialorder %v1103, 0.0
      %vm1446 = vcmp.ge.f32.partialorder %v1108, 0.0
      %vm1447 = vcmp.ge.f32.partialorder %v1113, 0.0
      %vm1448 = vcmp.ge.f32.partialorder %v1118, 0.0
      %vm1449 = vcmp.ge.f32.partialorder %v1123, 0.0
      %vm1450 = vcmp.ge.f32.partialorder %v1128, 0.0
      %vm1451 = vcmp.ge.f32.partialorder %v1133, 0.0
      %vm1452 = vcmp.ge.f32.partialorder %v1138, 0.0
      %vm1453 = vcmp.ge.f32.partialorder %v1143, 0.0
      %vm1454 = vcmp.ge.f32.partialorder %v1148, 0.0
      %vm1455 = vcmp.ge.f32.partialorder %v1153, 0.0
      %vm1456 = vcmp.ge.f32.partialorder %v1158, 0.0
      %vm1457 = vcmp.ge.f32.partialorder %v1163, 0.0
      %vm1458 = vcmp.ge.f32.partialorder %v1168, 0.0
      %vm1459 = vcmp.ge.f32.partialorder %v1173, 0.0
      %vm1460 = vcmp.ge.f32.partialorder %v1178, 0.0
      %vm1461 = vcmp.ge.f32.partialorder %v1183, 0.0
      %vm1462 = vcmp.ge.f32.partialorder %v1188, 0.0
      %vm1463 = vcmp.ge.f32.partialorder %v1193, 0.0
      %vm1464 = vcmp.ge.f32.partialorder %v1198, 0.0
      %vm1465 = vcmp.ge.f32.partialorder %v1203, 0.0
      %vm1466 = vcmp.ge.f32.partialorder %v1208, 0.0
      %vm1467 = vcmp.ge.f32.partialorder %v1213, 0.0
      %vm1468 = vcmp.ge.f32.partialorder %v1218, 0.0
      %vm1469 = vcmp.ge.f32.partialorder %v1223, 0.0
      %vm1470 = vcmp.ge.f32.partialorder %v1228, 0.0
      %vm1471 = vcmp.ge.f32.partialorder %v1233, 0.0
      %vm1472 = vcmp.ge.f32.partialorder %v1238, 0.0
      %vm1473 = vcmp.ge.f32.partialorder %v1243, 0.0
      %vm1474 = vcmp.ge.f32.partialorder %v1248, 0.0
      %vm1475 = vcmp.ge.f32.partialorder %v1253, 0.0
      %vm1476 = vcmp.ge.f32.partialorder %v1258, 0.0
      %vm1477 = vcmp.ge.f32.partialorder %v1263, 0.0
      %vm1478 = vcmp.ge.f32.partialorder %v1268, 0.0
      %vm1479 = vcmp.ge.f32.partialorder %v1273, 0.0
      %vm1480 = vcmp.ge.f32.partialorder %v1278, 0.0
      %vm1481 = vcmp.ge.f32.partialorder %v1283, 0.0
      %vm1482 = vcmp.ge.f32.partialorder %v1288, 0.0
      %vm1483 = vcmp.ge.f32.partialorder %v1293, 0.0
      %vm1484 = vcmp.ge.f32.partialorder %v1298, 0.0
      %vm1485 = vcmp.ge.f32.partialorder %v1303, 0.0
      %vm1486 = vcmp.ge.f32.partialorder %v1308, 0.0
      %vm1487 = vcmp.ge.f32.partialorder %v1313, 0.0
      %vm1488 = vcmp.ge.f32.partialorder %v1318, 0.0
      %vm1489 = vcmp.ge.f32.partialorder %v1323, 0.0
      %vm1490 = vcmp.ge.f32.partialorder %v1328, 0.0
      %vm1491 = vcmp.ge.f32.partialorder %v1333, 0.0
      %vm1492 = vcmp.ge.f32.partialorder %v1338, 0.0
      %vm1493 = vcmp.ge.f32.partialorder %v1343, 0.0
      %vm1494 = vcmp.ge.f32.partialorder %v1348, 0.0
      %vm1495 = vcmp.ge.f32.partialorder %v1353, 0.0
      %vm1496 = vcmp.ge.f32.partialorder %v1358, 0.0
      %vm1497 = vcmp.ge.f32.partialorder %v1363, 0.0
      %vm1498 = vcmp.ge.f32.partialorder %v1368, 0.0
      %v1499 = vmul.f32 %v733, 0.2
      %v1500 = vmul.f32 %v738, 0.2
      %v1501 = vmul.f32 %v743, 0.2
      %v1502 = vmul.f32 %v748, 0.2
      %v1503 = vmul.f32 %v753, 0.2
      %v1504 = vmul.f32 %v758, 0.2
      %v1505 = vmul.f32 %v763, 0.2
      %v1506 = vmul.f32 %v768, 0.2
      %v1507 = vmul.f32 %v773, 0.2
      %v1508 = vmul.f32 %v778, 0.2
      %v1509 = vmul.f32 %v783, 0.2
      %v1510 = vmul.f32 %v788, 0.2
      %v1511 = vmul.f32 %v793, 0.2
      %v1512 = vmul.f32 %v798, 0.2
      %v1513 = vmul.f32 %v803, 0.2
      %v1514 = vmul.f32 %v808, 0.2
      %v1515 = vmul.f32 %v813, 0.2
      %v1516 = vmul.f32 %v818, 0.2
      %v1517 = vmul.f32 %v823, 0.2
      %v1518 = vmul.f32 %v828, 0.2
      %v1519 = vmul.f32 %v833, 0.2
      %v1520 = vmul.f32 %v838, 0.2
      %v1521 = vmul.f32 %v843, 0.2
      %v1522 = vmul.f32 %v848, 0.2
      %v1523 = vmul.f32 %v853, 0.2
      %v1524 = vmul.f32 %v858, 0.2
      %v1525 = vmul.f32 %v863, 0.2
      %v1526 = vmul.f32 %v868, 0.2
      %v1527 = vmul.f32 %v873, 0.2
      %v1528 = vmul.f32 %v878, 0.2
      %v1529 = vmul.f32 %v883, 0.2
      %v1530 = vmul.f32 %v888, 0.2
      %v1531 = vmul.f32 %v893, 0.2
      %v1532 = vmul.f32 %v898, 0.2
      %v1533 = vmul.f32 %v903, 0.2
      %v1534 = vmul.f32 %v908, 0.2
      %v1535 = vmul.f32 %v913, 0.2
      %v1536 = vmul.f32 %v918, 0.2
      %v1537 = vmul.f32 %v923, 0.2
      %v1538 = vmul.f32 %v928, 0.2
      %v1539 = vmul.f32 %v933, 0.2
      %v1540 = vmul.f32 %v938, 0.2
      %v1541 = vmul.f32 %v943, 0.2
      %v1542 = vmul.f32 %v948, 0.2
      %v1543 = vmul.f32 %v953, 0.2
      %v1544 = vmul.f32 %v958, 0.2
      %v1545 = vmul.f32 %v963, 0.2
      %v1546 = vmul.f32 %v968, 0.2
      %v1547 = vmul.f32 %v973, 0.2
      %v1548 = vmul.f32 %v978, 0.2
      %v1549 = vmul.f32 %v983, 0.2
      %v1550 = vmul.f32 %v988, 0.2
      %v1551 = vmul.f32 %v993, 0.2
      %v1552 = vmul.f32 %v998, 0.2
      %v1553 = vmul.f32 %v1003, 0.2
      %v1554 = vmul.f32 %v1008, 0.2
      %v1555 = vmul.f32 %v1013, 0.2
      %v1556 = vmul.f32 %v1018, 0.2
      %v1557 = vmul.f32 %v1023, 0.2
      %v1558 = vmul.f32 %v1028, 0.2
      %v1559 = vmul.f32 %v1033, 0.2
      %v1560 = vmul.f32 %v1038, 0.2
      %v1561 = vmul.f32 %v1043, 0.2
      %v1562 = vmul.f32 %v1048, 0.2
      %v1563 = vmul.f32 %v1053, 0.2
      %v1564 = vmul.f32 %v1058, 0.2
      %v1565 = vmul.f32 %v1063, 0.2
      %v1566 = vmul.f32 %v1068, 0.2
      %v1567 = vmul.f32 %v1073, 0.2
      %v1568 = vmul.f32 %v1078, 0.2
      %v1569 = vmul.f32 %v1083, 0.2
      %v1570 = vmul.f32 %v1088, 0.2
      %v1571 = vmul.f32 %v1093, 0.2
      %v1572 = vmul.f32 %v1098, 0.2
      %v1573 = vmul.f32 %v1103, 0.2
      %v1574 = vmul.f32 %v1108, 0.2
      %v1575 = vmul.f32 %v1113, 0.2
      %v1576 = vmul.f32 %v1118, 0.2
      %v1577 = vmul.f32 %v1123, 0.2
      %v1578 = vmul.f32 %v1128, 0.2
      %v1579 = vmul.f32 %v1133, 0.2
      %v1580 = vmul.f32 %v1138, 0.2
      %v1581 = vmul.f32 %v1143, 0.2
      %v1582 = vmul.f32 %v1148, 0.2
      %v1583 = vmul.f32 %v1153, 0.2
      %v1584 = vmul.f32 %v1158, 0.2
      %v1585 = vmul.f32 %v1163, 0.2
      %v1586 = vmul.f32 %v1168, 0.2
      %v1587 = vmul.f32 %v1173, 0.2
      %v1588 = vmul.f32 %v1178, 0.2
      %v1589 = vmul.f32 %v1183, 0.2
      %v1590 = vmul.f32 %v1188, 0.2
      %v1591 = vmul.f32 %v1193, 0.2
      %v1592 = vmul.f32 %v1198, 0.2
      %v1593 = vmul.f32 %v1203, 0.2
      %v1594 = vmul.f32 %v1208, 0.2
      %v1595 = vmul.f32 %v1213, 0.2
      %v1596 = vmul.f32 %v1218, 0.2
      %v1597 = vmul.f32 %v1223, 0.2
      %v1598 = vmul.f32 %v1228, 0.2
      %v1599 = vmul.f32 %v1233, 0.2
      %v1600 = vmul.f32 %v1238, 0.2
      %v1601 = vmul.f32 %v1243, 0.2
      %v1602 = vmul.f32 %v1248, 0.2
      %v1603 = vmul.f32 %v1253, 0.2
      %v1604 = vmul.f32 %v1258, 0.2
      %v1605 = vmul.f32 %v1263, 0.2
      %v1606 = vmul.f32 %v1268, 0.2
      %v1607 = vmul.f32 %v1273, 0.2
      %v1608 = vmul.f32 %v1278, 0.2
      %v1609 = vmul.f32 %v1283, 0.2
      %v1610 = vmul.f32 %v1288, 0.2
      %v1611 = vmul.f32 %v1293, 0.2
      %v1612 = vmul.f32 %v1298, 0.2
      %v1613 = vmul.f32 %v1303, 0.2
      %v1614 = vmul.f32 %v1308, 0.2
      %v1615 = vmul.f32 %v1313, 0.2
      %v1616 = vmul.f32 %v1318, 0.2
      %v1617 = vmul.f32 %v1323, 0.2
      %v1618 = vmul.f32 %v1328, 0.2
      %v1619 = vmul.f32 %v1333, 0.2
      %v1620 = vmul.f32 %v1338, 0.2
      %v1621 = vmul.f32 %v1343, 0.2
      %v1622 = vmul.f32 %v1348, 0.2
      %v1623 = vmul.f32 %v1353, 0.2
      %v1624 = vmul.f32 %v1358, 0.2
      %v1625 = vmul.f32 %v1363, 0.2
      %v1626 = vmul.f32 %v1368, 0.2
      %v1627 = vsel %vm1371, %v733, %v1499
      %v1628 = vsel %vm1372, %v738, %v1500
      %v1629 = vsel %vm1373, %v743, %v1501
      %v1630 = vsel %vm1374, %v748, %v1502
      %v1631 = vsel %vm1375, %v753, %v1503
      %v1632 = vsel %vm1376, %v758, %v1504
      %v1633 = vsel %vm1377, %v763, %v1505
      %v1634 = vsel %vm1378, %v768, %v1506
      %v1635 = vsel %vm1379, %v773, %v1507
      %v1636 = vsel %vm1380, %v778, %v1508
      %v1637 = vsel %vm1381, %v783, %v1509
      %v1638 = vsel %vm1382, %v788, %v1510
      %v1639 = vsel %vm1383, %v793, %v1511
      %v1640 = vsel %vm1384, %v798, %v1512
      %v1641 = vsel %vm1385, %v803, %v1513
      %v1642 = vsel %vm1386, %v808, %v1514
      %v1643 = vsel %vm1387, %v813, %v1515
      %v1644 = vsel %vm1388, %v818, %v1516
      %v1645 = vsel %vm1389, %v823, %v1517
      %v1646 = vsel %vm1390, %v828, %v1518
      %v1647 = vsel %vm1391, %v833, %v1519
      %v1648 = vsel %vm1392, %v838, %v1520
      %v1649 = vsel %vm1393, %v843, %v1521
      %v1650 = vsel %vm1394, %v848, %v1522
      %v1651 = vsel %vm1395, %v853, %v1523
      %v1652 = vsel %vm1396, %v858, %v1524
      %v1653 = vsel %vm1397, %v863, %v1525
      %v1654 = vsel %vm1398, %v868, %v1526
      %v1655 = vsel %vm1399, %v873, %v1527
      %v1656 = vsel %vm1400, %v878, %v1528
      %v1657 = vsel %vm1401, %v883, %v1529
      %v1658 = vsel %vm1402, %v888, %v1530
      %v1659 = vsel %vm1403, %v893, %v1531
      %v1660 = vsel %vm1404, %v898, %v1532
      %v1661 = vsel %vm1405, %v903, %v1533
      %v1662 = vsel %vm1406, %v908, %v1534
      %v1663 = vsel %vm1407, %v913, %v1535
      %v1664 = vsel %vm1408, %v918, %v1536
      %v1665 = vsel %vm1409, %v923, %v1537
      %v1666 = vsel %vm1410, %v928, %v1538
      %v1667 = vsel %vm1411, %v933, %v1539
      %v1668 = vsel %vm1412, %v938, %v1540
      %v1669 = vsel %vm1413, %v943, %v1541
      %v1670 = vsel %vm1414, %v948, %v1542
      %v1671 = vsel %vm1415, %v953, %v1543
      %v1672 = vsel %vm1416, %v958, %v1544
      %v1673 = vsel %vm1417, %v963, %v1545
      %v1674 = vsel %vm1418, %v968, %v1546
      %v1675 = vsel %vm1419, %v973, %v1547
      %v1676 = vsel %vm1420, %v978, %v1548
      %v1677 = vsel %vm1421, %v983, %v1549
      %v1678 = vsel %vm1422, %v988, %v1550
      %v1679 = vsel %vm1423, %v993, %v1551
      %v1680 = vsel %vm1424, %v998, %v1552
      %v1681 = vsel %vm1425, %v1003, %v1553
      %v1682 = vsel %vm1426, %v1008, %v1554
      %v1683 = vsel %vm1427, %v1013, %v1555
      %v1684 = vsel %vm1428, %v1018, %v1556
      %v1685 = vsel %vm1429, %v1023, %v1557
      %v1686 = vsel %vm1430, %v1028, %v1558
      %v1687 = vsel %vm1431, %v1033, %v1559
      %v1688 = vsel %vm1432, %v1038, %v1560
      %v1689 = vsel %vm1433, %v1043, %v1561
      %v1690 = vsel %vm1434, %v1048, %v1562
      %v1691 = vsel %vm1435, %v1053, %v1563
      %v1692 = vsel %vm1436, %v1058, %v1564
      %v1693 = vsel %vm1437, %v1063, %v1565
      %v1694 = vsel %vm1438, %v1068, %v1566
      %v1695 = vsel %vm1439, %v1073, %v1567
      %v1696 = vsel %vm1440, %v1078, %v1568
      %v1697 = vsel %vm1441, %v1083, %v1569
      %v1698 = vsel %vm1442, %v1088, %v1570
      %v1699 = vsel %vm1443, %v1093, %v1571
      %v1700 = vsel %vm1444, %v1098, %v1572
      %v1701 = vsel %vm1445, %v1103, %v1573
      %v1702 = vsel %vm1446, %v1108, %v1574
      %v1703 = vsel %vm1447, %v1113, %v1575
      %v1704 = vsel %vm1448, %v1118, %v1576
      %v1705 = vsel %vm1449, %v1123, %v1577
      %v1706 = vsel %vm1450, %v1128, %v1578
      %v1707 = vsel %vm1451, %v1133, %v1579
      %v1708 = vsel %vm1452, %v1138, %v1580
      %v1709 = vsel %vm1453, %v1143, %v1581
      %v1710 = vsel %vm1454, %v1148, %v1582
      %v1711 = vsel %vm1455, %v1153, %v1583
      %v1712 = vsel %vm1456, %v1158, %v1584
      %v1713 = vsel %vm1457, %v1163, %v1585
      %v1714 = vsel %vm1458, %v1168, %v1586
      %v1715 = vsel %vm1459, %v1173, %v1587
      %v1716 = vsel %vm1460, %v1178, %v1588
      %v1717 = vsel %vm1461, %v1183, %v1589
      %v1718 = vsel %vm1462, %v1188, %v1590
      %v1719 = vsel %vm1463, %v1193, %v1591
      %v1720 = vsel %vm1464, %v1198, %v1592
      %v1721 = vsel %vm1465, %v1203, %v1593
      %v1722 = vsel %vm1466, %v1208, %v1594
      %v1723 = vsel %vm1467, %v1213, %v1595
      %v1724 = vsel %vm1468, %v1218, %v1596
      %v1725 = vsel %vm1469, %v1223, %v1597
      %v1726 = vsel %vm1470, %v1228, %v1598
      %v1727 = vsel %vm1471, %v1233, %v1599
      %v1728 = vsel %vm1472, %v1238, %v1600
      %v1729 = vsel %vm1473, %v1243, %v1601
      %v1730 = vsel %vm1474, %v1248, %v1602
      %v1731 = vsel %vm1475, %v1253, %v1603
      %v1732 = vsel %vm1476, %v1258, %v1604
      %v1733 = vsel %vm1477, %v1263, %v1605
      %v1734 = vsel %vm1478, %v1268, %v1606
      %v1735 = vsel %vm1479, %v1273, %v1607
      %v1736 = vsel %vm1480, %v1278, %v1608
      %v1737 = vsel %vm1481, %v1283, %v1609
      %v1738 = vsel %vm1482, %v1288, %v1610
      %v1739 = vsel %vm1483, %v1293, %v1611
      %v1740 = vsel %vm1484, %v1298, %v1612
      %v1741 = vsel %vm1485, %v1303, %v1613
      %v1742 = vsel %vm1486, %v1308, %v1614
      %v1743 = vsel %vm1487, %v1313, %v1615
      %v1744 = vsel %vm1488, %v1318, %v1616
      %v1745 = vsel %vm1489, %v1323, %v1617
      %v1746 = vsel %vm1490, %v1328, %v1618
      %v1747 = vsel %vm1491, %v1333, %v1619
      %v1748 = vsel %vm1492, %v1338, %v1620
      %v1749 = vsel %vm1493, %v1343, %v1621
      %v1750 = vsel %vm1494, %v1348, %v1622
      %v1751 = vsel %vm1495, %v1353, %v1623
      %v1752 = vsel %vm1496, %v1358, %v1624
      %v1753 = vsel %vm1497, %v1363, %v1625
      %v1754 = vsel %vm1498, %v1368, %v1626
      %vm1755 = vcmask 64512
      %1756 = vst.msk [vmem:[%s145] sm:$0xff] %vm1755, %v1627
      %1757 = vst.msk [vmem:[%s145 + $0x8] sm:$0xff] %vm1755, %v1628
      %1758 = vst.msk [vmem:[%s145 + $0x10] sm:$0xff] %vm1755, %v1629
      %1759 = vst.msk [vmem:[%s145 + $0x18] sm:$0xff] %vm1755, %v1630
      %1760 = vst.msk [vmem:[%s145 + $0x20] sm:$0xff] %vm1755, %v1631
      %1761 = vst.msk [vmem:[%s145 + $0x28] sm:$0xff] %vm1755, %v1632
      %1762 = vst.msk [vmem:[%s145 + $0x30] sm:$0xff] %vm1755, %v1633
      %1763 = vst.msk [vmem:[%s145 + $0x38] sm:$0xff] %vm1755, %v1634
      %1764 = vst.msk [vmem:[%s145 + $0x40] sm:$0xff] %vm1755, %v1635
      %1765 = vst.msk [vmem:[%s145 + $0x48] sm:$0xff] %vm1755, %v1636
      %1766 = vst.msk [vmem:[%s145 + $0x50] sm:$0xff] %vm1755, %v1637
      %1767 = vst.msk [vmem:[%s145 + $0x58] sm:$0xff] %vm1755, %v1638
      %1768 = vst.msk [vmem:[%s145 + $0x60] sm:$0xff] %vm1755, %v1639
      %1769 = vst.msk [vmem:[%s145 + $0x68] sm:$0xff] %vm1755, %v1640
      %1770 = vst.msk [vmem:[%s145 + $0x70] sm:$0xff] %vm1755, %v1641
      %1771 = vst.msk [vmem:[%s145 + $0x78] sm:$0xff] %vm1755, %v1642
      %1772 = vst.msk [vmem:[%s145 + $0x80] sm:$0xff] %vm1755, %v1643
      %1773 = vst.msk [vmem:[%s145 + $0x88] sm:$0xff] %vm1755, %v1644
      %1774 = vst.msk [vmem:[%s145 + $0x90] sm:$0xff] %vm1755, %v1645
      %1775 = vst.msk [vmem:[%s145 + $0x98] sm:$0xff] %vm1755, %v1646
      %1776 = vst.msk [vmem:[%s145 + $0xa0] sm:$0xff] %vm1755, %v1647
      %1777 = vst.msk [vmem:[%s145 + $0xa8] sm:$0xff] %vm1755, %v1648
      %1778 = vst.msk [vmem:[%s145 + $0xb0] sm:$0xff] %vm1755, %v1649
      %1779 = vst.msk [vmem:[%s145 + $0xb8] sm:$0xff] %vm1755, %v1650
      %1780 = vst.msk [vmem:[%s145 + $0xc0] sm:$0xff] %vm1755, %v1651
      %1781 = vst.msk [vmem:[%s145 + $0xc8] sm:$0xff] %vm1755, %v1652
      %1782 = vst.msk [vmem:[%s145 + $0xd0] sm:$0xff] %vm1755, %v1653
      %1783 = vst.msk [vmem:[%s145 + $0xd8] sm:$0xff] %vm1755, %v1654
      %1784 = vst.msk [vmem:[%s145 + $0xe0] sm:$0xff] %vm1755, %v1655
      %1785 = vst.msk [vmem:[%s145 + $0xe8] sm:$0xff] %vm1755, %v1656
      %1786 = vst.msk [vmem:[%s145 + $0xf0] sm:$0xff] %vm1755, %v1657
      %1787 = vst.msk [vmem:[%s145 + $0xf8] sm:$0xff] %vm1755, %v1658
      %1788 = vst.msk [vmem:[%s145 + $0x100] sm:$0xff] %vm1755, %v1659
      %1789 = vst.msk [vmem:[%s145 + $0x108] sm:$0xff] %vm1755, %v1660
      %1790 = vst.msk [vmem:[%s145 + $0x110] sm:$0xff] %vm1755, %v1661
      %1791 = vst.msk [vmem:[%s145 + $0x118] sm:$0xff] %vm1755, %v1662
      %1792 = vst.msk [vmem:[%s145 + $0x120] sm:$0xff] %vm1755, %v1663
      %1793 = vst.msk [vmem:[%s145 + $0x128] sm:$0xff] %vm1755, %v1664
      %1794 = vst.msk [vmem:[%s145 + $0x130] sm:$0xff] %vm1755, %v1665
      %1795 = vst.msk [vmem:[%s145 + $0x138] sm:$0xff] %vm1755, %v1666
      %1796 = vst.msk [vmem:[%s145 + $0x140] sm:$0xff] %vm1755, %v1667
      %1797 = vst.msk [vmem:[%s145 + $0x148] sm:$0xff] %vm1755, %v1668
      %1798 = vst.msk [vmem:[%s145 + $0x150] sm:$0xff] %vm1755, %v1669
      %1799 = vst.msk [vmem:[%s145 + $0x158] sm:$0xff] %vm1755, %v1670
      %1800 = vst.msk [vmem:[%s145 + $0x160] sm:$0xff] %vm1755, %v1671
      %1801 = vst.msk [vmem:[%s145 + $0x168] sm:$0xff] %vm1755, %v1672
      %1802 = vst.msk [vmem:[%s145 + $0x170] sm:$0xff] %vm1755, %v1673
      %1803 = vst.msk [vmem:[%s145 + $0x178] sm:$0xff] %vm1755, %v1674
      %1804 = vst.msk [vmem:[%s145 + $0x180] sm:$0xff] %vm1755, %v1675
      %1805 = vst.msk [vmem:[%s145 + $0x188] sm:$0xff] %vm1755, %v1676
      %1806 = vst.msk [vmem:[%s145 + $0x190] sm:$0xff] %vm1755, %v1677
      %1807 = vst.msk [vmem:[%s145 + $0x198] sm:$0xff] %vm1755, %v1678
      %1808 = vst.msk [vmem:[%s145 + $0x1a0] sm:$0xff] %vm1755, %v1679
      %1809 = vst.msk [vmem:[%s145 + $0x1a8] sm:$0xff] %vm1755, %v1680
      %1810 = vst.msk [vmem:[%s145 + $0x1b0] sm:$0xff] %vm1755, %v1681
      %1811 = vst.msk [vmem:[%s145 + $0x1b8] sm:$0xff] %vm1755, %v1682
      %1812 = vst.msk [vmem:[%s145 + $0x1c0] sm:$0xff] %vm1755, %v1683
      %1813 = vst.msk [vmem:[%s145 + $0x1c8] sm:$0xff] %vm1755, %v1684
      %1814 = vst.msk [vmem:[%s145 + $0x1d0] sm:$0xff] %vm1755, %v1685
      %1815 = vst.msk [vmem:[%s145 + $0x1d8] sm:$0xff] %vm1755, %v1686
      %1816 = vst.msk [vmem:[%s145 + $0x1e0] sm:$0xff] %vm1755, %v1687
      %1817 = vst.msk [vmem:[%s145 + $0x1e8] sm:$0xff] %vm1755, %v1688
      %1818 = vst.msk [vmem:[%s145 + $0x1f0] sm:$0xff] %vm1755, %v1689
      %1819 = vst.msk [vmem:[%s145 + $0x1f8] sm:$0xff] %vm1755, %v1690
      %1820 = vst.msk [vmem:[%s145 + $0x200] sm:$0xff] %vm1755, %v1691
      %1821 = vst.msk [vmem:[%s145 + $0x208] sm:$0xff] %vm1755, %v1692
      %1822 = vst.msk [vmem:[%s145 + $0x210] sm:$0xff] %vm1755, %v1693
      %1823 = vst.msk [vmem:[%s145 + $0x218] sm:$0xff] %vm1755, %v1694
      %1824 = vst.msk [vmem:[%s145 + $0x220] sm:$0xff] %vm1755, %v1695
      %1825 = vst.msk [vmem:[%s145 + $0x228] sm:$0xff] %vm1755, %v1696
      %1826 = vst.msk [vmem:[%s145 + $0x230] sm:$0xff] %vm1755, %v1697
      %1827 = vst.msk [vmem:[%s145 + $0x238] sm:$0xff] %vm1755, %v1698
      %1828 = vst.msk [vmem:[%s145 + $0x240] sm:$0xff] %vm1755, %v1699
      %1829 = vst.msk [vmem:[%s145 + $0x248] sm:$0xff] %vm1755, %v1700
      %1830 = vst.msk [vmem:[%s145 + $0x250] sm:$0xff] %vm1755, %v1701
      %1831 = vst.msk [vmem:[%s145 + $0x258] sm:$0xff] %vm1755, %v1702
      %1832 = vst.msk [vmem:[%s145 + $0x260] sm:$0xff] %vm1755, %v1703
      %1833 = vst.msk [vmem:[%s145 + $0x268] sm:$0xff] %vm1755, %v1704
      %1834 = vst.msk [vmem:[%s145 + $0x270] sm:$0xff] %vm1755, %v1705
      %1835 = vst.msk [vmem:[%s145 + $0x278] sm:$0xff] %vm1755, %v1706
      %1836 = vst.msk [vmem:[%s145 + $0x280] sm:$0xff] %vm1755, %v1707
      %1837 = vst.msk [vmem:[%s145 + $0x288] sm:$0xff] %vm1755, %v1708
      %1838 = vst.msk [vmem:[%s145 + $0x290] sm:$0xff] %vm1755, %v1709
      %1839 = vst.msk [vmem:[%s145 + $0x298] sm:$0xff] %vm1755, %v1710
      %1840 = vst.msk [vmem:[%s145 + $0x2a0] sm:$0xff] %vm1755, %v1711
      %1841 = vst.msk [vmem:[%s145 + $0x2a8] sm:$0xff] %vm1755, %v1712
      %1842 = vst.msk [vmem:[%s145 + $0x2b0] sm:$0xff] %vm1755, %v1713
      %1843 = vst.msk [vmem:[%s145 + $0x2b8] sm:$0xff] %vm1755, %v1714
      %1844 = vst.msk [vmem:[%s145 + $0x2c0] sm:$0xff] %vm1755, %v1715
      %1845 = vst.msk [vmem:[%s145 + $0x2c8] sm:$0xff] %vm1755, %v1716
      %1846 = vst.msk [vmem:[%s145 + $0x2d0] sm:$0xff] %vm1755, %v1717
      %1847 = vst.msk [vmem:[%s145 + $0x2d8] sm:$0xff] %vm1755, %v1718
      %1848 = vst.msk [vmem:[%s145 + $0x2e0] sm:$0xff] %vm1755, %v1719
      %1849 = vst.msk [vmem:[%s145 + $0x2e8] sm:$0xff] %vm1755, %v1720
      %1850 = vst.msk [vmem:[%s145 + $0x2f0] sm:$0xff] %vm1755, %v1721
      %1851 = vst.msk [vmem:[%s145 + $0x2f8] sm:$0xff] %vm1755, %v1722
      %1852 = vst.msk [vmem:[%s145 + $0x300] sm:$0xff] %vm1755, %v1723
      %1853 = vst.msk [vmem:[%s145 + $0x308] sm:$0xff] %vm1755, %v1724
      %1854 = vst.msk [vmem:[%s145 + $0x310] sm:$0xff] %vm1755, %v1725
      %1855 = vst.msk [vmem:[%s145 + $0x318] sm:$0xff] %vm1755, %v1726
      %1856 = vst.msk [vmem:[%s145 + $0x320] sm:$0xff] %vm1755, %v1727
      %1857 = vst.msk [vmem:[%s145 + $0x328] sm:$0xff] %vm1755, %v1728
      %1858 = vst.msk [vmem:[%s145 + $0x330] sm:$0xff] %vm1755, %v1729
      %1859 = vst.msk [vmem:[%s145 + $0x338] sm:$0xff] %vm1755, %v1730
      %1860 = vst.msk [vmem:[%s145 + $0x340] sm:$0xff] %vm1755, %v1731
      %1861 = vst.msk [vmem:[%s145 + $0x348] sm:$0xff] %vm1755, %v1732
      %1862 = vst.msk [vmem:[%s145 + $0x350] sm:$0xff] %vm1755, %v1733
      %1863 = vst.msk [vmem:[%s145 + $0x358] sm:$0xff] %vm1755, %v1734
      %1864 = vst.msk [vmem:[%s145 + $0x360] sm:$0xff] %vm1755, %v1735
      %1865 = vst.msk [vmem:[%s145 + $0x368] sm:$0xff] %vm1755, %v1736
      %1866 = vst.msk [vmem:[%s145 + $0x370] sm:$0xff] %vm1755, %v1737
      %1867 = vst.msk [vmem:[%s145 + $0x378] sm:$0xff] %vm1755, %v1738
      %1868 = vst.msk [vmem:[%s145 + $0x380] sm:$0xff] %vm1755, %v1739
      %1869 = vst.msk [vmem:[%s145 + $0x388] sm:$0xff] %vm1755, %v1740
      %1870 = vst.msk [vmem:[%s145 + $0x390] sm:$0xff] %vm1755, %v1741
      %1871 = vst.msk [vmem:[%s145 + $0x398] sm:$0xff] %vm1755, %v1742
      %1872 = vst.msk [vmem:[%s145 + $0x3a0] sm:$0xff] %vm1755, %v1743
      %1873 = vst.msk [vmem:[%s145 + $0x3a8] sm:$0xff] %vm1755, %v1744
      %1874 = vst.msk [vmem:[%s145 + $0x3b0] sm:$0xff] %vm1755, %v1745
      %1875 = vst.msk [vmem:[%s145 + $0x3b8] sm:$0xff] %vm1755, %v1746
      %1876 = vst.msk [vmem:[%s145 + $0x3c0] sm:$0xff] %vm1755, %v1747
      %1877 = vst.msk [vmem:[%s145 + $0x3c8] sm:$0xff] %vm1755, %v1748
      %1878 = vst.msk [vmem:[%s145 + $0x3d0] sm:$0xff] %vm1755, %v1749
      %1879 = vst.msk [vmem:[%s145 + $0x3d8] sm:$0xff] %vm1755, %v1750
      %1880 = vst.msk [vmem:[%s145 + $0x3e0] sm:$0xff] %vm1755, %v1751
      %1881 = vst.msk [vmem:[%s145 + $0x3e8] sm:$0xff] %vm1755, %v1752
      %1882 = vst.msk [vmem:[%s145 + $0x3f0] sm:$0xff] %vm1755, %v1753
      %1883 = vst.msk [vmem:[%s145 + $0x3f8] sm:$0xff] %vm1755, %v1754
      %s1884 = smul.u32 128, %s13
      %p1885 = scmp.lt.s32.totalorder %s1884, 255
      %s1886 = scalar_select %p1885, %s1884, 255
      %s1887 = smul.addr %s1886, 8
      %s1888 = scalar_lea.vmem %s2, %s1887
      // Predicated region
      $region29: #{bayes_discriminator_forward.4} parent=27 // pred_check
        %p1889 = pneg %p78
      $region30: #{bayes_discriminator_forward.4} parent=27 // pred_check_branch
        %1891 = sbr.rel (%p1889) target = $region32
      $region31: #{bayes_discriminator_forward.4} parent=27 // pred_region
        %s1892 = smul.u32 128, %s13
      $region32: #{bayes_discriminator_forward.4} parent=27 // pred_fallthru
        _
    $region28: #{bayes_discriminator_forward.4} parent=5 // pred_fallthru
      _
    %p1893 = scmp.le.s32.totalorder 2, %s8
    // Predicated region
    $region33: #{bayes_discriminator_forward.4} parent=5 // pred_check
      %p1894 = pneg %p1893
    $region34: #{bayes_discriminator_forward.4} parent=5 // pred_check_branch
      %1896 = sbr.rel (%p1894) target = $region36
    $region35: #{bayes_discriminator_forward.4} parent=5 // pred_region
      %s1897 = ssub.s32 %s8, 2
      // Predicated region
      $region37: #{bayes_discriminator_forward.4} parent=35 // pred_check
        %p1898 = pneg %p84
      $region38: #{bayes_discriminator_forward.4} parent=35 // pred_check_branch
        %1900 = sbr.rel (%p1898) target = $region40
      $region39: #{bayes_discriminator_forward.4} parent=35 // pred_region
        %s1901 = smul.u32 128, %s14
        %p1902 = scmp.lt.s32.totalorder %s1901, 255
        %s1903 = scalar_select %p1902, %s1901, 255
        %s1904 = smul.addr %s1903, 8
        %s1905 = scalar_lea.vmem %s2, %s1904
      $region40: #{bayes_discriminator_forward.4} parent=35 // pred_fallthru
        _
    $region36: #{bayes_discriminator_forward.4} parent=5 // pred_fallthru
      _
  $region6: #{bayes_discriminator_forward.4} parent=0 // loop_footer
    %s12 = sadd.s32 1, %s8
  $region7: #{bayes_discriminator_forward.4} parent=0 // loop_footer_branch
    %7 = sbr.rel target = $region3
  $region8: #{bayes_discriminator_forward.4} parent=0 // loop_exit
    _

// kernel: bayes_discriminator_forward.5
$region0: #{bayes_discriminator_forward.5}
  #allocation0 [shape = 'u32[]', space=smem, size = 0x4, offset = 0x4, fixed_abs, tag = 'smem constant byte address 0x4 - core index']
  #allocation1 [shape = 'u32[144,128]{1,0:T(1,128)}', space=vmem, size = 0x12000, scoped, tag = 'internal scratch']
  %s0 = inlined_call_operand.vmem [shape: f32[512,128], index: 0, kind: input, shape index: {}]
  %s1 = inlined_call_operand.vmem [shape: f32[128,16], index: 1, kind: input, shape index: {}]
  %s2 = inlined_call_operand.vmem [shape: f32[1,16], index: 2, kind: input, shape index: {}]
  %s3 = inlined_call_operand.vmem [shape: f32[1,16], index: 3, kind: input, shape index: {}]
  %s4 = inlined_call_operand.vmem [shape: f32[512,16], index: 4, kind: output, shape index: {}]
  %s5 = sld [smem:[#allocation0]]
  $region26: #{bayes_discriminator_forward.5} parent=0
    _
  %s7 = ssub.s32 1, %s5
  %s8 = scalar_select 0, %s7, %s5
  // Predicated region
  $region2: #{bayes_discriminator_forward.5} parent=0 // pred_check
    _
  $region3: #{bayes_discriminator_forward.5} parent=0 // pred_check_branch
    %10 = sbr.rel (0) target = $region5
  $region4: #{bayes_discriminator_forward.5} parent=0 // pred_region
    _
  $region5: #{bayes_discriminator_forward.5} parent=0 // pred_fallthru
    _
  // Predicated region
  $region6: #{bayes_discriminator_forward.5} parent=0 // pred_check
    _
  $region7: #{bayes_discriminator_forward.5} parent=0 // pred_check_branch
    %12 = sbr.rel (0) target = $region9
  $region8: #{bayes_discriminator_forward.5} parent=0 // pred_region
    _
  $region9: #{bayes_discriminator_forward.5} parent=0 // pred_fallthru
    _
  // Predicated region
  $region10: #{bayes_discriminator_forward.5} parent=0 // pred_check
    _
  $region11: #{bayes_discriminator_forward.5} parent=0 // pred_check_branch
    %14 = sbr.rel (0) target = $region13
  $region12: #{bayes_discriminator_forward.5} parent=0 // pred_region
    _
  $region13: #{bayes_discriminator_forward.5} parent=0 // pred_fallthru
    _
  // Predicated region
  $region14: #{bayes_discriminator_forward.5} parent=0 // pred_check
    _
  $region15: #{bayes_discriminator_forward.5} parent=0 // pred_check_branch
    %16 = sbr.rel (0) target = $region17
  $region16: #{bayes_discriminator_forward.5} parent=0 // pred_region
    _
  $region17: #{bayes_discriminator_forward.5} parent=0 // pred_fallthru
    _
  %v17 = vld [vmem:[%s0] sm:$0xff]
  %v18 = vld [vmem:[%s0 + $0x8] sm:$0xff]
  %v19 = vld [vmem:[%s0 + $0x10] sm:$0xff]
  %v20 = vld [vmem:[%s0 + $0x18] sm:$0xff]
  %v21 = vld [vmem:[%s0 + $0x20] sm:$0xff]
  %v22 = vld [vmem:[%s0 + $0x28] sm:$0xff]
  %v23 = vld [vmem:[%s0 + $0x30] sm:$0xff]
  %v24 = vld [vmem:[%s0 + $0x38] sm:$0xff]
  %v25 = vld [vmem:[%s0 + $0x40] sm:$0xff]
  %v26 = vld [vmem:[%s0 + $0x48] sm:$0xff]
  %v27 = vld [vmem:[%s0 + $0x50] sm:$0xff]
  %v28 = vld [vmem:[%s0 + $0x58] sm:$0xff]
  %v29 = vld [vmem:[%s0 + $0x60] sm:$0xff]
  %v30 = vld [vmem:[%s0 + $0x68] sm:$0xff]
  %v31 = vld [vmem:[%s0 + $0x70] sm:$0xff]
  %v32 = vld [vmem:[%s0 + $0x78] sm:$0xff]
  %v33 = vld [vmem:[%s0 + $0x80] sm:$0xff]
  %v34 = vld [vmem:[%s0 + $0x88] sm:$0xff]
  %v35 = vld [vmem:[%s0 + $0x90] sm:$0xff]
  %v36 = vld [vmem:[%s0 + $0x98] sm:$0xff]
  %v37 = vld [vmem:[%s0 + $0xa0] sm:$0xff]
  %v38 = vld [vmem:[%s0 + $0xa8] sm:$0xff]
  %v39 = vld [vmem:[%s0 + $0xb0] sm:$0xff]
  %v40 = vld [vmem:[%s0 + $0xb8] sm:$0xff]
  %v41 = vld [vmem:[%s0 + $0xc0] sm:$0xff]
  %v42 = vld [vmem:[%s0 + $0xc8] sm:$0xff]
  %v43 = vld [vmem:[%s0 + $0xd0] sm:$0xff]
  %v44 = vld [vmem:[%s0 + $0xd8] sm:$0xff]
  %v45 = vld [vmem:[%s0 + $0xe0] sm:$0xff]
  %v46 = vld [vmem:[%s0 + $0xe8] sm:$0xff]
  %v47 = vld [vmem:[%s0 + $0xf0] sm:$0xff]
  %v48 = vld [vmem:[%s0 + $0xf8] sm:$0xff]
  %v49 = vld [vmem:[%s0 + $0x100] sm:$0xff]
  %v50 = vld [vmem:[%s0 + $0x108] sm:$0xff]
  %v51 = vld [vmem:[%s0 + $0x110] sm:$0xff]
  %v52 = vld [vmem:[%s0 + $0x118] sm:$0xff]
  %v53 = vld [vmem:[%s0 + $0x120] sm:$0xff]
  %v54 = vld [vmem:[%s0 + $0x128] sm:$0xff]
  %v55 = vld [vmem:[%s0 + $0x130] sm:$0xff]
  %v56 = vld [vmem:[%s0 + $0x138] sm:$0xff]
  %v57 = vld [vmem:[%s0 + $0x140] sm:$0xff]
  %v58 = vld [vmem:[%s0 + $0x148] sm:$0xff]
  %v59 = vld [vmem:[%s0 + $0x150] sm:$0xff]
  %v60 = vld [vmem:[%s0 + $0x158] sm:$0xff]
  %v61 = vld [vmem:[%s0 + $0x160] sm:$0xff]
  %v62 = vld [vmem:[%s0 + $0x168] sm:$0xff]
  %v63 = vld [vmem:[%s0 + $0x170] sm:$0xff]
  %v64 = vld [vmem:[%s0 + $0x178] sm:$0xff]
  %v65 = vld [vmem:[%s0 + $0x180] sm:$0xff]
  %v66 = vld [vmem:[%s0 + $0x188] sm:$0xff]
  %v67 = vld [vmem:[%s0 + $0x190] sm:$0xff]
  %v68 = vld [vmem:[%s0 + $0x198] sm:$0xff]
  %v69 = vld [vmem:[%s0 + $0x1a0] sm:$0xff]
  %v70 = vld [vmem:[%s0 + $0x1a8] sm:$0xff]
  %v71 = vld [vmem:[%s0 + $0x1b0] sm:$0xff]
  %v72 = vld [vmem:[%s0 + $0x1b8] sm:$0xff]
  %v73 = vld [vmem:[%s0 + $0x1c0] sm:$0xff]
  %v74 = vld [vmem:[%s0 + $0x1c8] sm:$0xff]
  %v75 = vld [vmem:[%s0 + $0x1d0] sm:$0xff]
  %v76 = vld [vmem:[%s0 + $0x1d8] sm:$0xff]
  %v77 = vld [vmem:[%s0 + $0x1e0] sm:$0xff]
  %v78 = vld [vmem:[%s0 + $0x1e8] sm:$0xff]
  %v79 = vld [vmem:[%s0 + $0x1f0] sm:$0xff]
  %v80 = vld [vmem:[%s0 + $0x1f8] sm:$0xff]
  %v81 = vld [vmem:[%s1] sm:$0xff]
  %v82 = vld [vmem:[%s1 + $0x8] sm:$0xff]
  %v83 = vld [vmem:[%s1 + $0x10] sm:$0xff]
  %v84 = vld [vmem:[%s1 + $0x18] sm:$0xff]
  %v85 = vld [vmem:[%s1 + $0x20] sm:$0xff]
  %v86 = vld [vmem:[%s1 + $0x28] sm:$0xff]
  %v87 = vld [vmem:[%s1 + $0x30] sm:$0xff]
  %v88 = vld [vmem:[%s1 + $0x38] sm:$0xff]
  %v89 = vld [vmem:[%s1 + $0x40] sm:$0xff]
  %v90 = vld [vmem:[%s1 + $0x48] sm:$0xff]
  %v91 = vld [vmem:[%s1 + $0x50] sm:$0xff]
  %v92 = vld [vmem:[%s1 + $0x58] sm:$0xff]
  %v93 = vld [vmem:[%s1 + $0x60] sm:$0xff]
  %v94 = vld [vmem:[%s1 + $0x68] sm:$0xff]
  %v95 = vld [vmem:[%s1 + $0x70] sm:$0xff]
  %v96 = vld [vmem:[%s1 + $0x78] sm:$0xff]
  %97 = vmatprep.subr.mxu0 0.0
  %98 = vmatpush1.msra.mxu0 %v81
  %99 = vmatprep.subr.mxu0 0.0
  %100 = vmatpush1.msra.mxu0 %v82
  %101 = vmatprep.subr.mxu0 0.0
  %102 = vmatpush1.msra.mxu0 %v83
  %103 = vmatprep.subr.mxu0 0.0
  %104 = vmatpush1.msra.mxu0 %v84
  %105 = vmatprep.subr.mxu0 0.0
  %106 = vmatpush1.msra.mxu0 %v85
  %107 = vmatprep.subr.mxu0 0.0
  %108 = vmatpush1.msra.mxu0 %v86
  %109 = vmatprep.subr.mxu0 0.0
  %110 = vmatpush1.msra.mxu0 %v87
  %111 = vmatprep.subr.mxu0 0.0
  %112 = vmatpush1.msra.mxu0 %v88
  %113 = vmatprep.subr.mxu0 0.0
  %114 = vmatpush1.msra.mxu0 %v89
  %115 = vmatprep.subr.mxu0 0.0
  %116 = vmatpush1.msra.mxu0 %v90
  %117 = vmatprep.subr.mxu0 0.0
  %118 = vmatpush1.msra.mxu0 %v91
  %119 = vmatprep.subr.mxu0 0.0
  %120 = vmatpush1.msra.mxu0 %v92
  %121 = vmatprep.subr.mxu0 0.0
  %122 = vmatpush1.msra.mxu0 %v93
  %123 = vmatprep.subr.mxu0 0.0
  %124 = vmatpush1.msra.mxu0 %v94
  %125 = vmatprep.subr.mxu0 0.0
  %126 = vmatpush1.msra.mxu0 %v95
  %127 = vmatprep.subr.mxu0 0.0
  %128 = vmatpush1.msra.mxu0 %v96
  %129 = vmatprep.subr.mxu0 0.0
  %130 = vmatpush1.msra.mxu0 0.0
  %131 = vmatprep.subr.mxu0 0.0
  %132 = vmatpush1.msra.mxu0 0.0
  %133 = vmatprep.subr.mxu0 0.0
  %134 = vmatpush1.msra.mxu0 0.0
  %135 = vmatprep.subr.mxu0 0.0
  %136 = vmatpush1.msra.mxu0 0.0
  %137 = vmatprep.subr.mxu0 0.0
  %138 = vmatpush1.msra.mxu0 0.0
  %139 = vmatprep.subr.mxu0 0.0
  %140 = vmatpush1.msra.mxu0 0.0
  %141 = vmatprep.subr.mxu0 0.0
  %142 = vmatpush1.msra.mxu0 0.0
  %143 = vmatprep.subr.mxu0 0.0
  %144 = vmatpush1.msra.mxu0 0.0
  %145 = vmatprep.subr.mxu0 0.0
  %146 = vmatpush1.msra.mxu0 0.0
  %147 = vmatprep.subr.mxu0 0.0
  %148 = vmatpush1.msra.mxu0 0.0
  %149 = vmatprep.subr.mxu0 0.0
  %150 = vmatpush1.msra.mxu0 0.0
  %151 = vmatprep.subr.mxu0 0.0
  %152 = vmatpush1.msra.mxu0 0.0
  %153 = vmatprep.subr.mxu0 0.0
  %154 = vmatpush1.msra.mxu0 0.0
  %155 = vmatprep.subr.mxu0 0.0
  %156 = vmatpush1.msra.mxu0 0.0
  %157 = vmatprep.subr.mxu0 0.0
  %158 = vmatpush1.msra.mxu0 0.0
  %159 = vmatprep.subr.mxu0 0.0
  %160 = vmatpush1.msra.mxu0 0.0
  %161 = vmatprep.mubr.f32.mxu0 0.0
  %162 = vmatmul.mubr.f32.gmra.mrb[0].mxu0 %v17
  %v163 = vpop.f32.mrb[0].mxu0
  %v164 = vadd.f32 0.0, %v163
  %v165 = vpop.f32.mrb[0].mxu0
  %166 = vmatprep.mubr.f32.mxu0 0.0
  %167 = vmatmul.mubr.f32.gmra.mrb[0].mxu0 %v18
  %v168 = vpop.f32.mrb[0].mxu0
  %v169 = vadd.f32 0.0, %v168
  %v170 = vpop.f32.mrb[0].mxu0
  %171 = vmatprep.mubr.f32.mxu0 0.0
  %172 = vmatmul.mubr.f32.gmra.mrb[0].mxu0 %v19
  %v173 = vpop.f32.mrb[0].mxu0
  %v174 = vadd.f32 0.0, %v173
  %v175 = vpop.f32.mrb[0].mxu0
  %176 = vmatprep.mubr.f32.mxu0 0.0
  %177 = vmatmul.mubr.f32.gmra.mrb[0].mxu0 %v20
  %v178 = vpop.f32.mrb[0].mxu0
  %v179 = vadd.f32 0.0, %v178
  %v180 = vpop.f32.mrb[0].mxu0
  %181 = vmatprep.mubr.f32.mxu0 0.0
  %182 = vmatmul.mubr.f32.gmra.mrb[0].mxu0 %v21
  %v183 = vpop.f32.mrb[0].mxu0
  %v184 = vadd.f32 0.0, %v183
  %v185 = vpop.f32.mrb[0].mxu0
  %186 = vmatprep.mubr.f32.mxu0 0.0
  %187 = vmatmul.mubr.f32.gmra.mrb[0].mxu0 %v22
  %v188 = vpop.f32.mrb[0].mxu0
  %v189 = vadd.f32 0.0, %v188
  %v190 = vpop.f32.mrb[0].mxu0
  %191 = vmatprep.mubr.f32.mxu0 0.0
  %192 = vmatmul.mubr.f32.gmra.mrb[0].mxu0 %v23
  %v193 = vpop.f32.mrb[0].mxu0
  %v194 = vadd.f32 0.0, %v193
  %v195 = vpop.f32.mrb[0].mxu0
  %196 = vmatprep.mubr.f32.mxu0 0.0
  %197 = vmatmul.mubr.f32.gmra.mrb[0].mxu0 %v24
  %v198 = vpop.f32.mrb[0].mxu0
  %v199 = vadd.f32 0.0, %v198
  %v200 = vpop.f32.mrb[0].mxu0
  %201 = vmatprep.mubr.f32.mxu0 0.0
  %202 = vmatmul.mubr.f32.gmra.mrb[0].mxu0 %v25
  %v203 = vpop.f32.mrb[0].mxu0
  %v204 = vadd.f32 0.0, %v203
  %v205 = vpop.f32.mrb[0].mxu0
  %206 = vmatprep.mubr.f32.mxu0 0.0
  %207 = vmatmul.mubr.f32.gmra.mrb[0].mxu0 %v26
  %v208 = vpop.f32.mrb[0].mxu0
  %v209 = vadd.f32 0.0, %v208
  %v210 = vpop.f32.mrb[0].mxu0
  %211 = vmatprep.mubr.f32.mxu0 0.0
  %212 = vmatmul.mubr.f32.gmra.mrb[0].mxu0 %v27
  %v213 = vpop.f32.mrb[0].mxu0
  %v214 = vadd.f32 0.0, %v213
  %v215 = vpop.f32.mrb[0].mxu0
  %216 = vmatprep.mubr.f32.mxu0 0.0
  %217 = vmatmul.mubr.f32.gmra.mrb[0].mxu0 %v28
  %v218 = vpop.f32.mrb[0].mxu0
  %v219 = vadd.f32 0.0, %v218
  %v220 = vpop.f32.mrb[0].mxu0
  %221 = vmatprep.mubr.f32.mxu0 0.0
  %222 = vmatmul.mubr.f32.gmra.mrb[0].mxu0 %v29
  %v223 = vpop.f32.mrb[0].mxu0
  %v224 = vadd.f32 0.0, %v223
  %v225 = vpop.f32.mrb[0].mxu0
  %226 = vmatprep.mubr.f32.mxu0 0.0
  %227 = vmatmul.mubr.f32.gmra.mrb[0].mxu0 %v30
  %v228 = vpop.f32.mrb[0].mxu0
  %v229 = vadd.f32 0.0, %v228
  %v230 = vpop.f32.mrb[0].mxu0
  %231 = vmatprep.mubr.f32.mxu0 0.0
  %232 = vmatmul.mubr.f32.gmra.mrb[0].mxu0 %v31
  %v233 = vpop.f32.mrb[0].mxu0
  %v234 = vadd.f32 0.0, %v233
  %v235 = vpop.f32.mrb[0].mxu0
  %236 = vmatprep.mubr.f32.mxu0 0.0
  %237 = vmatmul.mubr.f32.gmra.mrb[0].mxu0 %v32
  %v238 = vpop.f32.mrb[0].mxu0
  %v239 = vadd.f32 0.0, %v238
  %v240 = vpop.f32.mrb[0].mxu0
  %241 = vmatprep.mubr.f32.mxu0 0.0
  %242 = vmatmul.mubr.f32.gmra.mrb[0].mxu0 %v33
  %v243 = vpop.f32.mrb[0].mxu0
  %v244 = vadd.f32 0.0, %v243
  %v245 = vpop.f32.mrb[0].mxu0
  %246 = vmatprep.mubr.f32.mxu0 0.0
  %247 = vmatmul.mubr.f32.gmra.mrb[0].mxu0 %v34
  %v248 = vpop.f32.mrb[0].mxu0
  %v249 = vadd.f32 0.0, %v248
  %v250 = vpop.f32.mrb[0].mxu0
  %251 = vmatprep.mubr.f32.mxu0 0.0
  %252 = vmatmul.mubr.f32.gmra.mrb[0].mxu0 %v35
  %v253 = vpop.f32.mrb[0].mxu0
  %v254 = vadd.f32 0.0, %v253
  %v255 = vpop.f32.mrb[0].mxu0
  %256 = vmatprep.mubr.f32.mxu0 0.0
  %257 = vmatmul.mubr.f32.gmra.mrb[0].mxu0 %v36
  %v258 = vpop.f32.mrb[0].mxu0
  %v259 = vadd.f32 0.0, %v258
  %v260 = vpop.f32.mrb[0].mxu0
  %261 = vmatprep.mubr.f32.mxu0 0.0
  %262 = vmatmul.mubr.f32.gmra.mrb[0].mxu0 %v37
  %v263 = vpop.f32.mrb[0].mxu0
  %v264 = vadd.f32 0.0, %v263
  %v265 = vpop.f32.mrb[0].mxu0
  %266 = vmatprep.mubr.f32.mxu0 0.0
  %267 = vmatmul.mubr.f32.gmra.mrb[0].mxu0 %v38
  %v268 = vpop.f32.mrb[0].mxu0
  %v269 = vadd.f32 0.0, %v268
  %v270 = vpop.f32.mrb[0].mxu0
  %271 = vmatprep.mubr.f32.mxu0 0.0
  %272 = vmatmul.mubr.f32.gmra.mrb[0].mxu0 %v39
  %v273 = vpop.f32.mrb[0].mxu0
  %v274 = vadd.f32 0.0, %v273
  %v275 = vpop.f32.mrb[0].mxu0
  %276 = vmatprep.mubr.f32.mxu0 0.0
  %277 = vmatmul.mubr.f32.gmra.mrb[0].mxu0 %v40
  %v278 = vpop.f32.mrb[0].mxu0
  %v279 = vadd.f32 0.0, %v278
  %v280 = vpop.f32.mrb[0].mxu0
  %281 = vmatprep.mubr.f32.mxu0 0.0
  %282 = vmatmul.mubr.f32.gmra.mrb[0].mxu0 %v41
  %v283 = vpop.f32.mrb[0].mxu0
  %v284 = vadd.f32 0.0, %v283
  %v285 = vpop.f32.mrb[0].mxu0
  %286 = vmatprep.mubr.f32.mxu0 0.0
  %287 = vmatmul.mubr.f32.gmra.mrb[0].mxu0 %v42
  %v288 = vpop.f32.mrb[0].mxu0
  %v289 = vadd.f32 0.0, %v288
  %v290 = vpop.f32.mrb[0].mxu0
  %291 = vmatprep.mubr.f32.mxu0 0.0
  %292 = vmatmul.mubr.f32.gmra.mrb[0].mxu0 %v43
  %v293 = vpop.f32.mrb[0].mxu0
  %v294 = vadd.f32 0.0, %v293
  %v295 = vpop.f32.mrb[0].mxu0
  %296 = vmatprep.mubr.f32.mxu0 0.0
  %297 = vmatmul.mubr.f32.gmra.mrb[0].mxu0 %v44
  %v298 = vpop.f32.mrb[0].mxu0
  %v299 = vadd.f32 0.0, %v298
  %v300 = vpop.f32.mrb[0].mxu0
  %301 = vmatprep.mubr.f32.mxu0 0.0
  %302 = vmatmul.mubr.f32.gmra.mrb[0].mxu0 %v45
  %v303 = vpop.f32.mrb[0].mxu0
  %v304 = vadd.f32 0.0, %v303
  %v305 = vpop.f32.mrb[0].mxu0
  %306 = vmatprep.mubr.f32.mxu0 0.0
  %307 = vmatmul.mubr.f32.gmra.mrb[0].mxu0 %v46
  %v308 = vpop.f32.mrb[0].mxu0
  %v309 = vadd.f32 0.0, %v308
  %v310 = vpop.f32.mrb[0].mxu0
  %311 = vmatprep.mubr.f32.mxu0 0.0
  %312 = vmatmul.mubr.f32.gmra.mrb[0].mxu0 %v47
  %v313 = vpop.f32.mrb[0].mxu0
  %v314 = vadd.f32 0.0, %v313
  %v315 = vpop.f32.mrb[0].mxu0
  %316 = vmatprep.mubr.f32.mxu0 0.0
  %317 = vmatmul.mubr.f32.gmra.mrb[0].mxu0 %v48
  %v318 = vpop.f32.mrb[0].mxu0
  %v319 = vadd.f32 0.0, %v318
  %v320 = vpop.f32.mrb[0].mxu0
  %321 = vmatprep.mubr.f32.mxu0 0.0
  %322 = vmatmul.mubr.f32.gmra.mrb[0].mxu0 %v49
  %v323 = vpop.f32.mrb[0].mxu0
  %v324 = vadd.f32 0.0, %v323
  %v325 = vpop.f32.mrb[0].mxu0
  %326 = vmatprep.mubr.f32.mxu0 0.0
  %327 = vmatmul.mubr.f32.gmra.mrb[0].mxu0 %v50
  %v328 = vpop.f32.mrb[0].mxu0
  %v329 = vadd.f32 0.0, %v328
  %v330 = vpop.f32.mrb[0].mxu0
  %331 = vmatprep.mubr.f32.mxu0 0.0
  %332 = vmatmul.mubr.f32.gmra.mrb[0].mxu0 %v51
  %v333 = vpop.f32.mrb[0].mxu0
  %v334 = vadd.f32 0.0, %v333
  %v335 = vpop.f32.mrb[0].mxu0
  %336 = vmatprep.mubr.f32.mxu0 0.0
  %337 = vmatmul.mubr.f32.gmra.mrb[0].mxu0 %v52
  %v338 = vpop.f32.mrb[0].mxu0
  %v339 = vadd.f32 0.0, %v338
  %v340 = vpop.f32.mrb[0].mxu0
  %341 = vmatprep.mubr.f32.mxu0 0.0
  %342 = vmatmul.mubr.f32.gmra.mrb[0].mxu0 %v53
  %v343 = vpop.f32.mrb[0].mxu0
  %v344 = vadd.f32 0.0, %v343
  %v345 = vpop.f32.mrb[0].mxu0
  %346 = vmatprep.mubr.f32.mxu0 0.0
  %347 = vmatmul.mubr.f32.gmra.mrb[0].mxu0 %v54
  %v348 = vpop.f32.mrb[0].mxu0
  %v349 = vadd.f32 0.0, %v348
  %v350 = vpop.f32.mrb[0].mxu0
  %351 = vmatprep.mubr.f32.mxu0 0.0
  %352 = vmatmul.mubr.f32.gmra.mrb[0].mxu0 %v55
  %v353 = vpop.f32.mrb[0].mxu0
  %v354 = vadd.f32 0.0, %v353
  %v355 = vpop.f32.mrb[0].mxu0
  %356 = vmatprep.mubr.f32.mxu0 0.0
  %357 = vmatmul.mubr.f32.gmra.mrb[0].mxu0 %v56
  %v358 = vpop.f32.mrb[0].mxu0
  %v359 = vadd.f32 0.0, %v358
  %v360 = vpop.f32.mrb[0].mxu0
  %361 = vmatprep.mubr.f32.mxu0 0.0
  %362 = vmatmul.mubr.f32.gmra.mrb[0].mxu0 %v57
  %v363 = vpop.f32.mrb[0].mxu0
  %v364 = vadd.f32 0.0, %v363
  %v365 = vpop.f32.mrb[0].mxu0
  %366 = vmatprep.mubr.f32.mxu0 0.0
  %367 = vmatmul.mubr.f32.gmra.mrb[0].mxu0 %v58
  %v368 = vpop.f32.mrb[0].mxu0
  %v369 = vadd.f32 0.0, %v368
  %v370 = vpop.f32.mrb[0].mxu0
  %371 = vmatprep.mubr.f32.mxu0 0.0
  %372 = vmatmul.mubr.f32.gmra.mrb[0].mxu0 %v59
  %v373 = vpop.f32.mrb[0].mxu0
  %v374 = vadd.f32 0.0, %v373
  %v375 = vpop.f32.mrb[0].mxu0
  %376 = vmatprep.mubr.f32.mxu0 0.0
  %377 = vmatmul.mubr.f32.gmra.mrb[0].mxu0 %v60
  %v378 = vpop.f32.mrb[0].mxu0
  %v379 = vadd.f32 0.0, %v378
  %v380 = vpop.f32.mrb[0].mxu0
  %381 = vmatprep.mubr.f32.mxu0 0.0
  %382 = vmatmul.mubr.f32.gmra.mrb[0].mxu0 %v61
  %v383 = vpop.f32.mrb[0].mxu0
  %v384 = vadd.f32 0.0, %v383
  %v385 = vpop.f32.mrb[0].mxu0
  %386 = vmatprep.mubr.f32.mxu0 0.0
  %387 = vmatmul.mubr.f32.gmra.mrb[0].mxu0 %v62
  %v388 = vpop.f32.mrb[0].mxu0
  %v389 = vadd.f32 0.0, %v388
  %v390 = vpop.f32.mrb[0].mxu0
  %391 = vmatprep.mubr.f32.mxu0 0.0
  %392 = vmatmul.mubr.f32.gmra.mrb[0].mxu0 %v63
  %v393 = vpop.f32.mrb[0].mxu0
  %v394 = vadd.f32 0.0, %v393
  %v395 = vpop.f32.mrb[0].mxu0
  %396 = vmatprep.mubr.f32.mxu0 0.0
  %397 = vmatmul.mubr.f32.gmra.mrb[0].mxu0 %v64
  %v398 = vpop.f32.mrb[0].mxu0
  %v399 = vadd.f32 0.0, %v398
  %v400 = vpop.f32.mrb[0].mxu0
  %401 = vmatprep.mubr.f32.mxu0 0.0
  %402 = vmatmul.mubr.f32.gmra.mrb[0].mxu0 %v65
  %v403 = vpop.f32.mrb[0].mxu0
  %v404 = vadd.f32 0.0, %v403
  %v405 = vpop.f32.mrb[0].mxu0
  %406 = vmatprep.mubr.f32.mxu0 0.0
  %407 = vmatmul.mubr.f32.gmra.mrb[0].mxu0 %v66
  %v408 = vpop.f32.mrb[0].mxu0
  %v409 = vadd.f32 0.0, %v408
  %v410 = vpop.f32.mrb[0].mxu0
  %411 = vmatprep.mubr.f32.mxu0 0.0
  %412 = vmatmul.mubr.f32.gmra.mrb[0].mxu0 %v67
  %v413 = vpop.f32.mrb[0].mxu0
  %v414 = vadd.f32 0.0, %v413
  %v415 = vpop.f32.mrb[0].mxu0
  %416 = vmatprep.mubr.f32.mxu0 0.0
  %417 = vmatmul.mubr.f32.gmra.mrb[0].mxu0 %v68
  %v418 = vpop.f32.mrb[0].mxu0
  %v419 = vadd.f32 0.0, %v418
  %v420 = vpop.f32.mrb[0].mxu0
  %421 = vmatprep.mubr.f32.mxu0 0.0
  %422 = vmatmul.mubr.f32.gmra.mrb[0].mxu0 %v69
  %v423 = vpop.f32.mrb[0].mxu0
  %v424 = vadd.f32 0.0, %v423
  %v425 = vpop.f32.mrb[0].mxu0
  %426 = vmatprep.mubr.f32.mxu0 0.0
  %427 = vmatmul.mubr.f32.gmra.mrb[0].mxu0 %v70
  %v428 = vpop.f32.mrb[0].mxu0
  %v429 = vadd.f32 0.0, %v428
  %v430 = vpop.f32.mrb[0].mxu0
  %431 = vmatprep.mubr.f32.mxu0 0.0
  %432 = vmatmul.mubr.f32.gmra.mrb[0].mxu0 %v71
  %v433 = vpop.f32.mrb[0].mxu0
  %v434 = vadd.f32 0.0, %v433
  %v435 = vpop.f32.mrb[0].mxu0
  %436 = vmatprep.mubr.f32.mxu0 0.0
  %437 = vmatmul.mubr.f32.gmra.mrb[0].mxu0 %v72
  %v438 = vpop.f32.mrb[0].mxu0
  %v439 = vadd.f32 0.0, %v438
  %v440 = vpop.f32.mrb[0].mxu0
  %441 = vmatprep.mubr.f32.mxu0 0.0
  %442 = vmatmul.mubr.f32.gmra.mrb[0].mxu0 %v73
  %v443 = vpop.f32.mrb[0].mxu0
  %v444 = vadd.f32 0.0, %v443
  %v445 = vpop.f32.mrb[0].mxu0
  %446 = vmatprep.mubr.f32.mxu0 0.0
  %447 = vmatmul.mubr.f32.gmra.mrb[0].mxu0 %v74
  %v448 = vpop.f32.mrb[0].mxu0
  %v449 = vadd.f32 0.0, %v448
  %v450 = vpop.f32.mrb[0].mxu0
  %451 = vmatprep.mubr.f32.mxu0 0.0
  %452 = vmatmul.mubr.f32.gmra.mrb[0].mxu0 %v75
  %v453 = vpop.f32.mrb[0].mxu0
  %v454 = vadd.f32 0.0, %v453
  %v455 = vpop.f32.mrb[0].mxu0
  %456 = vmatprep.mubr.f32.mxu0 0.0
  %457 = vmatmul.mubr.f32.gmra.mrb[0].mxu0 %v76
  %v458 = vpop.f32.mrb[0].mxu0
  %v459 = vadd.f32 0.0, %v458
  %v460 = vpop.f32.mrb[0].mxu0
  %461 = vmatprep.mubr.f32.mxu0 0.0
  %462 = vmatmul.mubr.f32.gmra.mrb[0].mxu0 %v77
  %v463 = vpop.f32.mrb[0].mxu0
  %v464 = vadd.f32 0.0, %v463
  %v465 = vpop.f32.mrb[0].mxu0
  %466 = vmatprep.mubr.f32.mxu0 0.0
  %467 = vmatmul.mubr.f32.gmra.mrb[0].mxu0 %v78
  %v468 = vpop.f32.mrb[0].mxu0
  %v469 = vadd.f32 0.0, %v468
  %v470 = vpop.f32.mrb[0].mxu0
  %471 = vmatprep.mubr.f32.mxu0 0.0
  %472 = vmatmul.mubr.f32.gmra.mrb[0].mxu0 %v79
  %v473 = vpop.f32.mrb[0].mxu0
  %v474 = vadd.f32 0.0, %v473
  %v475 = vpop.f32.mrb[0].mxu0
  %476 = vmatprep.mubr.f32.mxu0 0.0
  %477 = vmatmul.mubr.f32.gmra.mrb[0].mxu0 %v80
  %v478 = vpop.f32.mrb[0].mxu0
  %v479 = vadd.f32 0.0, %v478
  %v480 = vpop.f32.mrb[0].mxu0
  %481 = vdwg.mxu0
  %v482 = vld [vmem:[%s2] sm:$0x1]
  %v483 = vld [vmem:[%s3] sm:$0x1]
  %vm484 = vcmask 130048
  %v485 = vsel %vm484, %v164, 0.0
  %v486 = vsel %vm484, %v169, 0.0
  %v487 = vadd.f32 %v485, %v486
  %v488 = vsel %vm484, %v174, 0.0
  %v489 = vadd.f32 %v487, %v488
  %v490 = vsel %vm484, %v179, 0.0
  %v491 = vadd.f32 %v489, %v490
  %v492 = vsel %vm484, %v184, 0.0
  %v493 = vadd.f32 %v491, %v492
  %v494 = vsel %vm484, %v189, 0.0
  %v495 = vadd.f32 %v493, %v494
  %v496 = vsel %vm484, %v194, 0.0
  %v497 = vadd.f32 %v495, %v496
  %v498 = vsel %vm484, %v199, 0.0
  %v499 = vadd.f32 %v497, %v498
  %v500 = vsel %vm484, %v204, 0.0
  %v501 = vadd.f32 %v499, %v500
  %v502 = vsel %vm484, %v209, 0.0
  %v503 = vadd.f32 %v501, %v502
  %v504 = vsel %vm484, %v214, 0.0
  %v505 = vadd.f32 %v503, %v504
  %v506 = vsel %vm484, %v219, 0.0
  %v507 = vadd.f32 %v505, %v506
  %v508 = vsel %vm484, %v224, 0.0
  %v509 = vadd.f32 %v507, %v508
  %v510 = vsel %vm484, %v229, 0.0
  %v511 = vadd.f32 %v509, %v510
  %v512 = vsel %vm484, %v234, 0.0
  %v513 = vadd.f32 %v511, %v512
  %v514 = vsel %vm484, %v239, 0.0
  %v515 = vadd.f32 %v513, %v514
  %v516 = vsel %vm484, %v244, 0.0
  %v517 = vadd.f32 %v515, %v516
  %v518 = vsel %vm484, %v249, 0.0
  %v519 = vadd.f32 %v517, %v518
  %v520 = vsel %vm484, %v254, 0.0
  %v521 = vadd.f32 %v519, %v520
  %v522 = vsel %vm484, %v259, 0.0
  %v523 = vadd.f32 %v521, %v522
  %v524 = vsel %vm484, %v264, 0.0
  %v525 = vadd.f32 %v523, %v524
  %v526 = vsel %vm484, %v269, 0.0
  %v527 = vadd.f32 %v525, %v526
  %v528 = vsel %vm484, %v274, 0.0
  %v529 = vadd.f32 %v527, %v528
  %v530 = vsel %vm484, %v279, 0.0
  %v531 = vadd.f32 %v529, %v530
  %v532 = vsel %vm484, %v284, 0.0
  %v533 = vadd.f32 %v531, %v532
  %v534 = vsel %vm484, %v289, 0.0
  %v535 = vadd.f32 %v533, %v534
  %v536 = vsel %vm484, %v294, 0.0
  %v537 = vadd.f32 %v535, %v536
  %v538 = vsel %vm484, %v299, 0.0
  %v539 = vadd.f32 %v537, %v538
  %v540 = vsel %vm484, %v304, 0.0
  %v541 = vadd.f32 %v539, %v540
  %v542 = vsel %vm484, %v309, 0.0
  %v543 = vadd.f32 %v541, %v542
  %v544 = vsel %vm484, %v314, 0.0
  %v545 = vadd.f32 %v543, %v544
  %v546 = vsel %vm484, %v319, 0.0
  %v547 = vadd.f32 %v545, %v546
  %v548 = vsel %vm484, %v324, 0.0
  %v549 = vadd.f32 %v547, %v548
  %v550 = vsel %vm484, %v329, 0.0
  %v551 = vadd.f32 %v549, %v550
  %v552 = vsel %vm484, %v334, 0.0
  %v553 = vadd.f32 %v551, %v552
  %v554 = vsel %vm484, %v339, 0.0
  %v555 = vadd.f32 %v553, %v554
  %v556 = vsel %vm484, %v344, 0.0
  %v557 = vadd.f32 %v555, %v556
  %v558 = vsel %vm484, %v349, 0.0
  %v559 = vadd.f32 %v557, %v558
  %v560 = vsel %vm484, %v354, 0.0
  %v561 = vadd.f32 %v559, %v560
  %v562 = vsel %vm484, %v359, 0.0
  %v563 = vadd.f32 %v561, %v562
  %v564 = vsel %vm484, %v364, 0.0
  %v565 = vadd.f32 %v563, %v564
  %v566 = vsel %vm484, %v369, 0.0
  %v567 = vadd.f32 %v565, %v566
  %v568 = vsel %vm484, %v374, 0.0
  %v569 = vadd.f32 %v567, %v568
  %v570 = vsel %vm484, %v379, 0.0
  %v571 = vadd.f32 %v569, %v570
  %v572 = vsel %vm484, %v384, 0.0
  %v573 = vadd.f32 %v571, %v572
  %v574 = vsel %vm484, %v389, 0.0
  %v575 = vadd.f32 %v573, %v574
  %v576 = vsel %vm484, %v394, 0.0
  %v577 = vadd.f32 %v575, %v576
  %v578 = vsel %vm484, %v399, 0.0
  %v579 = vadd.f32 %v577, %v578
  %v580 = vsel %vm484, %v404, 0.0
  %v581 = vadd.f32 %v579, %v580
  %v582 = vsel %vm484, %v409, 0.0
  %v583 = vadd.f32 %v581, %v582
  %v584 = vsel %vm484, %v414, 0.0
  %v585 = vadd.f32 %v583, %v584
  %v586 = vsel %vm484, %v419, 0.0
  %v587 = vadd.f32 %v585, %v586
  %v588 = vsel %vm484, %v424, 0.0
  %v589 = vadd.f32 %v587, %v588
  %v590 = vsel %vm484, %v429, 0.0
  %v591 = vadd.f32 %v589, %v590
  %v592 = vsel %vm484, %v434, 0.0
  %v593 = vadd.f32 %v591, %v592
  %v594 = vsel %vm484, %v439, 0.0
  %v595 = vadd.f32 %v593, %v594
  %v596 = vsel %vm484, %v444, 0.0
  %v597 = vadd.f32 %v595, %v596
  %v598 = vsel %vm484, %v449, 0.0
  %v599 = vadd.f32 %v597, %v598
  %v600 = vsel %vm484, %v454, 0.0
  %v601 = vadd.f32 %v599, %v600
  %v602 = vsel %vm484, %v459, 0.0
  %v603 = vadd.f32 %v601, %v602
  %v604 = vsel %vm484, %v464, 0.0
  %v605 = vadd.f32 %v603, %v604
  %v606 = vsel %vm484, %v469, 0.0
  %v607 = vadd.f32 %v605, %v606
  %v608 = vsel %vm484, %v474, 0.0
  %v609 = vadd.f32 %v607, %v608
  %v610 = vsel %vm484, %v479, 0.0
  %v611 = vadd.f32 %v609, %v610
  %v612 = vrot.slane %v611, 4
  %v613 = vadd.f32 %v611, %v612
  %v614 = vrot.slane %v613, 2
  %v615 = vadd.f32 %v613, %v614
  %v616 = vrot.slane %v615, 1
  %v617 = vadd.f32 %v615, %v616
  %v618 = vrcp.pop 512.0
  %v619 = vmul.f32 %v617, %v618
  %v620 = vmul.f32 %v164, %v164
  %v621 = vmul.f32 %v169, %v169
  %v622 = vmul.f32 %v174, %v174
  %v623 = vmul.f32 %v179, %v179
  %v624 = vmul.f32 %v184, %v184
  %v625 = vmul.f32 %v189, %v189
  %v626 = vmul.f32 %v194, %v194
  %v627 = vmul.f32 %v199, %v199
  %v628 = vmul.f32 %v204, %v204
  %v629 = vmul.f32 %v209, %v209
  %v630 = vmul.f32 %v214, %v214
  %v631 = vmul.f32 %v219, %v219
  %v632 = vmul.f32 %v224, %v224
  %v633 = vmul.f32 %v229, %v229
  %v634 = vmul.f32 %v234, %v234
  %v635 = vmul.f32 %v239, %v239
  %v636 = vmul.f32 %v244, %v244
  %v637 = vmul.f32 %v249, %v249
  %v638 = vmul.f32 %v254, %v254
  %v639 = vmul.f32 %v259, %v259
  %v640 = vmul.f32 %v264, %v264
  %v641 = vmul.f32 %v269, %v269
  %v642 = vmul.f32 %v274, %v274
  %v643 = vmul.f32 %v279, %v279
  %v644 = vmul.f32 %v284, %v284
  %v645 = vmul.f32 %v289, %v289
  %v646 = vmul.f32 %v294, %v294
  %v647 = vmul.f32 %v299, %v299
  %v648 = vmul.f32 %v304, %v304
  %v649 = vmul.f32 %v309, %v309
  %v650 = vmul.f32 %v314, %v314
  %v651 = vmul.f32 %v319, %v319
  %v652 = vmul.f32 %v324, %v324
  %v653 = vmul.f32 %v329, %v329
  %v654 = vmul.f32 %v334, %v334
  %v655 = vmul.f32 %v339, %v339
  %v656 = vmul.f32 %v344, %v344
  %v657 = vmul.f32 %v349, %v349
  %v658 = vmul.f32 %v354, %v354
  %v659 = vmul.f32 %v359, %v359
  %v660 = vmul.f32 %v364, %v364
  %v661 = vmul.f32 %v369, %v369
  %v662 = vmul.f32 %v374, %v374
  %v663 = vmul.f32 %v379, %v379
  %v664 = vmul.f32 %v384, %v384
  %v665 = vmul.f32 %v389, %v389
  %v666 = vmul.f32 %v394, %v394
  %v667 = vmul.f32 %v399, %v399
  %v668 = vmul.f32 %v404, %v404
  %v669 = vmul.f32 %v409, %v409
  %v670 = vmul.f32 %v414, %v414
  %v671 = vmul.f32 %v419, %v419
  %v672 = vmul.f32 %v424, %v424
  %v673 = vmul.f32 %v429, %v429
  %v674 = vmul.f32 %v434, %v434
  %v675 = vmul.f32 %v439, %v439
  %v676 = vmul.f32 %v444, %v444
  %v677 = vmul.f32 %v449, %v449
  %v678 = vmul.f32 %v454, %v454
  %v679 = vmul.f32 %v459, %v459
  %v680 = vmul.f32 %v464, %v464
  %v681 = vmul.f32 %v469, %v469
  %v682 = vmul.f32 %v474, %v474
  %v683 = vmul.f32 %v479, %v479
  %v684 = vsel %vm484, %v620, 0.0
  %v685 = vsel %vm484, %v621, 0.0
  %v686 = vadd.f32 %v684, %v685
  %v687 = vsel %vm484, %v622, 0.0
  %v688 = vadd.f32 %v686, %v687
  %v689 = vsel %vm484, %v623, 0.0
  %v690 = vadd.f32 %v688, %v689
  %v691 = vsel %vm484, %v624, 0.0
  %v692 = vadd.f32 %v690, %v691
  %v693 = vsel %vm484, %v625, 0.0
  %v694 = vadd.f32 %v692, %v693
  %v695 = vsel %vm484, %v626, 0.0
  %v696 = vadd.f32 %v694, %v695
  %v697 = vsel %vm484, %v627, 0.0
  %v698 = vadd.f32 %v696, %v697
  %v699 = vsel %vm484, %v628, 0.0
  %v700 = vadd.f32 %v698, %v699
  %v701 = vsel %vm484, %v629, 0.0
  %v702 = vadd.f32 %v700, %v701
  %v703 = vsel %vm484, %v630, 0.0
  %v704 = vadd.f32 %v702, %v703
  %v705 = vsel %vm484, %v631, 0.0
  %v706 = vadd.f32 %v704, %v705
  %v707 = vsel %vm484, %v632, 0.0
  %v708 = vadd.f32 %v706, %v707
  %v709 = vsel %vm484, %v633, 0.0
  %v710 = vadd.f32 %v708, %v709
  %v711 = vsel %vm484, %v634, 0.0
  %v712 = vadd.f32 %v710, %v711
  %v713 = vsel %vm484, %v635, 0.0
  %v714 = vadd.f32 %v712, %v713
  %v715 = vsel %vm484, %v636, 0.0
  %v716 = vadd.f32 %v714, %v715
  %v717 = vsel %vm484, %v637, 0.0
  %v718 = vadd.f32 %v716, %v717
  %v719 = vsel %vm484, %v638, 0.0
  %v720 = vadd.f32 %v718, %v719
  %v721 = vsel %vm484, %v639, 0.0
  %v722 = vadd.f32 %v720, %v721
  %v723 = vsel %vm484, %v640, 0.0
  %v724 = vadd.f32 %v722, %v723
  %v725 = vsel %vm484, %v641, 0.0
  %v726 = vadd.f32 %v724, %v725
  %v727 = vsel %vm484, %v642, 0.0
  %v728 = vadd.f32 %v726, %v727
  %v729 = vsel %vm484, %v643, 0.0
  %v730 = vadd.f32 %v728, %v729
  %v731 = vsel %vm484, %v644, 0.0
  %v732 = vadd.f32 %v730, %v731
  %v733 = vsel %vm484, %v645, 0.0
  %v734 = vadd.f32 %v732, %v733
  %v735 = vsel %vm484, %v646, 0.0
  %v736 = vadd.f32 %v734, %v735
  %v737 = vsel %vm484, %v647, 0.0
  %v738 = vadd.f32 %v736, %v737
  %v739 = vsel %vm484, %v648, 0.0
  %v740 = vadd.f32 %v738, %v739
  %v741 = vsel %vm484, %v649, 0.0
  %v742 = vadd.f32 %v740, %v741
  %v743 = vsel %vm484, %v650, 0.0
  %v744 = vadd.f32 %v742, %v743
  %v745 = vsel %vm484, %v651, 0.0
  %v746 = vadd.f32 %v744, %v745
  %v747 = vsel %vm484, %v652, 0.0
  %v748 = vadd.f32 %v746, %v747
  %v749 = vsel %vm484, %v653, 0.0
  %v750 = vadd.f32 %v748, %v749
  %v751 = vsel %vm484, %v654, 0.0
  %v752 = vadd.f32 %v750, %v751
  %v753 = vsel %vm484, %v655, 0.0
  %v754 = vadd.f32 %v752, %v753
  %v755 = vsel %vm484, %v656, 0.0
  %v756 = vadd.f32 %v754, %v755
  %v757 = vsel %vm484, %v657, 0.0
  %v758 = vadd.f32 %v756, %v757
  %v759 = vsel %vm484, %v658, 0.0
  %v760 = vadd.f32 %v758, %v759
  %v761 = vsel %vm484, %v659, 0.0
  %v762 = vadd.f32 %v760, %v761
  %v763 = vsel %vm484, %v660, 0.0
  %v764 = vadd.f32 %v762, %v763
  %v765 = vsel %vm484, %v661, 0.0
  %v766 = vadd.f32 %v764, %v765
  %v767 = vsel %vm484, %v662, 0.0
  %v768 = vadd.f32 %v766, %v767
  %v769 = vsel %vm484, %v663, 0.0
  %v770 = vadd.f32 %v768, %v769
  %v771 = vsel %vm484, %v664, 0.0
  %v772 = vadd.f32 %v770, %v771
  %v773 = vsel %vm484, %v665, 0.0
  %v774 = vadd.f32 %v772, %v773
  %v775 = vsel %vm484, %v666, 0.0
  %v776 = vadd.f32 %v774, %v775
  %v777 = vsel %vm484, %v667, 0.0
  %v778 = vadd.f32 %v776, %v777
  %v779 = vsel %vm484, %v668, 0.0
  %v780 = vadd.f32 %v778, %v779
  %v781 = vsel %vm484, %v669, 0.0
  %v782 = vadd.f32 %v780, %v781
  %v783 = vsel %vm484, %v670, 0.0
  %v784 = vadd.f32 %v782, %v783
  %v785 = vsel %vm484, %v671, 0.0
  %v786 = vadd.f32 %v784, %v785
  %v787 = vsel %vm484, %v672, 0.0
  %v788 = vadd.f32 %v786, %v787
  %v789 = vsel %vm484, %v673, 0.0
  %v790 = vadd.f32 %v788, %v789
  %v791 = vsel %vm484, %v674, 0.0
  %v792 = vadd.f32 %v790, %v791
  %v793 = vsel %vm484, %v675, 0.0
  %v794 = vadd.f32 %v792, %v793
  %v795 = vsel %vm484, %v676, 0.0
  %v796 = vadd.f32 %v794, %v795
  %v797 = vsel %vm484, %v677, 0.0
  %v798 = vadd.f32 %v796, %v797
  %v799 = vsel %vm484, %v678, 0.0
  %v800 = vadd.f32 %v798, %v799
  %v801 = vsel %vm484, %v679, 0.0
  %v802 = vadd.f32 %v800, %v801
  %v803 = vsel %vm484, %v680, 0.0
  %v804 = vadd.f32 %v802, %v803
  %v805 = vsel %vm484, %v681, 0.0
  %v806 = vadd.f32 %v804, %v805
  %v807 = vsel %vm484, %v682, 0.0
  %v808 = vadd.f32 %v806, %v807
  %v809 = vsel %vm484, %v683, 0.0
  %v810 = vadd.f32 %v808, %v809
  %v811 = vrot.slane %v810, 4
  %v812 = vadd.f32 %v810, %v811
  %v813 = vrot.slane %v812, 2
  %v814 = vadd.f32 %v812, %v813
  %v815 = vrot.slane %v814, 1
  %v816 = vadd.f32 %v814, %v815
  %v817 = vmul.f32 %v816, %v618
  %v818 = vmul.f32 %v619, %v619
  %v819 = vsub.f32 %v817, %v818
  %v820 = vadd.f32 %v819, 1e-05
  %v821 = vrsqrt.pop %v820
  %v822 = vmul.f32 %v482, %v821
  %v823 = vmul.f32 %v619, %v822
  %v824 = vsub.f32 %v483, %v823
  %v826 = vlaneseq
  %v827 = vshrl.u32 %v826, 7
  %v828 = vsub.s32 0, %v827
  %v829 = vrot.slane %v822, %v828
  %v831 = vmul.f32 %v164, %v829
  %v832 = vmul.f32 %v169, %v829
  %v833 = vmul.f32 %v174, %v829
  %v834 = vmul.f32 %v179, %v829
  %v835 = vmul.f32 %v184, %v829
  %v836 = vmul.f32 %v189, %v829
  %v837 = vmul.f32 %v194, %v829
  %v838 = vmul.f32 %v199, %v829
  %v839 = vmul.f32 %v204, %v829
  %v840 = vmul.f32 %v209, %v829
  %v841 = vmul.f32 %v214, %v829
  %v842 = vmul.f32 %v219, %v829
  %v843 = vmul.f32 %v224, %v829
  %v844 = vmul.f32 %v229, %v829
  %v845 = vmul.f32 %v234, %v829
  %v846 = vmul.f32 %v239, %v829
  %v847 = vmul.f32 %v244, %v829
  %v848 = vmul.f32 %v249, %v829
  %v849 = vmul.f32 %v254, %v829
  %v850 = vmul.f32 %v259, %v829
  %v851 = vmul.f32 %v264, %v829
  %v852 = vmul.f32 %v269, %v829
  %v853 = vmul.f32 %v274, %v829
  %v854 = vmul.f32 %v279, %v829
  %v855 = vmul.f32 %v284, %v829
  %v856 = vmul.f32 %v289, %v829
  %v857 = vmul.f32 %v294, %v829
  %v858 = vmul.f32 %v299, %v829
  %v859 = vmul.f32 %v304, %v829
  %v860 = vmul.f32 %v309, %v829
  %v861 = vmul.f32 %v314, %v829
  %v862 = vmul.f32 %v319, %v829
  %v863 = vmul.f32 %v324, %v829
  %v864 = vmul.f32 %v329, %v829
  %v865 = vmul.f32 %v334, %v829
  %v866 = vmul.f32 %v339, %v829
  %v867 = vmul.f32 %v344, %v829
  %v868 = vmul.f32 %v349, %v829
  %v869 = vmul.f32 %v354, %v829
  %v870 = vmul.f32 %v359, %v829
  %v871 = vmul.f32 %v364, %v829
  %v872 = vmul.f32 %v369, %v829
  %v873 = vmul.f32 %v374, %v829
  %v874 = vmul.f32 %v379, %v829
  %v875 = vmul.f32 %v384, %v829
  %v876 = vmul.f32 %v389, %v829
  %v877 = vmul.f32 %v394, %v829
  %v878 = vmul.f32 %v399, %v829
  %v879 = vmul.f32 %v404, %v829
  %v880 = vmul.f32 %v409, %v829
  %v881 = vmul.f32 %v414, %v829
  %v882 = vmul.f32 %v419, %v829
  %v883 = vmul.f32 %v424, %v829
  %v884 = vmul.f32 %v429, %v829
  %v885 = vmul.f32 %v434, %v829
  %v886 = vmul.f32 %v439, %v829
  %v887 = vmul.f32 %v444, %v829
  %v888 = vmul.f32 %v449, %v829
  %v889 = vmul.f32 %v454, %v829
  %v890 = vmul.f32 %v459, %v829
  %v891 = vmul.f32 %v464, %v829
  %v892 = vmul.f32 %v469, %v829
  %v893 = vmul.f32 %v474, %v829
  %v894 = vmul.f32 %v479, %v829
  %v896 = vlaneseq
  %v897 = vshrl.u32 %v896, 7
  %v898 = vsub.s32 0, %v897
  %v899 = vrot.slane %v824, %v898
  %v901 = vadd.f32 %v831, %v899
  %v902 = vadd.f32 %v832, %v899
  %v903 = vadd.f32 %v833, %v899
  %v904 = vadd.f32 %v834, %v899
  %v905 = vadd.f32 %v835, %v899
  %v906 = vadd.f32 %v836, %v899
  %v907 = vadd.f32 %v837, %v899
  %v908 = vadd.f32 %v838, %v899
  %v909 = vadd.f32 %v839, %v899
  %v910 = vadd.f32 %v840, %v899
  %v911 = vadd.f32 %v841, %v899
  %v912 = vadd.f32 %v842, %v899
  %v913 = vadd.f32 %v843, %v899
  %v914 = vadd.f32 %v844, %v899
  %v915 = vadd.f32 %v845, %v899
  %v916 = vadd.f32 %v846, %v899
  %v917 = vadd.f32 %v847, %v899
  %v918 = vadd.f32 %v848, %v899
  %v919 = vadd.f32 %v849, %v899
  %v920 = vadd.f32 %v850, %v899
  %v921 = vadd.f32 %v851, %v899
  %v922 = vadd.f32 %v852, %v899
  %v923 = vadd.f32 %v853, %v899
  %v924 = vadd.f32 %v854, %v899
  %v925 = vadd.f32 %v855, %v899
  %v926 = vadd.f32 %v856, %v899
  %v927 = vadd.f32 %v857, %v899
  %v928 = vadd.f32 %v858, %v899
  %v929 = vadd.f32 %v859, %v899
  %v930 = vadd.f32 %v860, %v899
  %v931 = vadd.f32 %v861, %v899
  %v932 = vadd.f32 %v862, %v899
  %v933 = vadd.f32 %v863, %v899
  %v934 = vadd.f32 %v864, %v899
  %v935 = vadd.f32 %v865, %v899
  %v936 = vadd.f32 %v866, %v899
  %v937 = vadd.f32 %v867, %v899
  %v938 = vadd.f32 %v868, %v899
  %v939 = vadd.f32 %v869, %v899
  %v940 = vadd.f32 %v870, %v899
  %v941 = vadd.f32 %v871, %v899
  %v942 = vadd.f32 %v872, %v899
  %v943 = vadd.f32 %v873, %v899
  %v944 = vadd.f32 %v874, %v899
  %v945 = vadd.f32 %v875, %v899
  %v946 = vadd.f32 %v876, %v899
  %v947 = vadd.f32 %v877, %v899
  %v948 = vadd.f32 %v878, %v899
  %v949 = vadd.f32 %v879, %v899
  %v950 = vadd.f32 %v880, %v899
  %v951 = vadd.f32 %v881, %v899
  %v952 = vadd.f32 %v882, %v899
  %v953 = vadd.f32 %v883, %v899
  %v954 = vadd.f32 %v884, %v899
  %v955 = vadd.f32 %v885, %v899
  %v956 = vadd.f32 %v886, %v899
  %v957 = vadd.f32 %v887, %v899
  %v958 = vadd.f32 %v888, %v899
  %v959 = vadd.f32 %v889, %v899
  %v960 = vadd.f32 %v890, %v899
  %v961 = vadd.f32 %v891, %v899
  %v962 = vadd.f32 %v892, %v899
  %v963 = vadd.f32 %v893, %v899
  %v964 = vadd.f32 %v894, %v899
  %vm965 = vcmp.ge.f32.partialorder %v901, 0.0
  %vm966 = vcmp.ge.f32.partialorder %v902, 0.0
  %vm967 = vcmp.ge.f32.partialorder %v903, 0.0
  %vm968 = vcmp.ge.f32.partialorder %v904, 0.0
  %vm969 = vcmp.ge.f32.partialorder %v905, 0.0
  %vm970 = vcmp.ge.f32.partialorder %v906, 0.0
  %vm971 = vcmp.ge.f32.partialorder %v907, 0.0
  %vm972 = vcmp.ge.f32.partialorder %v908, 0.0
  %vm973 = vcmp.ge.f32.partialorder %v909, 0.0
  %vm974 = vcmp.ge.f32.partialorder %v910, 0.0
  %vm975 = vcmp.ge.f32.partialorder %v911, 0.0
  %vm976 = vcmp.ge.f32.partialorder %v912, 0.0
  %vm977 = vcmp.ge.f32.partialorder %v913, 0.0
  %vm978 = vcmp.ge.f32.partialorder %v914, 0.0
  %vm979 = vcmp.ge.f32.partialorder %v915, 0.0
  %vm980 = vcmp.ge.f32.partialorder %v916, 0.0
  %vm981 = vcmp.ge.f32.partialorder %v917, 0.0
  %vm982 = vcmp.ge.f32.partialorder %v918, 0.0
  %vm983 = vcmp.ge.f32.partialorder %v919, 0.0
  %vm984 = vcmp.ge.f32.partialorder %v920, 0.0
  %vm985 = vcmp.ge.f32.partialorder %v921, 0.0
  %vm986 = vcmp.ge.f32.partialorder %v922, 0.0
  %vm987 = vcmp.ge.f32.partialorder %v923, 0.0
  %vm988 = vcmp.ge.f32.partialorder %v924, 0.0
  %vm989 = vcmp.ge.f32.partialorder %v925, 0.0
  %vm990 = vcmp.ge.f32.partialorder %v926, 0.0
  %vm991 = vcmp.ge.f32.partialorder %v927, 0.0
  %vm992 = vcmp.ge.f32.partialorder %v928, 0.0
  %vm993 = vcmp.ge.f32.partialorder %v929, 0.0
  %vm994 = vcmp.ge.f32.partialorder %v930, 0.0
  %vm995 = vcmp.ge.f32.partialorder %v931, 0.0
  %vm996 = vcmp.ge.f32.partialorder %v932, 0.0
  %vm997 = vcmp.ge.f32.partialorder %v933, 0.0
  %vm998 = vcmp.ge.f32.partialorder %v934, 0.0
  %vm999 = vcmp.ge.f32.partialorder %v935, 0.0
  %vm1000 = vcmp.ge.f32.partialorder %v936, 0.0
  %vm1001 = vcmp.ge.f32.partialorder %v937, 0.0
  %vm1002 = vcmp.ge.f32.partialorder %v938, 0.0
  %vm1003 = vcmp.ge.f32.partialorder %v939, 0.0
  %vm1004 = vcmp.ge.f32.partialorder %v940, 0.0
  %vm1005 = vcmp.ge.f32.partialorder %v941, 0.0
  %vm1006 = vcmp.ge.f32.partialorder %v942, 0.0
  %vm1007 = vcmp.ge.f32.partialorder %v943, 0.0
  %vm1008 = vcmp.ge.f32.partialorder %v944, 0.0
  %vm1009 = vcmp.ge.f32.partialorder %v945, 0.0
  %vm1010 = vcmp.ge.f32.partialorder %v946, 0.0
  %vm1011 = vcmp.ge.f32.partialorder %v947, 0.0
  %vm1012 = vcmp.ge.f32.partialorder %v948, 0.0
  %vm1013 = vcmp.ge.f32.partialorder %v949, 0.0
  %vm1014 = vcmp.ge.f32.partialorder %v950, 0.0
  %vm1015 = vcmp.ge.f32.partialorder %v951, 0.0
  %vm1016 = vcmp.ge.f32.partialorder %v952, 0.0
  %vm1017 = vcmp.ge.f32.partialorder %v953, 0.0
  %vm1018 = vcmp.ge.f32.partialorder %v954, 0.0
  %vm1019 = vcmp.ge.f32.partialorder %v955, 0.0
  %vm1020 = vcmp.ge.f32.partialorder %v956, 0.0
  %vm1021 = vcmp.ge.f32.partialorder %v957, 0.0
  %vm1022 = vcmp.ge.f32.partialorder %v958, 0.0
  %vm1023 = vcmp.ge.f32.partialorder %v959, 0.0
  %vm1024 = vcmp.ge.f32.partialorder %v960, 0.0
  %vm1025 = vcmp.ge.f32.partialorder %v961, 0.0
  %vm1026 = vcmp.ge.f32.partialorder %v962, 0.0
  %vm1027 = vcmp.ge.f32.partialorder %v963, 0.0
  %vm1028 = vcmp.ge.f32.partialorder %v964, 0.0
  %v1029 = vmul.f32 %v901, 0.2
  %v1030 = vmul.f32 %v902, 0.2
  %v1031 = vmul.f32 %v903, 0.2
  %v1032 = vmul.f32 %v904, 0.2
  %v1033 = vmul.f32 %v905, 0.2
  %v1034 = vmul.f32 %v906, 0.2
  %v1035 = vmul.f32 %v907, 0.2
  %v1036 = vmul.f32 %v908, 0.2
  %v1037 = vmul.f32 %v909, 0.2
  %v1038 = vmul.f32 %v910, 0.2
  %v1039 = vmul.f32 %v911, 0.2
  %v1040 = vmul.f32 %v912, 0.2
  %v1041 = vmul.f32 %v913, 0.2
  %v1042 = vmul.f32 %v914, 0.2
  %v1043 = vmul.f32 %v915, 0.2
  %v1044 = vmul.f32 %v916, 0.2
  %v1045 = vmul.f32 %v917, 0.2
  %v1046 = vmul.f32 %v918, 0.2
  %v1047 = vmul.f32 %v919, 0.2
  %v1048 = vmul.f32 %v920, 0.2
  %v1049 = vmul.f32 %v921, 0.2
  %v1050 = vmul.f32 %v922, 0.2
  %v1051 = vmul.f32 %v923, 0.2
  %v1052 = vmul.f32 %v924, 0.2
  %v1053 = vmul.f32 %v925, 0.2
  %v1054 = vmul.f32 %v926, 0.2
  %v1055 = vmul.f32 %v927, 0.2
  %v1056 = vmul.f32 %v928, 0.2
  %v1057 = vmul.f32 %v929, 0.2
  %v1058 = vmul.f32 %v930, 0.2
  %v1059 = vmul.f32 %v931, 0.2
  %v1060 = vmul.f32 %v932, 0.2
  %v1061 = vmul.f32 %v933, 0.2
  %v1062 = vmul.f32 %v934, 0.2
  %v1063 = vmul.f32 %v935, 0.2
  %v1064 = vmul.f32 %v936, 0.2
  %v1065 = vmul.f32 %v937, 0.2
  %v1066 = vmul.f32 %v938, 0.2
  %v1067 = vmul.f32 %v939, 0.2
  %v1068 = vmul.f32 %v940, 0.2
  %v1069 = vmul.f32 %v941, 0.2
  %v1070 = vmul.f32 %v942, 0.2
  %v1071 = vmul.f32 %v943, 0.2
  %v1072 = vmul.f32 %v944, 0.2
  %v1073 = vmul.f32 %v945, 0.2
  %v1074 = vmul.f32 %v946, 0.2
  %v1075 = vmul.f32 %v947, 0.2
  %v1076 = vmul.f32 %v948, 0.2
  %v1077 = vmul.f32 %v949, 0.2
  %v1078 = vmul.f32 %v950, 0.2
  %v1079 = vmul.f32 %v951, 0.2
  %v1080 = vmul.f32 %v952, 0.2
  %v1081 = vmul.f32 %v953, 0.2
  %v1082 = vmul.f32 %v954, 0.2
  %v1083 = vmul.f32 %v955, 0.2
  %v1084 = vmul.f32 %v956, 0.2
  %v1085 = vmul.f32 %v957, 0.2
  %v1086 = vmul.f32 %v958, 0.2
  %v1087 = vmul.f32 %v959, 0.2
  %v1088 = vmul.f32 %v960, 0.2
  %v1089 = vmul.f32 %v961, 0.2
  %v1090 = vmul.f32 %v962, 0.2
  %v1091 = vmul.f32 %v963, 0.2
  %v1092 = vmul.f32 %v964, 0.2
  %v1093 = vsel %vm965, %v901, %v1029
  %v1094 = vsel %vm966, %v902, %v1030
  %v1095 = vsel %vm967, %v903, %v1031
  %v1096 = vsel %vm968, %v904, %v1032
  %v1097 = vsel %vm969, %v905, %v1033
  %v1098 = vsel %vm970, %v906, %v1034
  %v1099 = vsel %vm971, %v907, %v1035
  %v1100 = vsel %vm972, %v908, %v1036
  %v1101 = vsel %vm973, %v909, %v1037
  %v1102 = vsel %vm974, %v910, %v1038
  %v1103 = vsel %vm975, %v911, %v1039
  %v1104 = vsel %vm976, %v912, %v1040
  %v1105 = vsel %vm977, %v913, %v1041
  %v1106 = vsel %vm978, %v914, %v1042
  %v1107 = vsel %vm979, %v915, %v1043
  %v1108 = vsel %vm980, %v916, %v1044
  %v1109 = vsel %vm981, %v917, %v1045
  %v1110 = vsel %vm982, %v918, %v1046
  %v1111 = vsel %vm983, %v919, %v1047
  %v1112 = vsel %vm984, %v920, %v1048
  %v1113 = vsel %vm985, %v921, %v1049
  %v1114 = vsel %vm986, %v922, %v1050
  %v1115 = vsel %vm987, %v923, %v1051
  %v1116 = vsel %vm988, %v924, %v1052
  %v1117 = vsel %vm989, %v925, %v1053
  %v1118 = vsel %vm990, %v926, %v1054
  %v1119 = vsel %vm991, %v927, %v1055
  %v1120 = vsel %vm992, %v928, %v1056
  %v1121 = vsel %vm993, %v929, %v1057
  %v1122 = vsel %vm994, %v930, %v1058
  %v1123 = vsel %vm995, %v931, %v1059
  %v1124 = vsel %vm996, %v932, %v1060
  %v1125 = vsel %vm997, %v933, %v1061
  %v1126 = vsel %vm998, %v934, %v1062
  %v1127 = vsel %vm999, %v935, %v1063
  %v1128 = vsel %vm1000, %v936, %v1064
  %v1129 = vsel %vm1001, %v937, %v1065
  %v1130 = vsel %vm1002, %v938, %v1066
  %v1131 = vsel %vm1003, %v939, %v1067
  %v1132 = vsel %vm1004, %v940, %v1068
  %v1133 = vsel %vm1005, %v941, %v1069
  %v1134 = vsel %vm1006, %v942, %v1070
  %v1135 = vsel %vm1007, %v943, %v1071
  %v1136 = vsel %vm1008, %v944, %v1072
  %v1137 = vsel %vm1009, %v945, %v1073
  %v1138 = vsel %vm1010, %v946, %v1074
  %v1139 = vsel %vm1011, %v947, %v1075
  %v1140 = vsel %vm1012, %v948, %v1076
  %v1141 = vsel %vm1013, %v949, %v1077
  %v1142 = vsel %vm1014, %v950, %v1078
  %v1143 = vsel %vm1015, %v951, %v1079
  %v1144 = vsel %vm1016, %v952, %v1080
  %v1145 = vsel %vm1017, %v953, %v1081
  %v1146 = vsel %vm1018, %v954, %v1082
  %v1147 = vsel %vm1019, %v955, %v1083
  %v1148 = vsel %vm1020, %v956, %v1084
  %v1149 = vsel %vm1021, %v957, %v1085
  %v1150 = vsel %vm1022, %v958, %v1086
  %v1151 = vsel %vm1023, %v959, %v1087
  %v1152 = vsel %vm1024, %v960, %v1088
  %v1153 = vsel %vm1025, %v961, %v1089
  %v1154 = vsel %vm1026, %v962, %v1090
  %v1155 = vsel %vm1027, %v963, %v1091
  %v1156 = vsel %vm1028, %v964, %v1092
  %1157 = vst.msk [vmem:[%s4] sm:$0xff] %vm484, %v1093
  %1158 = vst.msk [vmem:[%s4 + $0x8] sm:$0xff] %vm484, %v1094
  %1159 = vst.msk [vmem:[%s4 + $0x10] sm:$0xff] %vm484, %v1095
  %1160 = vst.msk [vmem:[%s4 + $0x18] sm:$0xff] %vm484, %v1096
  %1161 = vst.msk [vmem:[%s4 + $0x20] sm:$0xff] %vm484, %v1097
  %1162 = vst.msk [vmem:[%s4 + $0x28] sm:$0xff] %vm484, %v1098
  %1163 = vst.msk [vmem:[%s4 + $0x30] sm:$0xff] %vm484, %v1099
  %1164 = vst.msk [vmem:[%s4 + $0x38] sm:$0xff] %vm484, %v1100
  %1165 = vst.msk [vmem:[%s4 + $0x40] sm:$0xff] %vm484, %v1101
  %1166 = vst.msk [vmem:[%s4 + $0x48] sm:$0xff] %vm484, %v1102
  %1167 = vst.msk [vmem:[%s4 + $0x50] sm:$0xff] %vm484, %v1103
  %1168 = vst.msk [vmem:[%s4 + $0x58] sm:$0xff] %vm484, %v1104
  %1169 = vst.msk [vmem:[%s4 + $0x60] sm:$0xff] %vm484, %v1105
  %1170 = vst.msk [vmem:[%s4 + $0x68] sm:$0xff] %vm484, %v1106
  %1171 = vst.msk [vmem:[%s4 + $0x70] sm:$0xff] %vm484, %v1107
  %1172 = vst.msk [vmem:[%s4 + $0x78] sm:$0xff] %vm484, %v1108
  %1173 = vst.msk [vmem:[%s4 + $0x80] sm:$0xff] %vm484, %v1109
  %1174 = vst.msk [vmem:[%s4 + $0x88] sm:$0xff] %vm484, %v1110
  %1175 = vst.msk [vmem:[%s4 + $0x90] sm:$0xff] %vm484, %v1111
  %1176 = vst.msk [vmem:[%s4 + $0x98] sm:$0xff] %vm484, %v1112
  %1177 = vst.msk [vmem:[%s4 + $0xa0] sm:$0xff] %vm484, %v1113
  %1178 = vst.msk [vmem:[%s4 + $0xa8] sm:$0xff] %vm484, %v1114
  %1179 = vst.msk [vmem:[%s4 + $0xb0] sm:$0xff] %vm484, %v1115
  %1180 = vst.msk [vmem:[%s4 + $0xb8] sm:$0xff] %vm484, %v1116
  %1181 = vst.msk [vmem:[%s4 + $0xc0] sm:$0xff] %vm484, %v1117
  %1182 = vst.msk [vmem:[%s4 + $0xc8] sm:$0xff] %vm484, %v1118
  %1183 = vst.msk [vmem:[%s4 + $0xd0] sm:$0xff] %vm484, %v1119
  %1184 = vst.msk [vmem:[%s4 + $0xd8] sm:$0xff] %vm484, %v1120
  %1185 = vst.msk [vmem:[%s4 + $0xe0] sm:$0xff] %vm484, %v1121
  %1186 = vst.msk [vmem:[%s4 + $0xe8] sm:$0xff] %vm484, %v1122
  %1187 = vst.msk [vmem:[%s4 + $0xf0] sm:$0xff] %vm484, %v1123
  %1188 = vst.msk [vmem:[%s4 + $0xf8] sm:$0xff] %vm484, %v1124
  %1189 = vst.msk [vmem:[%s4 + $0x100] sm:$0xff] %vm484, %v1125
  %1190 = vst.msk [vmem:[%s4 + $0x108] sm:$0xff] %vm484, %v1126
  %1191 = vst.msk [vmem:[%s4 + $0x110] sm:$0xff] %vm484, %v1127
  %1192 = vst.msk [vmem:[%s4 + $0x118] sm:$0xff] %vm484, %v1128
  %1193 = vst.msk [vmem:[%s4 + $0x120] sm:$0xff] %vm484, %v1129
  %1194 = vst.msk [vmem:[%s4 + $0x128] sm:$0xff] %vm484, %v1130
  %1195 = vst.msk [vmem:[%s4 + $0x130] sm:$0xff] %vm484, %v1131
  %1196 = vst.msk [vmem:[%s4 + $0x138] sm:$0xff] %vm484, %v1132
  %1197 = vst.msk [vmem:[%s4 + $0x140] sm:$0xff] %vm484, %v1133
  %1198 = vst.msk [vmem:[%s4 + $0x148] sm:$0xff] %vm484, %v1134
  %1199 = vst.msk [vmem:[%s4 + $0x150] sm:$0xff] %vm484, %v1135
  %1200 = vst.msk [vmem:[%s4 + $0x158] sm:$0xff] %vm484, %v1136
  %1201 = vst.msk [vmem:[%s4 + $0x160] sm:$0xff] %vm484, %v1137
  %1202 = vst.msk [vmem:[%s4 + $0x168] sm:$0xff] %vm484, %v1138
  %1203 = vst.msk [vmem:[%s4 + $0x170] sm:$0xff] %vm484, %v1139
  %1204 = vst.msk [vmem:[%s4 + $0x178] sm:$0xff] %vm484, %v1140
  %1205 = vst.msk [vmem:[%s4 + $0x180] sm:$0xff] %vm484, %v1141
  %1206 = vst.msk [vmem:[%s4 + $0x188] sm:$0xff] %vm484, %v1142
  %1207 = vst.msk [vmem:[%s4 + $0x190] sm:$0xff] %vm484, %v1143
  %1208 = vst.msk [vmem:[%s4 + $0x198] sm:$0xff] %vm484, %v1144
  %1209 = vst.msk [vmem:[%s4 + $0x1a0] sm:$0xff] %vm484, %v1145
  %1210 = vst.msk [vmem:[%s4 + $0x1a8] sm:$0xff] %vm484, %v1146
  %1211 = vst.msk [vmem:[%s4 + $0x1b0] sm:$0xff] %vm484, %v1147
  %1212 = vst.msk [vmem:[%s4 + $0x1b8] sm:$0xff] %vm484, %v1148
  %1213 = vst.msk [vmem:[%s4 + $0x1c0] sm:$0xff] %vm484, %v1149
  %1214 = vst.msk [vmem:[%s4 + $0x1c8] sm:$0xff] %vm484, %v1150
  %1215 = vst.msk [vmem:[%s4 + $0x1d0] sm:$0xff] %vm484, %v1151
  %1216 = vst.msk [vmem:[%s4 + $0x1d8] sm:$0xff] %vm484, %v1152
  %1217 = vst.msk [vmem:[%s4 + $0x1e0] sm:$0xff] %vm484, %v1153
  %1218 = vst.msk [vmem:[%s4 + $0x1e8] sm:$0xff] %vm484, %v1154
  %1219 = vst.msk [vmem:[%s4 + $0x1f0] sm:$0xff] %vm484, %v1155
  %1220 = vst.msk [vmem:[%s4 + $0x1f8] sm:$0xff] %vm484, %v1156
  // Predicated region
  $region18: #{bayes_discriminator_forward.5} parent=0 // pred_check
    _
  $region19: #{bayes_discriminator_forward.5} parent=0 // pred_check_branch
    %1222 = sbr.rel (0) target = $region21
  $region20: #{bayes_discriminator_forward.5} parent=0 // pred_region
    _
  $region21: #{bayes_discriminator_forward.5} parent=0 // pred_fallthru
    _
  // Predicated region
  $region22: #{bayes_discriminator_forward.5} parent=0 // pred_check
    _
  $region23: #{bayes_discriminator_forward.5} parent=0 // pred_check_branch
    %1224 = sbr.rel (0) target = $region25
  $region24: #{bayes_discriminator_forward.5} parent=0 // pred_region
    _
  $region25: #{bayes_discriminator_forward.5} parent=0 // pred_fallthru
    _

// kernel: bayes_discriminator_forward.6
$region0: #{bayes_discriminator_forward.6}
  #allocation0 [shape = 'u32[]', space=smem, size = 0x4, offset = 0x4, fixed_abs, tag = 'smem constant byte address 0x4 - core index']
  #allocation1 [shape = 'u32[144,128]{1,0:T(1,128)}', space=vmem, size = 0x12000, scoped, tag = 'internal scratch']
  %s0 = inlined_call_operand.vmem [shape: f32[128,256], index: 0, kind: input, shape index: {}]
  %s1 = inlined_call_operand.vmem [shape: f32[256,32], index: 1, kind: input, shape index: {}]
  %s2 = inlined_call_operand.vmem [shape: f32[1,32], index: 2, kind: input, shape index: {}]
  %s3 = inlined_call_operand.vmem [shape: f32[1,32], index: 3, kind: input, shape index: {}]
  %s4 = inlined_call_operand.vmem [shape: f32[128,32], index: 4, kind: output, shape index: {}]
  %s5 = sld [smem:[#allocation0]]
  $region26: #{bayes_discriminator_forward.6} parent=0
    _
  %s7 = ssub.s32 1, %s5
  %s8 = scalar_select 0, %s7, %s5
  // Predicated region
  $region2: #{bayes_discriminator_forward.6} parent=0 // pred_check
    _
  $region3: #{bayes_discriminator_forward.6} parent=0 // pred_check_branch
    %10 = sbr.rel (0) target = $region5
  $region4: #{bayes_discriminator_forward.6} parent=0 // pred_region
    _
  $region5: #{bayes_discriminator_forward.6} parent=0 // pred_fallthru
    _
  // Predicated region
  $region6: #{bayes_discriminator_forward.6} parent=0 // pred_check
    _
  $region7: #{bayes_discriminator_forward.6} parent=0 // pred_check_branch
    %12 = sbr.rel (0) target = $region9
  $region8: #{bayes_discriminator_forward.6} parent=0 // pred_region
    _
  $region9: #{bayes_discriminator_forward.6} parent=0 // pred_fallthru
    _
  // Predicated region
  $region10: #{bayes_discriminator_forward.6} parent=0 // pred_check
    _
  $region11: #{bayes_discriminator_forward.6} parent=0 // pred_check_branch
    %14 = sbr.rel (0) target = $region13
  $region12: #{bayes_discriminator_forward.6} parent=0 // pred_region
    _
  $region13: #{bayes_discriminator_forward.6} parent=0 // pred_fallthru
    _
  // Predicated region
  $region14: #{bayes_discriminator_forward.6} parent=0 // pred_check
    _
  $region15: #{bayes_discriminator_forward.6} parent=0 // pred_check_branch
    %16 = sbr.rel (0) target = $region17
  $region16: #{bayes_discriminator_forward.6} parent=0 // pred_region
    _
  $region17: #{bayes_discriminator_forward.6} parent=0 // pred_fallthru
    _
  %v17 = vld [vmem:[%s0] sm:$0xff]
  %v18 = vld [vmem:[%s0 + $0x8] sm:$0xff]
  %v19 = vld [vmem:[%s0 + $0x10] sm:$0xff]
  %v20 = vld [vmem:[%s0 + $0x18] sm:$0xff]
  %v21 = vld [vmem:[%s0 + $0x20] sm:$0xff]
  %v22 = vld [vmem:[%s0 + $0x28] sm:$0xff]
  %v23 = vld [vmem:[%s0 + $0x30] sm:$0xff]
  %v24 = vld [vmem:[%s0 + $0x38] sm:$0xff]
  %v25 = vld [vmem:[%s0 + $0x40] sm:$0xff]
  %v26 = vld [vmem:[%s0 + $0x48] sm:$0xff]
  %v27 = vld [vmem:[%s0 + $0x50] sm:$0xff]
  %v28 = vld [vmem:[%s0 + $0x58] sm:$0xff]
  %v29 = vld [vmem:[%s0 + $0x60] sm:$0xff]
  %v30 = vld [vmem:[%s0 + $0x68] sm:$0xff]
  %v31 = vld [vmem:[%s0 + $0x70] sm:$0xff]
  %v32 = vld [vmem:[%s0 + $0x78] sm:$0xff]
  %v33 = vld [vmem:[%s0 + $0x80] sm:$0xff]
  %v34 = vld [vmem:[%s0 + $0x88] sm:$0xff]
  %v35 = vld [vmem:[%s0 + $0x90] sm:$0xff]
  %v36 = vld [vmem:[%s0 + $0x98] sm:$0xff]
  %v37 = vld [vmem:[%s0 + $0xa0] sm:$0xff]
  %v38 = vld [vmem:[%s0 + $0xa8] sm:$0xff]
  %v39 = vld [vmem:[%s0 + $0xb0] sm:$0xff]
  %v40 = vld [vmem:[%s0 + $0xb8] sm:$0xff]
  %v41 = vld [vmem:[%s0 + $0xc0] sm:$0xff]
  %v42 = vld [vmem:[%s0 + $0xc8] sm:$0xff]
  %v43 = vld [vmem:[%s0 + $0xd0] sm:$0xff]
  %v44 = vld [vmem:[%s0 + $0xd8] sm:$0xff]
  %v45 = vld [vmem:[%s0 + $0xe0] sm:$0xff]
  %v46 = vld [vmem:[%s0 + $0xe8] sm:$0xff]
  %v47 = vld [vmem:[%s0 + $0xf0] sm:$0xff]
  %v48 = vld [vmem:[%s0 + $0xf8] sm:$0xff]
  %v49 = vld [vmem:[%s1] sm:$0xff]
  %v50 = vld [vmem:[%s1 + $0x8] sm:$0xff]
  %v51 = vld [vmem:[%s1 + $0x10] sm:$0xff]
  %v52 = vld [vmem:[%s1 + $0x18] sm:$0xff]
  %v53 = vld [vmem:[%s1 + $0x20] sm:$0xff]
  %v54 = vld [vmem:[%s1 + $0x28] sm:$0xff]
  %v55 = vld [vmem:[%s1 + $0x30] sm:$0xff]
  %v56 = vld [vmem:[%s1 + $0x38] sm:$0xff]
  %v57 = vld [vmem:[%s1 + $0x40] sm:$0xff]
  %v58 = vld [vmem:[%s1 + $0x48] sm:$0xff]
  %v59 = vld [vmem:[%s1 + $0x50] sm:$0xff]
  %v60 = vld [vmem:[%s1 + $0x58] sm:$0xff]
  %v61 = vld [vmem:[%s1 + $0x60] sm:$0xff]
  %v62 = vld [vmem:[%s1 + $0x68] sm:$0xff]
  %v63 = vld [vmem:[%s1 + $0x70] sm:$0xff]
  %v64 = vld [vmem:[%s1 + $0x78] sm:$0xff]
  %v65 = vld [vmem:[%s1 + $0x80] sm:$0xff]
  %v66 = vld [vmem:[%s1 + $0x88] sm:$0xff]
  %v67 = vld [vmem:[%s1 + $0x90] sm:$0xff]
  %v68 = vld [vmem:[%s1 + $0x98] sm:$0xff]
  %v69 = vld [vmem:[%s1 + $0xa0] sm:$0xff]
  %v70 = vld [vmem:[%s1 + $0xa8] sm:$0xff]
  %v71 = vld [vmem:[%s1 + $0xb0] sm:$0xff]
  %v72 = vld [vmem:[%s1 + $0xb8] sm:$0xff]
  %v73 = vld [vmem:[%s1 + $0xc0] sm:$0xff]
  %v74 = vld [vmem:[%s1 + $0xc8] sm:$0xff]
  %v75 = vld [vmem:[%s1 + $0xd0] sm:$0xff]
  %v76 = vld [vmem:[%s1 + $0xd8] sm:$0xff]
  %v77 = vld [vmem:[%s1 + $0xe0] sm:$0xff]
  %v78 = vld [vmem:[%s1 + $0xe8] sm:$0xff]
  %v79 = vld [vmem:[%s1 + $0xf0] sm:$0xff]
  %v80 = vld [vmem:[%s1 + $0xf8] sm:$0xff]
  %81 = vmatprep.subr.mxu0 0.0
  %82 = vmatpush1.msra.mxu0 %v49
  %83 = vmatprep.subr.mxu0 0.0
  %84 = vmatpush1.msra.mxu0 %v50
  %85 = vmatprep.subr.mxu0 0.0
  %86 = vmatpush1.msra.mxu0 %v51
  %87 = vmatprep.subr.mxu0 0.0
  %88 = vmatpush1.msra.mxu0 %v52
  %89 = vmatprep.subr.mxu0 0.0
  %90 = vmatpush1.msra.mxu0 %v53
  %91 = vmatprep.subr.mxu0 0.0
  %92 = vmatpush1.msra.mxu0 %v54
  %93 = vmatprep.subr.mxu0 0.0
  %94 = vmatpush1.msra.mxu0 %v55
  %95 = vmatprep.subr.mxu0 0.0
  %96 = vmatpush1.msra.mxu0 %v56
  %97 = vmatprep.subr.mxu0 0.0
  %98 = vmatpush1.msra.mxu0 %v57
  %99 = vmatprep.subr.mxu0 0.0
  %100 = vmatpush1.msra.mxu0 %v58
  %101 = vmatprep.subr.mxu0 0.0
  %102 = vmatpush1.msra.mxu0 %v59
  %103 = vmatprep.subr.mxu0 0.0
  %104 = vmatpush1.msra.mxu0 %v60
  %105 = vmatprep.subr.mxu0 0.0
  %106 = vmatpush1.msra.mxu0 %v61
  %107 = vmatprep.subr.mxu0 0.0
  %108 = vmatpush1.msra.mxu0 %v62
  %109 = vmatprep.subr.mxu0 0.0
  %110 = vmatpush1.msra.mxu0 %v63
  %111 = vmatprep.subr.mxu0 0.0
  %112 = vmatpush1.msra.mxu0 %v64
  %113 = vmatprep.subr.mxu0 0.0
  %114 = vmatpush1.msra.mxu0 %v65
  %115 = vmatprep.subr.mxu0 0.0
  %116 = vmatpush1.msra.mxu0 %v66
  %117 = vmatprep.subr.mxu0 0.0
  %118 = vmatpush1.msra.mxu0 %v67
  %119 = vmatprep.subr.mxu0 0.0
  %120 = vmatpush1.msra.mxu0 %v68
  %121 = vmatprep.subr.mxu0 0.0
  %122 = vmatpush1.msra.mxu0 %v69
  %123 = vmatprep.subr.mxu0 0.0
  %124 = vmatpush1.msra.mxu0 %v70
  %125 = vmatprep.subr.mxu0 0.0
  %126 = vmatpush1.msra.mxu0 %v71
  %127 = vmatprep.subr.mxu0 0.0
  %128 = vmatpush1.msra.mxu0 %v72
  %129 = vmatprep.subr.mxu0 0.0
  %130 = vmatpush1.msra.mxu0 %v73
  %131 = vmatprep.subr.mxu0 0.0
  %132 = vmatpush1.msra.mxu0 %v74
  %133 = vmatprep.subr.mxu0 0.0
  %134 = vmatpush1.msra.mxu0 %v75
  %135 = vmatprep.subr.mxu0 0.0
  %136 = vmatpush1.msra.mxu0 %v76
  %137 = vmatprep.subr.mxu0 0.0
  %138 = vmatpush1.msra.mxu0 %v77
  %139 = vmatprep.subr.mxu0 0.0
  %140 = vmatpush1.msra.mxu0 %v78
  %141 = vmatprep.subr.mxu0 0.0
  %142 = vmatpush1.msra.mxu0 %v79
  %143 = vmatprep.subr.mxu0 0.0
  %144 = vmatpush1.msra.mxu0 %v80
  %145 = vmatprep.mubr.f32.mxu0 %v18
  %146 = vmatmul.mubr.f32.gmra.mrb[0].mxu0 %v17
  %v147 = vpop.f32.mrb[0].mxu0
  %v148 = vadd.f32 0.0, %v147
  %v149 = vpop.f32.mrb[0].mxu0
  %150 = vmatprep.mubr.f32.mxu0 %v20
  %151 = vmatmul.mubr.f32.gmra.mrb[0].mxu0 %v19
  %v152 = vpop.f32.mrb[0].mxu0
  %v153 = vadd.f32 0.0, %v152
  %v154 = vpop.f32.mrb[0].mxu0
  %155 = vmatprep.mubr.f32.mxu0 %v22
  %156 = vmatmul.mubr.f32.gmra.mrb[0].mxu0 %v21
  %v157 = vpop.f32.mrb[0].mxu0
  %v158 = vadd.f32 0.0, %v157
  %v159 = vpop.f32.mrb[0].mxu0
  %160 = vmatprep.mubr.f32.mxu0 %v24
  %161 = vmatmul.mubr.f32.gmra.mrb[0].mxu0 %v23
  %v162 = vpop.f32.mrb[0].mxu0
  %v163 = vadd.f32 0.0, %v162
  %v164 = vpop.f32.mrb[0].mxu0
  %165 = vmatprep.mubr.f32.mxu0 %v26
  %166 = vmatmul.mubr.f32.gmra.mrb[0].mxu0 %v25
  %v167 = vpop.f32.mrb[0].mxu0
  %v168 = vadd.f32 0.0, %v167
  %v169 = vpop.f32.mrb[0].mxu0
  %170 = vmatprep.mubr.f32.mxu0 %v28
  %171 = vmatmul.mubr.f32.gmra.mrb[0].mxu0 %v27
  %v172 = vpop.f32.mrb[0].mxu0
  %v173 = vadd.f32 0.0, %v172
  %v174 = vpop.f32.mrb[0].mxu0
  %175 = vmatprep.mubr.f32.mxu0 %v30
  %176 = vmatmul.mubr.f32.gmra.mrb[0].mxu0 %v29
  %v177 = vpop.f32.mrb[0].mxu0
  %v178 = vadd.f32 0.0, %v177
  %v179 = vpop.f32.mrb[0].mxu0
  %180 = vmatprep.mubr.f32.mxu0 %v32
  %181 = vmatmul.mubr.f32.gmra.mrb[0].mxu0 %v31
  %v182 = vpop.f32.mrb[0].mxu0
  %v183 = vadd.f32 0.0, %v182
  %v184 = vpop.f32.mrb[0].mxu0
  %185 = vmatprep.mubr.f32.mxu0 %v34
  %186 = vmatmul.mubr.f32.gmra.mrb[0].mxu0 %v33
  %v187 = vpop.f32.mrb[0].mxu0
  %v188 = vadd.f32 0.0, %v187
  %v189 = vpop.f32.mrb[0].mxu0
  %190 = vmatprep.mubr.f32.mxu0 %v36
  %191 = vmatmul.mubr.f32.gmra.mrb[0].mxu0 %v35
  %v192 = vpop.f32.mrb[0].mxu0
  %v193 = vadd.f32 0.0, %v192
  %v194 = vpop.f32.mrb[0].mxu0
  %195 = vmatprep.mubr.f32.mxu0 %v38
  %196 = vmatmul.mubr.f32.gmra.mrb[0].mxu0 %v37
  %v197 = vpop.f32.mrb[0].mxu0
  %v198 = vadd.f32 0.0, %v197
  %v199 = vpop.f32.mrb[0].mxu0
  %200 = vmatprep.mubr.f32.mxu0 %v40
  %201 = vmatmul.mubr.f32.gmra.mrb[0].mxu0 %v39
  %v202 = vpop.f32.mrb[0].mxu0
  %v203 = vadd.f32 0.0, %v202
  %v204 = vpop.f32.mrb[0].mxu0
  %205 = vmatprep.mubr.f32.mxu0 %v42
  %206 = vmatmul.mubr.f32.gmra.mrb[0].mxu0 %v41
  %v207 = vpop.f32.mrb[0].mxu0
  %v208 = vadd.f32 0.0, %v207
  %v209 = vpop.f32.mrb[0].mxu0
  %210 = vmatprep.mubr.f32.mxu0 %v44
  %211 = vmatmul.mubr.f32.gmra.mrb[0].mxu0 %v43
  %v212 = vpop.f32.mrb[0].mxu0
  %v213 = vadd.f32 0.0, %v212
  %v214 = vpop.f32.mrb[0].mxu0
  %215 = vmatprep.mubr.f32.mxu0 %v46
  %216 = vmatmul.mubr.f32.gmra.mrb[0].mxu0 %v45
  %v217 = vpop.f32.mrb[0].mxu0
  %v218 = vadd.f32 0.0, %v217
  %v219 = vpop.f32.mrb[0].mxu0
  %220 = vmatprep.mubr.f32.mxu0 %v48
  %221 = vmatmul.mubr.f32.gmra.mrb[0].mxu0 %v47
  %v222 = vpop.f32.mrb[0].mxu0
  %v223 = vadd.f32 0.0, %v222
  %v224 = vpop.f32.mrb[0].mxu0
  %225 = vdwg.mxu0
  %v226 = vld [vmem:[%s2] sm:$0x1]
  %v227 = vld [vmem:[%s3] sm:$0x1]
  %vm228 = vcmask 261120
  %v229 = vsel %vm228, %v148, 0.0
  %v230 = vsel %vm228, %v153, 0.0
  %v231 = vadd.f32 %v229, %v230
  %v232 = vsel %vm228, %v158, 0.0
  %v233 = vadd.f32 %v231, %v232
  %v234 = vsel %vm228, %v163, 0.0
  %v235 = vadd.f32 %v233, %v234
  %v236 = vsel %vm228, %v168, 0.0
  %v237 = vadd.f32 %v235, %v236
  %v238 = vsel %vm228, %v173, 0.0
  %v239 = vadd.f32 %v237, %v238
  %v240 = vsel %vm228, %v178, 0.0
  %v241 = vadd.f32 %v239, %v240
  %v242 = vsel %vm228, %v183, 0.0
  %v243 = vadd.f32 %v241, %v242
  %v244 = vsel %vm228, %v188, 0.0
  %v245 = vadd.f32 %v243, %v244
  %v246 = vsel %vm228, %v193, 0.0
  %v247 = vadd.f32 %v245, %v246
  %v248 = vsel %vm228, %v198, 0.0
  %v249 = vadd.f32 %v247, %v248
  %v250 = vsel %vm228, %v203, 0.0
  %v251 = vadd.f32 %v249, %v250
  %v252 = vsel %vm228, %v208, 0.0
  %v253 = vadd.f32 %v251, %v252
  %v254 = vsel %vm228, %v213, 0.0
  %v255 = vadd.f32 %v253, %v254
  %v256 = vsel %vm228, %v218, 0.0
  %v257 = vadd.f32 %v255, %v256
  %v258 = vsel %vm228, %v223, 0.0
  %v259 = vadd.f32 %v257, %v258
  %v260 = vrot.slane %v259, 4
  %v261 = vadd.f32 %v259, %v260
  %v262 = vrot.slane %v261, 2
  %v263 = vadd.f32 %v261, %v262
  %v264 = vrot.slane %v263, 1
  %v265 = vadd.f32 %v263, %v264
  %v266 = vrcp.pop 128.0
  %v267 = vmul.f32 %v265, %v266
  %v268 = vmul.f32 %v148, %v148
  %v269 = vmul.f32 %v153, %v153
  %v270 = vmul.f32 %v158, %v158
  %v271 = vmul.f32 %v163, %v163
  %v272 = vmul.f32 %v168, %v168
  %v273 = vmul.f32 %v173, %v173
  %v274 = vmul.f32 %v178, %v178
  %v275 = vmul.f32 %v183, %v183
  %v276 = vmul.f32 %v188, %v188
  %v277 = vmul.f32 %v193, %v193
  %v278 = vmul.f32 %v198, %v198
  %v279 = vmul.f32 %v203, %v203
  %v280 = vmul.f32 %v208, %v208
  %v281 = vmul.f32 %v213, %v213
  %v282 = vmul.f32 %v218, %v218
  %v283 = vmul.f32 %v223, %v223
  %v284 = vsel %vm228, %v268, 0.0
  %v285 = vsel %vm228, %v269, 0.0
  %v286 = vadd.f32 %v284, %v285
  %v287 = vsel %vm228, %v270, 0.0
  %v288 = vadd.f32 %v286, %v287
  %v289 = vsel %vm228, %v271, 0.0
  %v290 = vadd.f32 %v288, %v289
  %v291 = vsel %vm228, %v272, 0.0
  %v292 = vadd.f32 %v290, %v291
  %v293 = vsel %vm228, %v273, 0.0
  %v294 = vadd.f32 %v292, %v293
  %v295 = vsel %vm228, %v274, 0.0
  %v296 = vadd.f32 %v294, %v295
  %v297 = vsel %vm228, %v275, 0.0
  %v298 = vadd.f32 %v296, %v297
  %v299 = vsel %vm228, %v276, 0.0
  %v300 = vadd.f32 %v298, %v299
  %v301 = vsel %vm228, %v277, 0.0
  %v302 = vadd.f32 %v300, %v301
  %v303 = vsel %vm228, %v278, 0.0
  %v304 = vadd.f32 %v302, %v303
  %v305 = vsel %vm228, %v279, 0.0
  %v306 = vadd.f32 %v304, %v305
  %v307 = vsel %vm228, %v280, 0.0
  %v308 = vadd.f32 %v306, %v307
  %v309 = vsel %vm228, %v281, 0.0
  %v310 = vadd.f32 %v308, %v309
  %v311 = vsel %vm228, %v282, 0.0
  %v312 = vadd.f32 %v310, %v311
  %v313 = vsel %vm228, %v283, 0.0
  %v314 = vadd.f32 %v312, %v313
  %v315 = vrot.slane %v314, 4
  %v316 = vadd.f32 %v314, %v315
  %v317 = vrot.slane %v316, 2
  %v318 = vadd.f32 %v316, %v317
  %v319 = vrot.slane %v318, 1
  %v320 = vadd.f32 %v318, %v319
  %v321 = vmul.f32 %v320, %v266
  %v322 = vmul.f32 %v267, %v267
  %v323 = vsub.f32 %v321, %v322
  %v324 = vadd.f32 %v323, 1e-05
  %v325 = vrsqrt.pop %v324
  %v326 = vmul.f32 %v226, %v325
  %v327 = vmul.f32 %v267, %v326
  %v328 = vsub.f32 %v227, %v327
  %v330 = vlaneseq
  %v331 = vshrl.u32 %v330, 7
  %v332 = vsub.s32 0, %v331
  %v333 = vrot.slane %v326, %v332
  %v335 = vmul.f32 %v148, %v333
  %v336 = vmul.f32 %v153, %v333
  %v337 = vmul.f32 %v158, %v333
  %v338 = vmul.f32 %v163, %v333
  %v339 = vmul.f32 %v168, %v333
  %v340 = vmul.f32 %v173, %v333
  %v341 = vmul.f32 %v178, %v333
  %v342 = vmul.f32 %v183, %v333
  %v343 = vmul.f32 %v188, %v333
  %v344 = vmul.f32 %v193, %v333
  %v345 = vmul.f32 %v198, %v333
  %v346 = vmul.f32 %v203, %v333
  %v347 = vmul.f32 %v208, %v333
  %v348 = vmul.f32 %v213, %v333
  %v349 = vmul.f32 %v218, %v333
  %v350 = vmul.f32 %v223, %v333
  %v352 = vlaneseq
  %v353 = vshrl.u32 %v352, 7
  %v354 = vsub.s32 0, %v353
  %v355 = vrot.slane %v328, %v354
  %v357 = vadd.f32 %v335, %v355
  %v358 = vadd.f32 %v336, %v355
  %v359 = vadd.f32 %v337, %v355
  %v360 = vadd.f32 %v338, %v355
  %v361 = vadd.f32 %v339, %v355
  %v362 = vadd.f32 %v340, %v355
  %v363 = vadd.f32 %v341, %v355
  %v364 = vadd.f32 %v342, %v355
  %v365 = vadd.f32 %v343, %v355
  %v366 = vadd.f32 %v344, %v355
  %v367 = vadd.f32 %v345, %v355
  %v368 = vadd.f32 %v346, %v355
  %v369 = vadd.f32 %v347, %v355
  %v370 = vadd.f32 %v348, %v355
  %v371 = vadd.f32 %v349, %v355
  %v372 = vadd.f32 %v350, %v355
  %vm373 = vcmp.ge.f32.partialorder %v357, 0.0
  %vm374 = vcmp.ge.f32.partialorder %v358, 0.0
  %vm375 = vcmp.ge.f32.partialorder %v359, 0.0
  %vm376 = vcmp.ge.f32.partialorder %v360, 0.0
  %vm377 = vcmp.ge.f32.partialorder %v361, 0.0
  %vm378 = vcmp.ge.f32.partialorder %v362, 0.0
  %vm379 = vcmp.ge.f32.partialorder %v363, 0.0
  %vm380 = vcmp.ge.f32.partialorder %v364, 0.0
  %vm381 = vcmp.ge.f32.partialorder %v365, 0.0
  %vm382 = vcmp.ge.f32.partialorder %v366, 0.0
  %vm383 = vcmp.ge.f32.partialorder %v367, 0.0
  %vm384 = vcmp.ge.f32.partialorder %v368, 0.0
  %vm385 = vcmp.ge.f32.partialorder %v369, 0.0
  %vm386 = vcmp.ge.f32.partialorder %v370, 0.0
  %vm387 = vcmp.ge.f32.partialorder %v371, 0.0
  %vm388 = vcmp.ge.f32.partialorder %v372, 0.0
  %v389 = vmul.f32 %v357, 0.2
  %v390 = vmul.f32 %v358, 0.2
  %v391 = vmul.f32 %v359, 0.2
  %v392 = vmul.f32 %v360, 0.2
  %v393 = vmul.f32 %v361, 0.2
  %v394 = vmul.f32 %v362, 0.2
  %v395 = vmul.f32 %v363, 0.2
  %v396 = vmul.f32 %v364, 0.2
  %v397 = vmul.f32 %v365, 0.2
  %v398 = vmul.f32 %v366, 0.2
  %v399 = vmul.f32 %v367, 0.2
  %v400 = vmul.f32 %v368, 0.2
  %v401 = vmul.f32 %v369, 0.2
  %v402 = vmul.f32 %v370, 0.2
  %v403 = vmul.f32 %v371, 0.2
  %v404 = vmul.f32 %v372, 0.2
  %v405 = vsel %vm373, %v357, %v389
  %v406 = vsel %vm374, %v358, %v390
  %v407 = vsel %vm375, %v359, %v391
  %v408 = vsel %vm376, %v360, %v392
  %v409 = vsel %vm377, %v361, %v393
  %v410 = vsel %vm378, %v362, %v394
  %v411 = vsel %vm379, %v363, %v395
  %v412 = vsel %vm380, %v364, %v396
  %v413 = vsel %vm381, %v365, %v397
  %v414 = vsel %vm382, %v366, %v398
  %v415 = vsel %vm383, %v367, %v399
  %v416 = vsel %vm384, %v368, %v400
  %v417 = vsel %vm385, %v369, %v401
  %v418 = vsel %vm386, %v370, %v402
  %v419 = vsel %vm387, %v371, %v403
  %v420 = vsel %vm388, %v372, %v404
  %421 = vst.msk [vmem:[%s4] sm:$0xff] %vm228, %v405
  %422 = vst.msk [vmem:[%s4 + $0x8] sm:$0xff] %vm228, %v406
  %423 = vst.msk [vmem:[%s4 + $0x10] sm:$0xff] %vm228, %v407
  %424 = vst.msk [vmem:[%s4 + $0x18] sm:$0xff] %vm228, %v408
  %425 = vst.msk [vmem:[%s4 + $0x20] sm:$0xff] %vm228, %v409
  %426 = vst.msk [vmem:[%s4 + $0x28] sm:$0xff] %vm228, %v410
  %427 = vst.msk [vmem:[%s4 + $0x30] sm:$0xff] %vm228, %v411
  %428 = vst.msk [vmem:[%s4 + $0x38] sm:$0xff] %vm228, %v412
  %429 = vst.msk [vmem:[%s4 + $0x40] sm:$0xff] %vm228, %v413
  %430 = vst.msk [vmem:[%s4 + $0x48] sm:$0xff] %vm228, %v414
  %431 = vst.msk [vmem:[%s4 + $0x50] sm:$0xff] %vm228, %v415
  %432 = vst.msk [vmem:[%s4 + $0x58] sm:$0xff] %vm228, %v416
  %433 = vst.msk [vmem:[%s4 + $0x60] sm:$0xff] %vm228, %v417
  %434 = vst.msk [vmem:[%s4 + $0x68] sm:$0xff] %vm228, %v418
  %435 = vst.msk [vmem:[%s4 + $0x70] sm:$0xff] %vm228, %v419
  %436 = vst.msk [vmem:[%s4 + $0x78] sm:$0xff] %vm228, %v420
  // Predicated region
  $region18: #{bayes_discriminator_forward.6} parent=0 // pred_check
    _
  $region19: #{bayes_discriminator_forward.6} parent=0 // pred_check_branch
    %438 = sbr.rel (0) target = $region21
  $region20: #{bayes_discriminator_forward.6} parent=0 // pred_region
    _
  $region21: #{bayes_discriminator_forward.6} parent=0 // pred_fallthru
    _
  // Predicated region
  $region22: #{bayes_discriminator_forward.6} parent=0 // pred_check
    _
  $region23: #{bayes_discriminator_forward.6} parent=0 // pred_check_branch
    %440 = sbr.rel (0) target = $region25
  $region24: #{bayes_discriminator_forward.6} parent=0 // pred_region
    _
  $region25: #{bayes_discriminator_forward.6} parent=0 // pred_fallthru
    _

// kernel: bayes_discriminator_forward.7
$region0: #{bayes_discriminator_forward.7}
  #allocation0 [shape = 'u32[]', space=smem, size = 0x4, offset = 0x4, fixed_abs, tag = 'smem constant byte address 0x4 - core index']
  #allocation1 [shape = 'u32[144,128]{1,0:T(1,128)}', space=vmem, size = 0x12000, scoped, tag = 'internal scratch']
  %s0 = inlined_call_operand.vmem [shape: f32[32,512], index: 0, kind: input, shape index: {}]
  %s1 = inlined_call_operand.vmem [shape: f32[512,64], index: 1, kind: input, shape index: {}]
  %s2 = inlined_call_operand.vmem [shape: f32[1,64], index: 2, kind: input, shape index: {}]
  %s3 = inlined_call_operand.vmem [shape: f32[1,64], index: 3, kind: input, shape index: {}]
  %s4 = inlined_call_operand.vmem [shape: f32[16,64], index: 4, kind: input, shape index: {}]
  %s5 = inlined_call_operand.vmem [shape: f32[2,1], index: 5, kind: output, shape index: {}]
  %s6 = sld [smem:[#allocation0]]
  $region30: #{bayes_discriminator_forward.7} parent=0
    _
  %s8 = ssub.s32 1, %s6
  %s9 = scalar_select 0, %s8, %s6
  // Predicated region
  $region2: #{bayes_discriminator_forward.7} parent=0 // pred_check
    _
  $region3: #{bayes_discriminator_forward.7} parent=0 // pred_check_branch
    %11 = sbr.rel (0) target = $region5
  $region4: #{bayes_discriminator_forward.7} parent=0 // pred_region
    _
  $region5: #{bayes_discriminator_forward.7} parent=0 // pred_fallthru
    _
  // Predicated region
  $region6: #{bayes_discriminator_forward.7} parent=0 // pred_check
    _
  $region7: #{bayes_discriminator_forward.7} parent=0 // pred_check_branch
    %13 = sbr.rel (0) target = $region9
  $region8: #{bayes_discriminator_forward.7} parent=0 // pred_region
    _
  $region9: #{bayes_discriminator_forward.7} parent=0 // pred_fallthru
    _
  // Predicated region
  $region10: #{bayes_discriminator_forward.7} parent=0 // pred_check
    _
  $region11: #{bayes_discriminator_forward.7} parent=0 // pred_check_branch
    %15 = sbr.rel (0) target = $region13
  $region12: #{bayes_discriminator_forward.7} parent=0 // pred_region
    _
  $region13: #{bayes_discriminator_forward.7} parent=0 // pred_fallthru
    _
  // Predicated region
  $region14: #{bayes_discriminator_forward.7} parent=0 // pred_check
    _
  $region15: #{bayes_discriminator_forward.7} parent=0 // pred_check_branch
    %17 = sbr.rel (0) target = $region17
  $region16: #{bayes_discriminator_forward.7} parent=0 // pred_region
    _
  $region17: #{bayes_discriminator_forward.7} parent=0 // pred_fallthru
    _
  // Predicated region
  $region18: #{bayes_discriminator_forward.7} parent=0 // pred_check
    _
  $region19: #{bayes_discriminator_forward.7} parent=0 // pred_check_branch
    %19 = sbr.rel (0) target = $region21
  $region20: #{bayes_discriminator_forward.7} parent=0 // pred_region
    _
  $region21: #{bayes_discriminator_forward.7} parent=0 // pred_fallthru
    _
  %v20 = vld [vmem:[%s0] sm:$0xff]
  %v21 = vld [vmem:[%s0 + $0x8] sm:$0xff]
  %v22 = vld [vmem:[%s0 + $0x10] sm:$0xff]
  %v23 = vld [vmem:[%s0 + $0x18] sm:$0xff]
  %v24 = vld [vmem:[%s0 + $0x20] sm:$0xff]
  %v25 = vld [vmem:[%s0 + $0x28] sm:$0xff]
  %v26 = vld [vmem:[%s0 + $0x30] sm:$0xff]
  %v27 = vld [vmem:[%s0 + $0x38] sm:$0xff]
  %v28 = vld [vmem:[%s0 + $0x40] sm:$0xff]
  %v29 = vld [vmem:[%s0 + $0x48] sm:$0xff]
  %v30 = vld [vmem:[%s0 + $0x50] sm:$0xff]
  %v31 = vld [vmem:[%s0 + $0x58] sm:$0xff]
  %v32 = vld [vmem:[%s0 + $0x60] sm:$0xff]
  %v33 = vld [vmem:[%s0 + $0x68] sm:$0xff]
  %v34 = vld [vmem:[%s0 + $0x70] sm:$0xff]
  %v35 = vld [vmem:[%s0 + $0x78] sm:$0xff]
  %v36 = vld [vmem:[%s1] sm:$0xff]
  %v37 = vld [vmem:[%s1 + $0x8] sm:$0xff]
  %v38 = vld [vmem:[%s1 + $0x10] sm:$0xff]
  %v39 = vld [vmem:[%s1 + $0x18] sm:$0xff]
  %v40 = vld [vmem:[%s1 + $0x20] sm:$0xff]
  %v41 = vld [vmem:[%s1 + $0x28] sm:$0xff]
  %v42 = vld [vmem:[%s1 + $0x30] sm:$0xff]
  %v43 = vld [vmem:[%s1 + $0x38] sm:$0xff]
  %v44 = vld [vmem:[%s1 + $0x40] sm:$0xff]
  %v45 = vld [vmem:[%s1 + $0x48] sm:$0xff]
  %v46 = vld [vmem:[%s1 + $0x50] sm:$0xff]
  %v47 = vld [vmem:[%s1 + $0x58] sm:$0xff]
  %v48 = vld [vmem:[%s1 + $0x60] sm:$0xff]
  %v49 = vld [vmem:[%s1 + $0x68] sm:$0xff]
  %v50 = vld [vmem:[%s1 + $0x70] sm:$0xff]
  %v51 = vld [vmem:[%s1 + $0x78] sm:$0xff]
  %v52 = vld [vmem:[%s1 + $0x80] sm:$0xff]
  %v53 = vld [vmem:[%s1 + $0x88] sm:$0xff]
  %v54 = vld [vmem:[%s1 + $0x90] sm:$0xff]
  %v55 = vld [vmem:[%s1 + $0x98] sm:$0xff]
  %v56 = vld [vmem:[%s1 + $0xa0] sm:$0xff]
  %v57 = vld [vmem:[%s1 + $0xa8] sm:$0xff]
  %v58 = vld [vmem:[%s1 + $0xb0] sm:$0xff]
  %v59 = vld [vmem:[%s1 + $0xb8] sm:$0xff]
  %v60 = vld [vmem:[%s1 + $0xc0] sm:$0xff]
  %v61 = vld [vmem:[%s1 + $0xc8] sm:$0xff]
  %v62 = vld [vmem:[%s1 + $0xd0] sm:$0xff]
  %v63 = vld [vmem:[%s1 + $0xd8] sm:$0xff]
  %v64 = vld [vmem:[%s1 + $0xe0] sm:$0xff]
  %v65 = vld [vmem:[%s1 + $0xe8] sm:$0xff]
  %v66 = vld [vmem:[%s1 + $0xf0] sm:$0xff]
  %v67 = vld [vmem:[%s1 + $0xf8] sm:$0xff]
  %v68 = vld [vmem:[%s1 + $0x100] sm:$0xff]
  %v69 = vld [vmem:[%s1 + $0x108] sm:$0xff]
  %v70 = vld [vmem:[%s1 + $0x110] sm:$0xff]
  %v71 = vld [vmem:[%s1 + $0x118] sm:$0xff]
  %v72 = vld [vmem:[%s1 + $0x120] sm:$0xff]
  %v73 = vld [vmem:[%s1 + $0x128] sm:$0xff]
  %v74 = vld [vmem:[%s1 + $0x130] sm:$0xff]
  %v75 = vld [vmem:[%s1 + $0x138] sm:$0xff]
  %v76 = vld [vmem:[%s1 + $0x140] sm:$0xff]
  %v77 = vld [vmem:[%s1 + $0x148] sm:$0xff]
  %v78 = vld [vmem:[%s1 + $0x150] sm:$0xff]
  %v79 = vld [vmem:[%s1 + $0x158] sm:$0xff]
  %v80 = vld [vmem:[%s1 + $0x160] sm:$0xff]
  %v81 = vld [vmem:[%s1 + $0x168] sm:$0xff]
  %v82 = vld [vmem:[%s1 + $0x170] sm:$0xff]
  %v83 = vld [vmem:[%s1 + $0x178] sm:$0xff]
  %v84 = vld [vmem:[%s1 + $0x180] sm:$0xff]
  %v85 = vld [vmem:[%s1 + $0x188] sm:$0xff]
  %v86 = vld [vmem:[%s1 + $0x190] sm:$0xff]
  %v87 = vld [vmem:[%s1 + $0x198] sm:$0xff]
  %v88 = vld [vmem:[%s1 + $0x1a0] sm:$0xff]
  %v89 = vld [vmem:[%s1 + $0x1a8] sm:$0xff]
  %v90 = vld [vmem:[%s1 + $0x1b0] sm:$0xff]
  %v91 = vld [vmem:[%s1 + $0x1b8] sm:$0xff]
  %v92 = vld [vmem:[%s1 + $0x1c0] sm:$0xff]
  %v93 = vld [vmem:[%s1 + $0x1c8] sm:$0xff]
  %v94 = vld [vmem:[%s1 + $0x1d0] sm:$0xff]
  %v95 = vld [vmem:[%s1 + $0x1d8] sm:$0xff]
  %v96 = vld [vmem:[%s1 + $0x1e0] sm:$0xff]
  %v97 = vld [vmem:[%s1 + $0x1e8] sm:$0xff]
  %v98 = vld [vmem:[%s1 + $0x1f0] sm:$0xff]
  %v99 = vld [vmem:[%s1 + $0x1f8] sm:$0xff]
  %100 = vmatprep.subr.mxu0 0.0
  %101 = vmatpush1.msra.mxu0 %v36
  %102 = vmatprep.subr.mxu0 0.0
  %103 = vmatpush1.msra.mxu0 %v37
  %104 = vmatprep.subr.mxu0 0.0
  %105 = vmatpush1.msra.mxu0 %v38
  %106 = vmatprep.subr.mxu0 0.0
  %107 = vmatpush1.msra.mxu0 %v39
  %108 = vmatprep.subr.mxu0 0.0
  %109 = vmatpush1.msra.mxu0 %v40
  %110 = vmatprep.subr.mxu0 0.0
  %111 = vmatpush1.msra.mxu0 %v41
  %112 = vmatprep.subr.mxu0 0.0
  %113 = vmatpush1.msra.mxu0 %v42
  %114 = vmatprep.subr.mxu0 0.0
  %115 = vmatpush1.msra.mxu0 %v43
  %116 = vmatprep.subr.mxu0 0.0
  %117 = vmatpush1.msra.mxu0 %v44
  %118 = vmatprep.subr.mxu0 0.0
  %119 = vmatpush1.msra.mxu0 %v45
  %120 = vmatprep.subr.mxu0 0.0
  %121 = vmatpush1.msra.mxu0 %v46
  %122 = vmatprep.subr.mxu0 0.0
  %123 = vmatpush1.msra.mxu0 %v47
  %124 = vmatprep.subr.mxu0 0.0
  %125 = vmatpush1.msra.mxu0 %v48
  %126 = vmatprep.subr.mxu0 0.0
  %127 = vmatpush1.msra.mxu0 %v49
  %128 = vmatprep.subr.mxu0 0.0
  %129 = vmatpush1.msra.mxu0 %v50
  %130 = vmatprep.subr.mxu0 0.0
  %131 = vmatpush1.msra.mxu0 %v51
  %132 = vmatprep.subr.mxu0 0.0
  %133 = vmatpush1.msra.mxu0 %v52
  %134 = vmatprep.subr.mxu0 0.0
  %135 = vmatpush1.msra.mxu0 %v53
  %136 = vmatprep.subr.mxu0 0.0
  %137 = vmatpush1.msra.mxu0 %v54
  %138 = vmatprep.subr.mxu0 0.0
  %139 = vmatpush1.msra.mxu0 %v55
  %140 = vmatprep.subr.mxu0 0.0
  %141 = vmatpush1.msra.mxu0 %v56
  %142 = vmatprep.subr.mxu0 0.0
  %143 = vmatpush1.msra.mxu0 %v57
  %144 = vmatprep.subr.mxu0 0.0
  %145 = vmatpush1.msra.mxu0 %v58
  %146 = vmatprep.subr.mxu0 0.0
  %147 = vmatpush1.msra.mxu0 %v59
  %148 = vmatprep.subr.mxu0 0.0
  %149 = vmatpush1.msra.mxu0 %v60
  %150 = vmatprep.subr.mxu0 0.0
  %151 = vmatpush1.msra.mxu0 %v61
  %152 = vmatprep.subr.mxu0 0.0
  %153 = vmatpush1.msra.mxu0 %v62
  %154 = vmatprep.subr.mxu0 0.0
  %155 = vmatpush1.msra.mxu0 %v63
  %156 = vmatprep.subr.mxu0 0.0
  %157 = vmatpush1.msra.mxu0 %v64
  %158 = vmatprep.subr.mxu0 0.0
  %159 = vmatpush1.msra.mxu0 %v65
  %160 = vmatprep.subr.mxu0 0.0
  %161 = vmatpush1.msra.mxu0 %v66
  %162 = vmatprep.subr.mxu0 0.0
  %163 = vmatpush1.msra.mxu0 %v67
  %164 = vmatprep.mubr.f32.mxu0 %v21
  %165 = vmatmul.mubr.f32.gmra.mrb[0].mxu0 %v20
  %v166 = vpop.f32.mrb[0].mxu0
  %v167 = vadd.f32 0.0, %v166
  %v168 = vpop.f32.mrb[0].mxu0
  %169 = vmatprep.mubr.f32.mxu0 %v25
  %170 = vmatmul.mubr.f32.gmra.mrb[0].mxu0 %v24
  %v171 = vpop.f32.mrb[0].mxu0
  %v172 = vadd.f32 0.0, %v171
  %v173 = vpop.f32.mrb[0].mxu0
  %174 = vmatprep.mubr.f32.mxu0 %v29
  %175 = vmatmul.mubr.f32.gmra.mrb[0].mxu0 %v28
  %v176 = vpop.f32.mrb[0].mxu0
  %v177 = vadd.f32 0.0, %v176
  %v178 = vpop.f32.mrb[0].mxu0
  %179 = vmatprep.mubr.f32.mxu0 %v33
  %180 = vmatmul.mubr.f32.gmra.mrb[0].mxu0 %v32
  %v181 = vpop.f32.mrb[0].mxu0
  %v182 = vadd.f32 0.0, %v181
  %v183 = vpop.f32.mrb[0].mxu0
  %184 = vdwg.mxu0
  %185 = vmatprep.subr.mxu0 0.0
  %186 = vmatpush1.msra.mxu0 %v68
  %187 = vmatprep.subr.mxu0 0.0
  %188 = vmatpush1.msra.mxu0 %v69
  %189 = vmatprep.subr.mxu0 0.0
  %190 = vmatpush1.msra.mxu0 %v70
  %191 = vmatprep.subr.mxu0 0.0
  %192 = vmatpush1.msra.mxu0 %v71
  %193 = vmatprep.subr.mxu0 0.0
  %194 = vmatpush1.msra.mxu0 %v72
  %195 = vmatprep.subr.mxu0 0.0
  %196 = vmatpush1.msra.mxu0 %v73
  %197 = vmatprep.subr.mxu0 0.0
  %198 = vmatpush1.msra.mxu0 %v74
  %199 = vmatprep.subr.mxu0 0.0
  %200 = vmatpush1.msra.mxu0 %v75
  %201 = vmatprep.subr.mxu0 0.0
  %202 = vmatpush1.msra.mxu0 %v76
  %203 = vmatprep.subr.mxu0 0.0
  %204 = vmatpush1.msra.mxu0 %v77
  %205 = vmatprep.subr.mxu0 0.0
  %206 = vmatpush1.msra.mxu0 %v78
  %207 = vmatprep.subr.mxu0 0.0
  %208 = vmatpush1.msra.mxu0 %v79
  %209 = vmatprep.subr.mxu0 0.0
  %210 = vmatpush1.msra.mxu0 %v80
  %211 = vmatprep.subr.mxu0 0.0
  %212 = vmatpush1.msra.mxu0 %v81
  %213 = vmatprep.subr.mxu0 0.0
  %214 = vmatpush1.msra.mxu0 %v82
  %215 = vmatprep.subr.mxu0 0.0
  %216 = vmatpush1.msra.mxu0 %v83
  %217 = vmatprep.subr.mxu0 0.0
  %218 = vmatpush1.msra.mxu0 %v84
  %219 = vmatprep.subr.mxu0 0.0
  %220 = vmatpush1.msra.mxu0 %v85
  %221 = vmatprep.subr.mxu0 0.0
  %222 = vmatpush1.msra.mxu0 %v86
  %223 = vmatprep.subr.mxu0 0.0
  %224 = vmatpush1.msra.mxu0 %v87
  %225 = vmatprep.subr.mxu0 0.0
  %226 = vmatpush1.msra.mxu0 %v88
  %227 = vmatprep.subr.mxu0 0.0
  %228 = vmatpush1.msra.mxu0 %v89
  %229 = vmatprep.subr.mxu0 0.0
  %230 = vmatpush1.msra.mxu0 %v90
  %231 = vmatprep.subr.mxu0 0.0
  %232 = vmatpush1.msra.mxu0 %v91
  %233 = vmatprep.subr.mxu0 0.0
  %234 = vmatpush1.msra.mxu0 %v92
  %235 = vmatprep.subr.mxu0 0.0
  %236 = vmatpush1.msra.mxu0 %v93
  %237 = vmatprep.subr.mxu0 0.0
  %238 = vmatpush1.msra.mxu0 %v94
  %239 = vmatprep.subr.mxu0 0.0
  %240 = vmatpush1.msra.mxu0 %v95
  %241 = vmatprep.subr.mxu0 0.0
  %242 = vmatpush1.msra.mxu0 %v96
  %243 = vmatprep.subr.mxu0 0.0
  %244 = vmatpush1.msra.mxu0 %v97
  %245 = vmatprep.subr.mxu0 0.0
  %246 = vmatpush1.msra.mxu0 %v98
  %247 = vmatprep.subr.mxu0 0.0
  %248 = vmatpush1.msra.mxu0 %v99
  %249 = vmatprep.mubr.f32.mxu0 %v23
  %250 = vmatmul.mubr.f32.gmra.mrb[0].mxu0 %v22
  %v251 = vpop.f32.mrb[0].mxu0
  %v252 = vadd.f32 %v167, %v251
  %v253 = vpop.f32.mrb[0].mxu0
  %254 = vmatprep.mubr.f32.mxu0 %v27
  %255 = vmatmul.mubr.f32.gmra.mrb[0].mxu0 %v26
  %v256 = vpop.f32.mrb[0].mxu0
  %v257 = vadd.f32 %v172, %v256
  %v258 = vpop.f32.mrb[0].mxu0
  %259 = vmatprep.mubr.f32.mxu0 %v31
  %260 = vmatmul.mubr.f32.gmra.mrb[0].mxu0 %v30
  %v261 = vpop.f32.mrb[0].mxu0
  %v262 = vadd.f32 %v177, %v261
  %v263 = vpop.f32.mrb[0].mxu0
  %264 = vmatprep.mubr.f32.mxu0 %v35
  %265 = vmatmul.mubr.f32.gmra.mrb[0].mxu0 %v34
  %v266 = vpop.f32.mrb[0].mxu0
  %v267 = vadd.f32 %v182, %v266
  %v268 = vpop.f32.mrb[0].mxu0
  %269 = vdwg.mxu0
  %v270 = vld [vmem:[%s2] sm:$0x1]
  %v271 = vld [vmem:[%s3] sm:$0x1]
  %vm272 = vcmask 523264
  %v273 = vsel %vm272, %v252, 0.0
  %v274 = vsel %vm272, %v257, 0.0
  %v275 = vadd.f32 %v273, %v274
  %v276 = vsel %vm272, %v262, 0.0
  %v277 = vadd.f32 %v275, %v276
  %v278 = vsel %vm272, %v267, 0.0
  %v279 = vadd.f32 %v277, %v278
  %v280 = vrot.slane %v279, 4
  %v281 = vadd.f32 %v279, %v280
  %v282 = vrot.slane %v281, 2
  %v283 = vadd.f32 %v281, %v282
  %v284 = vrot.slane %v283, 1
  %v285 = vadd.f32 %v283, %v284
  %v286 = vrcp.pop 32.0
  %v287 = vmul.f32 %v285, %v286
  %v288 = vmul.f32 %v252, %v252
  %v289 = vmul.f32 %v257, %v257
  %v290 = vmul.f32 %v262, %v262
  %v291 = vmul.f32 %v267, %v267
  %v292 = vsel %vm272, %v288, 0.0
  %v293 = vsel %vm272, %v289, 0.0
  %v294 = vadd.f32 %v292, %v293
  %v295 = vsel %vm272, %v290, 0.0
  %v296 = vadd.f32 %v294, %v295
  %v297 = vsel %vm272, %v291, 0.0
  %v298 = vadd.f32 %v296, %v297
  %v299 = vrot.slane %v298, 4
  %v300 = vadd.f32 %v298, %v299
  %v301 = vrot.slane %v300, 2
  %v302 = vadd.f32 %v300, %v301
  %v303 = vrot.slane %v302, 1
  %v304 = vadd.f32 %v302, %v303
  %v305 = vmul.f32 %v304, %v286
  %v306 = vmul.f32 %v287, %v287
  %v307 = vsub.f32 %v305, %v306
  %v308 = vadd.f32 %v307, 1e-05
  %v309 = vrsqrt.pop %v308
  %v310 = vmul.f32 %v270, %v309
  %v311 = vmul.f32 %v287, %v310
  %v312 = vsub.f32 %v271, %v311
  %v314 = vlaneseq
  %v315 = vshrl.u32 %v314, 7
  %v316 = vsub.s32 0, %v315
  %v317 = vrot.slane %v310, %v316
  %v319 = vmul.f32 %v252, %v317
  %v320 = vmul.f32 %v257, %v317
  %v321 = vmul.f32 %v262, %v317
  %v322 = vmul.f32 %v267, %v317
  %v324 = vlaneseq
  %v325 = vshrl.u32 %v324, 7
  %v326 = vsub.s32 0, %v325
  %v327 = vrot.slane %v312, %v326
  %v329 = vadd.f32 %v319, %v327
  %v330 = vadd.f32 %v320, %v327
  %v331 = vadd.f32 %v321, %v327
  %v332 = vadd.f32 %v322, %v327
  %vm333 = vcmp.ge.f32.partialorder %v329, 0.0
  %vm334 = vcmp.ge.f32.partialorder %v330, 0.0
  %vm335 = vcmp.ge.f32.partialorder %v331, 0.0
  %vm336 = vcmp.ge.f32.partialorder %v332, 0.0
  %v337 = vmul.f32 %v329, 0.2
  %v338 = vmul.f32 %v330, 0.2
  %v339 = vmul.f32 %v331, 0.2
  %v340 = vmul.f32 %v332, 0.2
  %v341 = vsel %vm333, %v329, %v337
  %v342 = vsel %vm334, %v330, %v338
  %v343 = vsel %vm335, %v331, %v339
  %v344 = vsel %vm336, %v332, %v340
  %v345 = vld [vmem:[%s4] sm:$0xff]
  %v346 = vld [vmem:[%s4 + $0x8] sm:$0xff]
  %v347 = vmul.f32 %v341, %v345
  %v348 = vmul.f32 %v342, %v346
  %v349 = vsel %vm272, %v347, 0.0
  %v350 = vsel %vm272, %v348, 0.0
  %v351 = vadd.f32 %v349, %v350
  %352 = vadd.xlane.f32.xlu0 %v351
  %v353 = vpop.xlane.xlu0 %352
  %v354 = vrot.slane %v353, 4
  %v355 = vadd.f32 %v353, %v354
  %v356 = vrot.slane %v355, 2
  %v357 = vadd.f32 %v355, %v356
  %v358 = vrot.slane %v357, 1
  %v359 = vadd.f32 %v357, %v358
  %s360 = vtos %v359
  %v361 = vstv %s360
  %vm362 = vcmask 0
  %363 = vst.msk [vmem:[%s5] sm:$0x1] %vm362, %v361
  %v364 = vmul.f32 %v343, %v345
  %v365 = vmul.f32 %v344, %v346
  %v366 = vsel %vm272, %v364, 0.0
  %v367 = vsel %vm272, %v365, 0.0
  %v368 = vadd.f32 %v366, %v367
  %369 = vadd.xlane.f32.xlu0 %v368
  %v370 = vpop.xlane.xlu0 %369
  %v371 = vrot.slane %v370, 4
  %v372 = vadd.f32 %v370, %v371
  %v373 = vrot.slane %v372, 2
  %v374 = vadd.f32 %v372, %v373
  %v375 = vrot.slane %v374, 1
  %v376 = vadd.f32 %v374, %v375
  %s377 = vtos %v376
  %v378 = vstv %s377
  %379 = vst.msk [vmem:[%s5 + $0x1] sm:$0x1] %vm362, %v378
  // Predicated region
  $region22: #{bayes_discriminator_forward.7} parent=0 // pred_check
    _
  $region23: #{bayes_discriminator_forward.7} parent=0 // pred_check_branch
    %381 = sbr.rel (0) target = $region25
  $region24: #{bayes_discriminator_forward.7} parent=0 // pred_region
    _
  $region25: #{bayes_discriminator_forward.7} parent=0 // pred_fallthru
    _
  // Predicated region
  $region26: #{bayes_discriminator_forward.7} parent=0 // pred_check
    _
  $region27: #{bayes_discriminator_forward.7} parent=0 // pred_check_branch
    %383 = sbr.rel (0) target = $region29
  $region28: #{bayes_discriminator_forward.7} parent=0 // pred_region
    _
  $region29: #{bayes_discriminator_forward.7} parent=0 // pred_fallthru
    _

</llo_original>
